<compile_context>
chip_gen: v6e
topology: v6e:2x2x1
jax: 0.10.0
libtpu: 0.0.40
codegen_flags: <defaults>
</compile_context>

<pallas_src>
import functools
from math import ceil

import jax
import jax.numpy as jnp
from jax import lax
from jax.experimental import pallas as pl
from jax.experimental.pallas import tpu as pltpu


_VMEM = pl.BlockSpec(memory_space=pltpu.MemorySpace.VMEM)
BN_EPS = 1e-5     # torch.nn.BatchNorm1d default eps
DP_EPS = 1e-15    # PyG dense_diff_pool EPS

# contract node axis (axis 0) of both operands  ==  lhs^T @ rhs, no vxpose
_CONTRACT_N = (((0,), (0,)), ((), ()))
# contract feature axis (axis 1) of both operands  ==  lhs @ rhs^T
_CONTRACT_F = (((1,), (1,)), ((), ()))


# ---------------------------------------------------------------------------
# One DenseGCNConv(normalize=False) + mask + ReLU + training-mode BatchNorm1d,
# used as a traced helper inside the fused kernels (adj_sl built once outside).
#   h   = adj_sl @ (h @ W) + b
#   h   = relu(h * mask)
#   out = (h - mean_nodes) / sqrt(var_nodes + eps)     (batch=1, gamma=1, beta=0)
# ---------------------------------------------------------------------------
def _gcn_bn(h, adj_sl, w, b, inv_n, mask=None):
    h = jnp.dot(h, w, preferred_element_type=jnp.float32)
    h = jnp.dot(adj_sl, h, preferred_element_type=jnp.float32) + b
    if mask is not None:
        h = h * mask
    h = jnp.maximum(h, 0.0)
    # single-pass BN statistics over nodes: var = E[h^2] - mean^2
    mean = jnp.sum(h, axis=0, keepdims=True) * inv_n
    ex2 = jnp.sum(h * h, axis=0, keepdims=True) * inv_n
    var = ex2 - mean * mean
    return (h - mean) * lax.rsqrt(var + BN_EPS)


def _adj_with_self_loops(adj_ref):
    n = adj_ref.shape[0]
    row = lax.broadcasted_iota(jnp.int32, (n, n), 0)
    col = lax.broadcasted_iota(jnp.int32, (n, n), 1)
    return jnp.where(row == col, jnp.float32(1.0), adj_ref[...])


# ---------------------------------------------------------------------------
# Kernel A/B: one full DiffPool level
#   s       = GNN_pool(x, adj, mask)       (3 fused GCN+ReLU+BN layers)
#   z       = GNN_embed(x, adj, mask)      (3 fused GCN+ReLU+BN layers)
#   s       = softmax(s, -1) * mask ; z = z * mask
#   x_out   = s^T z
#   adj_out = s^T adj s
#   link    = ||adj - s s^T||_F / numel(adj)
#   entropy = mean_n( sum_c( -s log(s + eps) ) )
# ---------------------------------------------------------------------------
def _diffpool_level_kernel(x_ref, adj_ref, mask_ref,
                           pw0_ref, pb0_ref, pw1_ref, pb1_ref, pw2_ref, pb2_ref,
                           ew0_ref, eb0_ref, ew1_ref, eb1_ref, ew2_ref, eb2_ref,
                           xo_ref, adjo_ref, ll_ref, el_ref):
    n = adj_ref.shape[0]
    inv_n = jnp.float32(1.0 / n)

    adj = adj_ref[...]
    adj_sl = _adj_with_self_loops(adj_ref)      # built once, reused by 6 layers
    mask = mask_ref[...]
    x = x_ref[...]

    # pool GNN -> cluster assignment logits
    s = _gcn_bn(x, adj_sl, pw0_ref[...], pb0_ref[...], inv_n, mask)
    s = _gcn_bn(s, adj_sl, pw1_ref[...], pb1_ref[...], inv_n, mask)
    s = _gcn_bn(s, adj_sl, pw2_ref[...], pb2_ref[...], inv_n, mask)

    # embed GNN -> node embeddings
    z = _gcn_bn(x, adj_sl, ew0_ref[...], eb0_ref[...], inv_n, mask)
    z = _gcn_bn(z, adj_sl, ew1_ref[...], eb1_ref[...], inv_n, mask)
    z = _gcn_bn(z, adj_sl, ew2_ref[...], eb2_ref[...], inv_n, mask)

    # dense_diff_pool
    m = jnp.max(s, axis=-1, keepdims=True)
    e = jnp.exp(s - m)
    sm = e * pl.reciprocal(jnp.sum(e, axis=-1, keepdims=True), approx=True)
    sm = sm * mask
    zm = z * mask

    xo_ref[...] = lax.dot_general(sm, zm, _CONTRACT_N,           # s^T z  -> (C, F)
                                  preferred_element_type=jnp.float32)
    sa = lax.dot_general(sm, adj, _CONTRACT_N,                   # s^T A  -> (C, N)
                         preferred_element_type=jnp.float32)
    adjo_ref[...] = jnp.dot(sa, sm, preferred_element_type=jnp.float32)  # (C, C)

    sst = lax.dot_general(sm, sm, _CONTRACT_F,                   # s s^T  -> (N, N)
                          preferred_element_type=jnp.float32)
    diff = adj - sst
    ll_ref[...] = (jnp.sqrt(jnp.sum(diff * diff, keepdims=True))
                   * jnp.float32(1.0 / (n * n)))
    el_ref[...] = jnp.sum(-sm * jnp.log(sm + DP_EPS), keepdims=True) * inv_n


def diffpool_level(x, adj, mask, pool_params, embed_params):
    n, _ = x.shape
    c = pool_params[-1][0].shape[1]     # number of clusters after this level
    f = embed_params[-1][0].shape[1]    # embedding width
    flat = []
    for w, b in (*pool_params, *embed_params):
        flat.extend((w, b))
    out_shapes = (
        jax.ShapeDtypeStruct((c, f), jnp.float32),   # pooled x
        jax.ShapeDtypeStruct((c, c), jnp.float32),   # pooled adj
        jax.ShapeDtypeStruct((1, 1), jnp.float32),   # link loss
        jax.ShapeDtypeStruct((1, 1), jnp.float32),   # entropy loss
    )
    return pl.pallas_call(
        _diffpool_level_kernel,
        out_shape=out_shapes,
        in_specs=[_VMEM] * (3 + len(flat)),
        out_specs=(_VMEM,) * 4,
    )(x, adj, mask, *flat)


# ---------------------------------------------------------------------------
# Kernel C: gnn3_embed + readout head
#   z      = GNN_embed(x, adj)                     (3 fused GCN+ReLU+BN layers)
#   g      = pool_mat @ z                          (== x.view(G, -1, H).mean(1))
#   h      = relu(g @ W1 + b1)
#   logits = h @ W2 + b2
#   out    = log_softmax(logits, -1)
# ---------------------------------------------------------------------------
def _final_kernel(x_ref, adj_ref,
                  ew0_ref, eb0_ref, ew1_ref, eb1_ref, ew2_ref, eb2_ref,
                  pool_ref, w1_ref, b1_ref, w2_ref, b2_ref,
                  o_ref):
    n = adj_ref.shape[0]
    inv_n = jnp.float32(1.0 / n)
    adj_sl = _adj_with_self_loops(adj_ref)

    z = _gcn_bn(x_ref[...], adj_sl, ew0_ref[...], eb0_ref[...], inv_n)
    z = _gcn_bn(z, adj_sl, ew1_ref[...], eb1_ref[...], inv_n)
    z = _gcn_bn(z, adj_sl, ew2_ref[...], eb2_ref[...], inv_n)

    # per-graph mean readout via a precomputed (G, C) averaging matrix
    g = jnp.dot(pool_ref[...], z, preferred_element_type=jnp.float32)
    h = jnp.dot(g, w1_ref[...], preferred_element_type=jnp.float32) + b1_ref[...]
    h = jnp.maximum(h, 0.0)
    logits = jnp.dot(h, w2_ref[...], preferred_element_type=jnp.float32) + b2_ref[...]

    m = jnp.max(logits, axis=-1, keepdims=True)
    zc = logits - m
    lse = jnp.log(jnp.sum(jnp.exp(zc), axis=-1, keepdims=True))
    o_ref[...] = zc - lse


def diffpool_final(x, adj, embed_params, pool_mat, lin1, lin2):
    g = pool_mat.shape[0]
    n_cls = lin2[0].shape[1]
    flat = []
    for w, b in embed_params:
        flat.extend((w, b))
    args = (x, adj, *flat, pool_mat, lin1[0], lin1[1], lin2[0], lin2[1])
    return pl.pallas_call(
        _final_kernel,
        out_shape=jax.ShapeDtypeStruct((g, n_cls), jnp.float32),
        in_specs=[_VMEM] * len(args),
        out_specs=_VMEM,
    )(*args)


# ---------------------------------------------------------------------------
# Parameter init (deterministic, synthetic)
# ---------------------------------------------------------------------------
def init_gnn(key, fin, hid, fout):
    dims = [(fin, hid), (hid, hid), (hid, fout)]
    keys = jax.random.split(key, len(dims))
    params = []
    for k, (i, o) in zip(keys, dims):
        w = jax.random.normal(k, (i, o), jnp.float32) * (1.0 / jnp.sqrt(i))
        b = jnp.zeros((1, o), jnp.float32)
        params.append((w, b))
    return params


def init_linear(key, fin, fout):
    w = jax.random.normal(key, (fin, fout), jnp.float32) * (1.0 / jnp.sqrt(fin))
    b = jnp.zeros((1, fout), jnp.float32)
    return w, b


# ---------------------------------------------------------------------------
# Full DiffPool forward  (3 pallas_calls total)
# ---------------------------------------------------------------------------
@functools.partial(jax.jit, static_argnames=("num_graphs",))
def diffpool_forward(x, adj, mask_vec, num_graphs, params):
    n = x.shape[0]
    mask = mask_vec.astype(jnp.float32).reshape(n, 1)

    # level 1: gnn1_pool + gnn1_embed + dense_diff_pool
    x2, adj2, l1, e1 = diffpool_level(
        x, adj, mask, params["gnn1_pool"], params["gnn1_embed"])

    # level 2: gnn2_pool + gnn2_embed + dense_diff_pool (mask=None -> all ones)
    ones2 = jnp.ones((x2.shape[0], 1), jnp.float32)
    x3, adj3, l2, e2 = diffpool_level(
        x2, adj2, ones2, params["gnn2_pool"], params["gnn2_embed"])

    # level 3: gnn3_embed + readout head (x.view(G, -1, H).mean(1) as a matmul)
    n2 = x3.shape[0]
    per = n2 // num_graphs
    gid = jnp.arange(n2) // per
    pool_mat = (jnp.arange(num_graphs)[:, None] == gid[None, :]).astype(
        jnp.float32) * (1.0 / per)

    logp = diffpool_final(x3, adj3, params["gnn3_embed"], pool_mat,
                          params["lin1"], params["lin2"])
    return logp, (l1 + l2)[0, 0], (e1 + e2)[0, 0]


if __name__ == "__main__":
    key = jax.random.PRNGKey(0)

    # Small synthetic config consistent with the module:
    #   max_nodes = nodes_per_graph * batch_size
    NODES_PER_GRAPH = 16
    BATCH_GRAPHS = 2
    N = NODES_PER_GRAPH * BATCH_GRAPHS          # max_nodes = 32
    F_IN = 16                                    # dataset.num_features
    HID = 64
    NUM_CLASSES = 8                              # dataset.num_classes
    N1 = ceil(0.25 * N)                          # gnn1_pool out_channels = 8
    N2 = ceil(0.25 * N1)                         # gnn2_pool out_channels = 2

    k_x, k_a, k1, k2, k3, k4, k5, k6, k7 = jax.random.split(key, 9)

    # Inputs
    x = jax.random.normal(k_x, (N, F_IN), jnp.float32)
    upper = jnp.triu(
        jax.random.bernoulli(k_a, 0.3, (N, N)).astype(jnp.float32), 1)
    adj = upper + upper.T                        # dense symmetric 0/1 adjacency
    # Node mask (all-ones valid-node mask, int) -> num_graphs = max(mask) + 1 = 2
    mask_vec = jnp.ones((N,), jnp.int32)
    num_graphs = int(mask_vec.max()) + 1

    params = {
        "gnn1_pool":  init_gnn(k1, F_IN, HID, N1),
        "gnn1_embed": init_gnn(k2, F_IN, HID, HID),
        "gnn2_pool":  init_gnn(k3, HID, HID, N2),
        "gnn2_embed": init_gnn(k4, HID, HID, HID),
        "gnn3_embed": init_gnn(k5, HID, HID, HID),
        "lin1":       init_linear(k6, HID, HID),
        "lin2":       init_linear(k7, HID, NUM_CLASSES),
    }

    log_probs, link_loss, ent_loss = diffpool_forward(
        x, adj, mask_vec, num_graphs, params)
    jax.block_until_ready((log_probs, link_loss, ent_loss))

    assert log_probs.shape == (num_graphs, NUM_CLASSES)
    assert bool(jnp.all(jnp.isfinite(log_probs)))
    assert bool(jnp.isfinite(link_loss)) and bool(jnp.isfinite(ent_loss))
    print("KERNEL_OK")
</pallas_src>

<mosaic_0001>
module attributes {stable_mosaic.version = 11 : i64} {
  func.func @_diffpool_level_kernel(%arg0: memref<32x16xf32, #tpu.memory_space<vmem>>, %arg1: memref<32x32xf32, #tpu.memory_space<vmem>>, %arg2: memref<32x1xf32, #tpu.memory_space<vmem>>, %arg3: memref<16x64xf32, #tpu.memory_space<vmem>>, %arg4: memref<1x64xf32, #tpu.memory_space<vmem>>, %arg5: memref<64x64xf32, #tpu.memory_space<vmem>>, %arg6: memref<1x64xf32, #tpu.memory_space<vmem>>, %arg7: memref<64x8xf32, #tpu.memory_space<vmem>>, %arg8: memref<1x8xf32, #tpu.memory_space<vmem>>, %arg9: memref<16x64xf32, #tpu.memory_space<vmem>>, %arg10: memref<1x64xf32, #tpu.memory_space<vmem>>, %arg11: memref<64x64xf32, #tpu.memory_space<vmem>>, %arg12: memref<1x64xf32, #tpu.memory_space<vmem>>, %arg13: memref<64x64xf32, #tpu.memory_space<vmem>>, %arg14: memref<1x64xf32, #tpu.memory_space<vmem>>, %arg15: memref<8x64xf32, #tpu.memory_space<vmem>>, %arg16: memref<8x8xf32, #tpu.memory_space<vmem>>, %arg17: memref<1x1xf32, #tpu.memory_space<vmem>>, %arg18: memref<1x1xf32, #tpu.memory_space<vmem>>) attributes {dimension_semantics = [], scalar_prefetch = 0 : i64, scratch_operands = 0 : i64, tpu.core_type = #tpu.core_type<tc>} {
    %c0 = arith.constant 0 : index
    %c0_0 = arith.constant 0 : index
    %0 = vector.load %arg1[%c0, %c0_0] : memref<32x32xf32, #tpu.memory_space<vmem>>, vector<32x32xf32>
    %1 = tpu.iota {dimensions = array<i32: 0>} : vector<32x32xi32>
    %2 = tpu.iota {dimensions = array<i32: 1>} : vector<32x32xi32>
    %3 = arith.cmpi eq, %1, %2 : vector<32x32xi32>
    %c0_1 = arith.constant 0 : index
    %c0_2 = arith.constant 0 : index
    %4 = vector.load %arg1[%c0_1, %c0_2] : memref<32x32xf32, #tpu.memory_space<vmem>>, vector<32x32xf32>
    %cst = arith.constant 1.000000e+00 : f32
    %5 = vector.broadcast %cst : f32 to vector<32x32xf32>
    %6 = arith.select %3, %5, %4 : vector<32x32xi1>, vector<32x32xf32>
    %c0_3 = arith.constant 0 : index
    %c0_4 = arith.constant 0 : index
    %7 = vector.load %arg2[%c0_3, %c0_4] : memref<32x1xf32, #tpu.memory_space<vmem>>, vector<32x1xf32>
    %c0_5 = arith.constant 0 : index
    %c0_6 = arith.constant 0 : index
    %8 = vector.load %arg0[%c0_5, %c0_6] : memref<32x16xf32, #tpu.memory_space<vmem>>, vector<32x16xf32>
    %c0_7 = arith.constant 0 : index
    %c0_8 = arith.constant 0 : index
    %9 = vector.load %arg3[%c0_7, %c0_8] : memref<16x64xf32, #tpu.memory_space<vmem>>, vector<16x64xf32>
    %c0_9 = arith.constant 0 : index
    %c0_10 = arith.constant 0 : index
    %10 = vector.load %arg4[%c0_9, %c0_10] : memref<1x64xf32, #tpu.memory_space<vmem>>, vector<1x64xf32>
    %cst_11 = arith.constant dense<0.000000e+00> : vector<32x64xf32>
    %11 = tpu.matmul %8, %9, %cst_11 {dimension_numbers = #tpu.dot_dimension_numbers<[1], [0], [0], [1], [0, 0, 1, 1], [], []>} : vector<32x16xf32>, vector<16x64xf32>, vector<32x64xf32> -> vector<32x64xf32>
    %cst_12 = arith.constant dense<0.000000e+00> : vector<32x64xf32>
    %12 = tpu.matmul %6, %11, %cst_12 {dimension_numbers = #tpu.dot_dimension_numbers<[1], [0], [0], [1], [0, 0, 1, 1], [], []>} : vector<32x32xf32>, vector<32x64xf32>, vector<32x64xf32> -> vector<32x64xf32>
    %13 = vector.broadcast %10 : vector<1x64xf32> to vector<32x64xf32>
    %14 = arith.addf %12, %13 : vector<32x64xf32>
    %15 = vector.broadcast %7 : vector<32x1xf32> to vector<32x64xf32>
    %16 = arith.mulf %14, %15 : vector<32x64xf32>
    %cst_13 = arith.constant 0.000000e+00 : f32
    %17 = vector.broadcast %cst_13 : f32 to vector<32x64xf32>
    %18 = arith.maximumf %16, %17 : vector<32x64xf32>
    %cst_14 = arith.constant dense<0.000000e+00> : vector<64xf32>
    %19 = vector.multi_reduction <add>, %18, %cst_14 [0] : vector<32x64xf32> to vector<64xf32>
    %20 = vector.shape_cast %19 : vector<64xf32> to vector<1x64xf32>
    %cst_15 = arith.constant 3.125000e-02 : f32
    %21 = vector.broadcast %cst_15 : f32 to vector<1x64xf32>
    %22 = arith.mulf %20, %21 : vector<1x64xf32>
    %23 = arith.mulf %18, %18 : vector<32x64xf32>
    %cst_16 = arith.constant dense<0.000000e+00> : vector<64xf32>
    %24 = vector.multi_reduction <add>, %23, %cst_16 [0] : vector<32x64xf32> to vector<64xf32>
    %25 = vector.shape_cast %24 : vector<64xf32> to vector<1x64xf32>
    %cst_17 = arith.constant 3.125000e-02 : f32
    %26 = vector.broadcast %cst_17 : f32 to vector<1x64xf32>
    %27 = arith.mulf %25, %26 : vector<1x64xf32>
    %28 = arith.mulf %22, %22 : vector<1x64xf32>
    %29 = arith.subf %27, %28 : vector<1x64xf32>
    %30 = vector.broadcast %22 : vector<1x64xf32> to vector<32x64xf32>
    %31 = arith.subf %18, %30 : vector<32x64xf32>
    %cst_18 = arith.constant 9.99999974E-6 : f32
    %32 = vector.broadcast %cst_18 : f32 to vector<1x64xf32>
    %33 = arith.addf %29, %32 : vector<1x64xf32>
    %34 = math.rsqrt %33 : vector<1x64xf32>
    %35 = vector.broadcast %34 : vector<1x64xf32> to vector<32x64xf32>
    %36 = arith.mulf %31, %35 : vector<32x64xf32>
    %c0_19 = arith.constant 0 : index
    %c0_20 = arith.constant 0 : index
    %37 = vector.load %arg5[%c0_19, %c0_20] : memref<64x64xf32, #tpu.memory_space<vmem>>, vector<64x64xf32>
    %c0_21 = arith.constant 0 : index
    %c0_22 = arith.constant 0 : index
    %38 = vector.load %arg6[%c0_21, %c0_22] : memref<1x64xf32, #tpu.memory_space<vmem>>, vector<1x64xf32>
    %cst_23 = arith.constant dense<0.000000e+00> : vector<32x64xf32>
    %39 = tpu.matmul %36, %37, %cst_23 {dimension_numbers = #tpu.dot_dimension_numbers<[1], [0], [0], [1], [0, 0, 1, 1], [], []>} : vector<32x64xf32>, vector<64x64xf32>, vector<32x64xf32> -> vector<32x64xf32>
    %cst_24 = arith.constant dense<0.000000e+00> : vector<32x64xf32>
    %40 = tpu.matmul %6, %39, %cst_24 {dimension_numbers = #tpu.dot_dimension_numbers<[1], [0], [0], [1], [0, 0, 1, 1], [], []>} : vector<32x32xf32>, vector<32x64xf32>, vector<32x64xf32> -> vector<32x64xf32>
    %41 = vector.broadcast %38 : vector<1x64xf32> to vector<32x64xf32>
    %42 = arith.addf %40, %41 : vector<32x64xf32>
    %43 = vector.broadcast %7 : vector<32x1xf32> to vector<32x64xf32>
    %44 = arith.mulf %42, %43 : vector<32x64xf32>
    %cst_25 = arith.constant 0.000000e+00 : f32
    %45 = vector.broadcast %cst_25 : f32 to vector<32x64xf32>
    %46 = arith.maximumf %44, %45 : vector<32x64xf32>
    %cst_26 = arith.constant dense<0.000000e+00> : vector<64xf32>
    %47 = vector.multi_reduction <add>, %46, %cst_26 [0] : vector<32x64xf32> to vector<64xf32>
    %48 = vector.shape_cast %47 : vector<64xf32> to vector<1x64xf32>
    %cst_27 = arith.constant 3.125000e-02 : f32
    %49 = vector.broadcast %cst_27 : f32 to vector<1x64xf32>
    %50 = arith.mulf %48, %49 : vector<1x64xf32>
    %51 = arith.mulf %46, %46 : vector<32x64xf32>
    %cst_28 = arith.constant dense<0.000000e+00> : vector<64xf32>
    %52 = vector.multi_reduction <add>, %51, %cst_28 [0] : vector<32x64xf32> to vector<64xf32>
    %53 = vector.shape_cast %52 : vector<64xf32> to vector<1x64xf32>
    %cst_29 = arith.constant 3.125000e-02 : f32
    %54 = vector.broadcast %cst_29 : f32 to vector<1x64xf32>
    %55 = arith.mulf %53, %54 : vector<1x64xf32>
    %56 = arith.mulf %50, %50 : vector<1x64xf32>
    %57 = arith.subf %55, %56 : vector<1x64xf32>
    %58 = vector.broadcast %50 : vector<1x64xf32> to vector<32x64xf32>
    %59 = arith.subf %46, %58 : vector<32x64xf32>
    %cst_30 = arith.constant 9.99999974E-6 : f32
    %60 = vector.broadcast %cst_30 : f32 to vector<1x64xf32>
    %61 = arith.addf %57, %60 : vector<1x64xf32>
    %62 = math.rsqrt %61 : vector<1x64xf32>
    %63 = vector.broadcast %62 : vector<1x64xf32> to vector<32x64xf32>
    %64 = arith.mulf %59, %63 : vector<32x64xf32>
    %c0_31 = arith.constant 0 : index
    %c0_32 = arith.constant 0 : index
    %65 = vector.load %arg7[%c0_31, %c0_32] : memref<64x8xf32, #tpu.memory_space<vmem>>, vector<64x8xf32>
    %c0_33 = arith.constant 0 : index
    %c0_34 = arith.constant 0 : index
    %66 = vector.load %arg8[%c0_33, %c0_34] : memref<1x8xf32, #tpu.memory_space<vmem>>, vector<1x8xf32>
    %cst_35 = arith.constant dense<0.000000e+00> : vector<32x8xf32>
    %67 = tpu.matmul %64, %65, %cst_35 {dimension_numbers = #tpu.dot_dimension_numbers<[1], [0], [0], [1], [0, 0, 1, 1], [], []>} : vector<32x64xf32>, vector<64x8xf32>, vector<32x8xf32> -> vector<32x8xf32>
    %cst_36 = arith.constant dense<0.000000e+00> : vector<32x8xf32>
    %68 = tpu.matmul %6, %67, %cst_36 {dimension_numbers = #tpu.dot_dimension_numbers<[1], [0], [0], [1], [0, 0, 1, 1], [], []>} : vector<32x32xf32>, vector<32x8xf32>, vector<32x8xf32> -> vector<32x8xf32>
    %69 = vector.broadcast %66 : vector<1x8xf32> to vector<32x8xf32>
    %70 = arith.addf %68, %69 : vector<32x8xf32>
    %71 = vector.broadcast %7 : vector<32x1xf32> to vector<32x8xf32>
    %72 = arith.mulf %70, %71 : vector<32x8xf32>
    %cst_37 = arith.constant 0.000000e+00 : f32
    %73 = vector.broadcast %cst_37 : f32 to vector<32x8xf32>
    %74 = arith.maximumf %72, %73 : vector<32x8xf32>
    %cst_38 = arith.constant dense<0.000000e+00> : vector<8xf32>
    %75 = vector.multi_reduction <add>, %74, %cst_38 [0] : vector<32x8xf32> to vector<8xf32>
    %76 = vector.shape_cast %75 : vector<8xf32> to vector<1x8xf32>
    %cst_39 = arith.constant 3.125000e-02 : f32
    %77 = vector.broadcast %cst_39 : f32 to vector<1x8xf32>
    %78 = arith.mulf %76, %77 : vector<1x8xf32>
    %79 = arith.mulf %74, %74 : vector<32x8xf32>
    %cst_40 = arith.constant dense<0.000000e+00> : vector<8xf32>
    %80 = vector.multi_reduction <add>, %79, %cst_40 [0] : vector<32x8xf32> to vector<8xf32>
    %81 = vector.shape_cast %80 : vector<8xf32> to vector<1x8xf32>
    %cst_41 = arith.constant 3.125000e-02 : f32
    %82 = vector.broadcast %cst_41 : f32 to vector<1x8xf32>
    %83 = arith.mulf %81, %82 : vector<1x8xf32>
    %84 = arith.mulf %78, %78 : vector<1x8xf32>
    %85 = arith.subf %83, %84 : vector<1x8xf32>
    %86 = vector.broadcast %78 : vector<1x8xf32> to vector<32x8xf32>
    %87 = arith.subf %74, %86 : vector<32x8xf32>
    %cst_42 = arith.constant 9.99999974E-6 : f32
    %88 = vector.broadcast %cst_42 : f32 to vector<1x8xf32>
    %89 = arith.addf %85, %88 : vector<1x8xf32>
    %90 = math.rsqrt %89 : vector<1x8xf32>
    %91 = vector.broadcast %90 : vector<1x8xf32> to vector<32x8xf32>
    %92 = arith.mulf %87, %91 : vector<32x8xf32>
    %c0_43 = arith.constant 0 : index
    %c0_44 = arith.constant 0 : index
    %93 = vector.load %arg9[%c0_43, %c0_44] : memref<16x64xf32, #tpu.memory_space<vmem>>, vector<16x64xf32>
    %c0_45 = arith.constant 0 : index
    %c0_46 = arith.constant 0 : index
    %94 = vector.load %arg10[%c0_45, %c0_46] : memref<1x64xf32, #tpu.memory_space<vmem>>, vector<1x64xf32>
    %cst_47 = arith.constant dense<0.000000e+00> : vector<32x64xf32>
    %95 = tpu.matmul %8, %93, %cst_47 {dimension_numbers = #tpu.dot_dimension_numbers<[1], [0], [0], [1], [0, 0, 1, 1], [], []>} : vector<32x16xf32>, vector<16x64xf32>, vector<32x64xf32> -> vector<32x64xf32>
    %cst_48 = arith.constant dense<0.000000e+00> : vector<32x64xf32>
    %96 = tpu.matmul %6, %95, %cst_48 {dimension_numbers = #tpu.dot_dimension_numbers<[1], [0], [0], [1], [0, 0, 1, 1], [], []>} : vector<32x32xf32>, vector<32x64xf32>, vector<32x64xf32> -> vector<32x64xf32>
    %97 = vector.broadcast %94 : vector<1x64xf32> to vector<32x64xf32>
    %98 = arith.addf %96, %97 : vector<32x64xf32>
    %99 = vector.broadcast %7 : vector<32x1xf32> to vector<32x64xf32>
    %100 = arith.mulf %98, %99 : vector<32x64xf32>
    %cst_49 = arith.constant 0.000000e+00 : f32
    %101 = vector.broadcast %cst_49 : f32 to vector<32x64xf32>
    %102 = arith.maximumf %100, %101 : vector<32x64xf32>
    %cst_50 = arith.constant dense<0.000000e+00> : vector<64xf32>
    %103 = vector.multi_reduction <add>, %102, %cst_50 [0] : vector<32x64xf32> to vector<64xf32>
    %104 = vector.shape_cast %103 : vector<64xf32> to vector<1x64xf32>
    %cst_51 = arith.constant 3.125000e-02 : f32
    %105 = vector.broadcast %cst_51 : f32 to vector<1x64xf32>
    %106 = arith.mulf %104, %105 : vector<1x64xf32>
    %107 = arith.mulf %102, %102 : vector<32x64xf32>
    %cst_52 = arith.constant dense<0.000000e+00> : vector<64xf32>
    %108 = vector.multi_reduction <add>, %107, %cst_52 [0] : vector<32x64xf32> to vector<64xf32>
    %109 = vector.shape_cast %108 : vector<64xf32> to vector<1x64xf32>
    %cst_53 = arith.constant 3.125000e-02 : f32
    %110 = vector.broadcast %cst_53 : f32 to vector<1x64xf32>
    %111 = arith.mulf %109, %110 : vector<1x64xf32>
    %112 = arith.mulf %106, %106 : vector<1x64xf32>
    %113 = arith.subf %111, %112 : vector<1x64xf32>
    %114 = vector.broadcast %106 : vector<1x64xf32> to vector<32x64xf32>
    %115 = arith.subf %102, %114 : vector<32x64xf32>
    %cst_54 = arith.constant 9.99999974E-6 : f32
    %116 = vector.broadcast %cst_54 : f32 to vector<1x64xf32>
    %117 = arith.addf %113, %116 : vector<1x64xf32>
    %118 = math.rsqrt %117 : vector<1x64xf32>
    %119 = vector.broadcast %118 : vector<1x64xf32> to vector<32x64xf32>
    %120 = arith.mulf %115, %119 : vector<32x64xf32>
    %c0_55 = arith.constant 0 : index
    %c0_56 = arith.constant 0 : index
    %121 = vector.load %arg11[%c0_55, %c0_56] : memref<64x64xf32, #tpu.memory_space<vmem>>, vector<64x64xf32>
    %c0_57 = arith.constant 0 : index
    %c0_58 = arith.constant 0 : index
    %122 = vector.load %arg12[%c0_57, %c0_58] : memref<1x64xf32, #tpu.memory_space<vmem>>, vector<1x64xf32>
    %cst_59 = arith.constant dense<0.000000e+00> : vector<32x64xf32>
    %123 = tpu.matmul %120, %121, %cst_59 {dimension_numbers = #tpu.dot_dimension_numbers<[1], [0], [0], [1], [0, 0, 1, 1], [], []>} : vector<32x64xf32>, vector<64x64xf32>, vector<32x64xf32> -> vector<32x64xf32>
    %cst_60 = arith.constant dense<0.000000e+00> : vector<32x64xf32>
    %124 = tpu.matmul %6, %123, %cst_60 {dimension_numbers = #tpu.dot_dimension_numbers<[1], [0], [0], [1], [0, 0, 1, 1], [], []>} : vector<32x32xf32>, vector<32x64xf32>, vector<32x64xf32> -> vector<32x64xf32>
    %125 = vector.broadcast %122 : vector<1x64xf32> to vector<32x64xf32>
    %126 = arith.addf %124, %125 : vector<32x64xf32>
    %127 = vector.broadcast %7 : vector<32x1xf32> to vector<32x64xf32>
    %128 = arith.mulf %126, %127 : vector<32x64xf32>
    %cst_61 = arith.constant 0.000000e+00 : f32
    %129 = vector.broadcast %cst_61 : f32 to vector<32x64xf32>
    %130 = arith.maximumf %128, %129 : vector<32x64xf32>
    %cst_62 = arith.constant dense<0.000000e+00> : vector<64xf32>
    %131 = vector.multi_reduction <add>, %130, %cst_62 [0] : vector<32x64xf32> to vector<64xf32>
    %132 = vector.shape_cast %131 : vector<64xf32> to vector<1x64xf32>
    %cst_63 = arith.constant 3.125000e-02 : f32
    %133 = vector.broadcast %cst_63 : f32 to vector<1x64xf32>
    %134 = arith.mulf %132, %133 : vector<1x64xf32>
    %135 = arith.mulf %130, %130 : vector<32x64xf32>
    %cst_64 = arith.constant dense<0.000000e+00> : vector<64xf32>
    %136 = vector.multi_reduction <add>, %135, %cst_64 [0] : vector<32x64xf32> to vector<64xf32>
    %137 = vector.shape_cast %136 : vector<64xf32> to vector<1x64xf32>
    %cst_65 = arith.constant 3.125000e-02 : f32
    %138 = vector.broadcast %cst_65 : f32 to vector<1x64xf32>
    %139 = arith.mulf %137, %138 : vector<1x64xf32>
    %140 = arith.mulf %134, %134 : vector<1x64xf32>
    %141 = arith.subf %139, %140 : vector<1x64xf32>
    %142 = vector.broadcast %134 : vector<1x64xf32> to vector<32x64xf32>
    %143 = arith.subf %130, %142 : vector<32x64xf32>
    %cst_66 = arith.constant 9.99999974E-6 : f32
    %144 = vector.broadcast %cst_66 : f32 to vector<1x64xf32>
    %145 = arith.addf %141, %144 : vector<1x64xf32>
    %146 = math.rsqrt %145 : vector<1x64xf32>
    %147 = vector.broadcast %146 : vector<1x64xf32> to vector<32x64xf32>
    %148 = arith.mulf %143, %147 : vector<32x64xf32>
    %c0_67 = arith.constant 0 : index
    %c0_68 = arith.constant 0 : index
    %149 = vector.load %arg13[%c0_67, %c0_68] : memref<64x64xf32, #tpu.memory_space<vmem>>, vector<64x64xf32>
    %c0_69 = arith.constant 0 : index
    %c0_70 = arith.constant 0 : index
    %150 = vector.load %arg14[%c0_69, %c0_70] : memref<1x64xf32, #tpu.memory_space<vmem>>, vector<1x64xf32>
    %cst_71 = arith.constant dense<0.000000e+00> : vector<32x64xf32>
    %151 = tpu.matmul %148, %149, %cst_71 {dimension_numbers = #tpu.dot_dimension_numbers<[1], [0], [0], [1], [0, 0, 1, 1], [], []>} : vector<32x64xf32>, vector<64x64xf32>, vector<32x64xf32> -> vector<32x64xf32>
    %cst_72 = arith.constant dense<0.000000e+00> : vector<32x64xf32>
    %152 = tpu.matmul %6, %151, %cst_72 {dimension_numbers = #tpu.dot_dimension_numbers<[1], [0], [0], [1], [0, 0, 1, 1], [], []>} : vector<32x32xf32>, vector<32x64xf32>, vector<32x64xf32> -> vector<32x64xf32>
    %153 = vector.broadcast %150 : vector<1x64xf32> to vector<32x64xf32>
    %154 = arith.addf %152, %153 : vector<32x64xf32>
    %155 = vector.broadcast %7 : vector<32x1xf32> to vector<32x64xf32>
    %156 = arith.mulf %154, %155 : vector<32x64xf32>
    %cst_73 = arith.constant 0.000000e+00 : f32
    %157 = vector.broadcast %cst_73 : f32 to vector<32x64xf32>
    %158 = arith.maximumf %156, %157 : vector<32x64xf32>
    %cst_74 = arith.constant dense<0.000000e+00> : vector<64xf32>
    %159 = vector.multi_reduction <add>, %158, %cst_74 [0] : vector<32x64xf32> to vector<64xf32>
    %160 = vector.shape_cast %159 : vector<64xf32> to vector<1x64xf32>
    %cst_75 = arith.constant 3.125000e-02 : f32
    %161 = vector.broadcast %cst_75 : f32 to vector<1x64xf32>
    %162 = arith.mulf %160, %161 : vector<1x64xf32>
    %163 = arith.mulf %158, %158 : vector<32x64xf32>
    %cst_76 = arith.constant dense<0.000000e+00> : vector<64xf32>
    %164 = vector.multi_reduction <add>, %163, %cst_76 [0] : vector<32x64xf32> to vector<64xf32>
    %165 = vector.shape_cast %164 : vector<64xf32> to vector<1x64xf32>
    %cst_77 = arith.constant 3.125000e-02 : f32
    %166 = vector.broadcast %cst_77 : f32 to vector<1x64xf32>
    %167 = arith.mulf %165, %166 : vector<1x64xf32>
    %168 = arith.mulf %162, %162 : vector<1x64xf32>
    %169 = arith.subf %167, %168 : vector<1x64xf32>
    %170 = vector.broadcast %162 : vector<1x64xf32> to vector<32x64xf32>
    %171 = arith.subf %158, %170 : vector<32x64xf32>
    %cst_78 = arith.constant 9.99999974E-6 : f32
    %172 = vector.broadcast %cst_78 : f32 to vector<1x64xf32>
    %173 = arith.addf %169, %172 : vector<1x64xf32>
    %174 = math.rsqrt %173 : vector<1x64xf32>
    %175 = vector.broadcast %174 : vector<1x64xf32> to vector<32x64xf32>
    %176 = arith.mulf %171, %175 : vector<32x64xf32>
    %cst_79 = arith.constant dense<0xFF800000> : vector<32xf32>
    %177 = vector.multi_reduction <maximumf>, %92, %cst_79 [1] : vector<32x8xf32> to vector<32xf32>
    %178 = vector.shape_cast %177 : vector<32xf32> to vector<32x1xf32>
    %179 = vector.broadcast %178 : vector<32x1xf32> to vector<32x8xf32>
    %180 = arith.subf %92, %179 : vector<32x8xf32>
    %181 = math.exp %180 : vector<32x8xf32>
    %cst_80 = arith.constant dense<0.000000e+00> : vector<32xf32>
    %182 = vector.multi_reduction <add>, %181, %cst_80 [1] : vector<32x8xf32> to vector<32xf32>
    %183 = vector.shape_cast %182 : vector<32xf32> to vector<32x1xf32>
    %184 = tpu.reciprocal %183 {approx = true} : vector<32x1xf32> -> vector<32x1xf32>
    %185 = vector.broadcast %184 : vector<32x1xf32> to vector<32x8xf32>
    %186 = arith.mulf %181, %185 : vector<32x8xf32>
    %187 = vector.broadcast %7 : vector<32x1xf32> to vector<32x8xf32>
    %188 = arith.mulf %186, %187 : vector<32x8xf32>
    %189 = vector.broadcast %7 : vector<32x1xf32> to vector<32x64xf32>
    %190 = arith.mulf %176, %189 : vector<32x64xf32>
    %cst_81 = arith.constant dense<0.000000e+00> : vector<8x64xf32>
    %191 = tpu.matmul %188, %190, %cst_81 {dimension_numbers = #tpu.dot_dimension_numbers<[0], [0], [1], [1], [0, 1, 1, 1], [], []>} : vector<32x8xf32>, vector<32x64xf32>, vector<8x64xf32> -> vector<8x64xf32>
    %c0_82 = arith.constant 0 : index
    %c0_83 = arith.constant 0 : index
    %192 = vector.load %arg15[%c0_82, %c0_83] : memref<8x64xf32, #tpu.memory_space<vmem>>, vector<8x64xf32>
    tpu.vector_store %arg15[%c0_82, %c0_83], %191 {strides = array<i32>} : memref<8x64xf32, #tpu.memory_space<vmem>>, vector<8x64xf32>,
    %cst_84 = arith.constant dense<0.000000e+00> : vector<8x32xf32>
    %193 = tpu.matmul %188, %0, %cst_84 {dimension_numbers = #tpu.dot_dimension_numbers<[0], [0], [1], [1], [0, 1, 1, 1], [], []>} : vector<32x8xf32>, vector<32x32xf32>, vector<8x32xf32> -> vector<8x32xf32>
    %cst_85 = arith.constant dense<0.000000e+00> : vector<8x8xf32>
    %194 = tpu.matmul %193, %188, %cst_85 {dimension_numbers = #tpu.dot_dimension_numbers<[1], [0], [0], [1], [0, 0, 1, 1], [], []>} : vector<8x32xf32>, vector<32x8xf32>, vector<8x8xf32> -> vector<8x8xf32>
    %c0_86 = arith.constant 0 : index
    %c0_87 = arith.constant 0 : index
    %195 = vector.load %arg16[%c0_86, %c0_87] : memref<8x8xf32, #tpu.memory_space<vmem>>, vector<8x8xf32>
    tpu.vector_store %arg16[%c0_86, %c0_87], %194 {strides = array<i32>} : memref<8x8xf32, #tpu.memory_space<vmem>>, vector<8x8xf32>,
    %cst_88 = arith.constant dense<0.000000e+00> : vector<32x32xf32>
    %196 = tpu.matmul %188, %188, %cst_88 {dimension_numbers = #tpu.dot_dimension_numbers<[1], [1], [0], [0], [0, 0, 1, 0], [], []>} : vector<32x8xf32>, vector<32x8xf32>, vector<32x32xf32> -> vector<32x32xf32>
    %197 = arith.subf %0, %196 : vector<32x32xf32>
    %198 = arith.mulf %197, %197 : vector<32x32xf32>
    %199 = vector.shape_cast %198 : vector<32x32xf32> to vector<1x32x32xf32>
    %cst_89 = arith.constant dense<0.000000e+00> : vector<1xf32>
    %200 = vector.multi_reduction <add>, %199, %cst_89 [1, 2] : vector<1x32x32xf32> to vector<1xf32>
    %201 = vector.shape_cast %200 : vector<1xf32> to vector<1x1x1xf32>
    %202 = vector.extract %201[0, 0, 0] : f32 from vector<1x1x1xf32>
    %203 = vector.broadcast %202 : f32 to vector<1x1xf32>
    %204 = math.sqrt %203 : vector<1x1xf32>
    %cst_90 = arith.constant 9.765625E-4 : f32
    %205 = vector.broadcast %cst_90 : f32 to vector<1x1xf32>
    %206 = arith.mulf %204, %205 : vector<1x1xf32>
    %c0_91 = arith.constant 0 : index
    %c0_92 = arith.constant 0 : index
    %207 = vector.load %arg17[%c0_91, %c0_92] : memref<1x1xf32, #tpu.memory_space<vmem>>, vector<1x1xf32>
    tpu.vector_store %arg17[%c0_91, %c0_92], %206 {strides = array<i32>} : memref<1x1xf32, #tpu.memory_space<vmem>>, vector<1x1xf32>,
    %cst_93 = arith.constant 0.000000e+00 : f32
    %208 = vector.broadcast %cst_93 : f32 to vector<32x8xf32>
    %209 = arith.subf %208, %188 : vector<32x8xf32>
    %cst_94 = arith.constant 1.000000e-15 : f32
    %210 = vector.broadcast %cst_94 : f32 to vector<32x8xf32>
    %211 = arith.addf %188, %210 : vector<32x8xf32>
    %212 = math.log %211 : vector<32x8xf32>
    %213 = arith.mulf %209, %212 : vector<32x8xf32>
    %214 = vector.shape_cast %213 : vector<32x8xf32> to vector<1x32x8xf32>
    %cst_95 = arith.constant dense<0.000000e+00> : vector<1xf32>
    %215 = vector.multi_reduction <add>, %214, %cst_95 [1, 2] : vector<1x32x8xf32> to vector<1xf32>
    %216 = vector.shape_cast %215 : vector<1xf32> to vector<1x1x1xf32>
    %217 = vector.extract %216[0, 0, 0] : f32 from vector<1x1x1xf32>
    %218 = vector.broadcast %217 : f32 to vector<1x1xf32>
    %cst_96 = arith.constant 3.125000e-02 : f32
    %219 = vector.broadcast %cst_96 : f32 to vector<1x1xf32>
    %220 = arith.mulf %218, %219 : vector<1x1xf32>
    %c0_97 = arith.constant 0 : index
    %c0_98 = arith.constant 0 : index
    %221 = vector.load %arg18[%c0_97, %c0_98] : memref<1x1xf32, #tpu.memory_space<vmem>>, vector<1x1xf32>
    tpu.vector_store %arg18[%c0_97, %c0_98], %220 {strides = array<i32>} : memref<1x1xf32, #tpu.memory_space<vmem>>, vector<1x1xf32>,
    return
  }
}

module attributes {stable_mosaic.version = 11 : i64} {
  func.func @_final_kernel(%arg0: memref<2x64xf32, #tpu.memory_space<vmem>>, %arg1: memref<2x2xf32, #tpu.memory_space<vmem>>, %arg2: memref<64x64xf32, #tpu.memory_space<vmem>>, %arg3: memref<1x64xf32, #tpu.memory_space<vmem>>, %arg4: memref<64x64xf32, #tpu.memory_space<vmem>>, %arg5: memref<1x64xf32, #tpu.memory_space<vmem>>, %arg6: memref<64x64xf32, #tpu.memory_space<vmem>>, %arg7: memref<1x64xf32, #tpu.memory_space<vmem>>, %arg8: memref<2x2xf32, #tpu.memory_space<vmem>>, %arg9: memref<64x64xf32, #tpu.memory_space<vmem>>, %arg10: memref<1x64xf32, #tpu.memory_space<vmem>>, %arg11: memref<64x8xf32, #tpu.memory_space<vmem>>, %arg12: memref<1x8xf32, #tpu.memory_space<vmem>>, %arg13: memref<2x8xf32, #tpu.memory_space<vmem>>) attributes {dimension_semantics = [], scalar_prefetch = 0 : i64, scratch_operands = 0 : i64, tpu.core_type = #tpu.core_type<tc>} {
    %0 = tpu.iota {dimensions = array<i32: 0>} : vector<2x2xi32>
    %1 = tpu.iota {dimensions = array<i32: 1>} : vector<2x2xi32>
    %2 = arith.cmpi eq, %0, %1 : vector<2x2xi32>
    %c0 = arith.constant 0 : index
    %c0_0 = arith.constant 0 : index
    %3 = vector.load %arg1[%c0, %c0_0] : memref<2x2xf32, #tpu.memory_space<vmem>>, vector<2x2xf32>
    %cst = arith.constant 1.000000e+00 : f32
    %4 = vector.broadcast %cst : f32 to vector<2x2xf32>
    %5 = arith.select %2, %4, %3 : vector<2x2xi1>, vector<2x2xf32>
    %c0_1 = arith.constant 0 : index
    %c0_2 = arith.constant 0 : index
    %6 = vector.load %arg0[%c0_1, %c0_2] : memref<2x64xf32, #tpu.memory_space<vmem>>, vector<2x64xf32>
    %c0_3 = arith.constant 0 : index
    %c0_4 = arith.constant 0 : index
    %7 = vector.load %arg2[%c0_3, %c0_4] : memref<64x64xf32, #tpu.memory_space<vmem>>, vector<64x64xf32>
    %c0_5 = arith.constant 0 : index
    %c0_6 = arith.constant 0 : index
    %8 = vector.load %arg3[%c0_5, %c0_6] : memref<1x64xf32, #tpu.memory_space<vmem>>, vector<1x64xf32>
    %cst_7 = arith.constant dense<0.000000e+00> : vector<2x64xf32>
    %9 = tpu.matmul %6, %7, %cst_7 {dimension_numbers = #tpu.dot_dimension_numbers<[1], [0], [0], [1], [0, 0, 1, 1], [], []>} : vector<2x64xf32>, vector<64x64xf32>, vector<2x64xf32> -> vector<2x64xf32>
    %cst_8 = arith.constant dense<0.000000e+00> : vector<2x64xf32>
    %10 = tpu.matmul %5, %9, %cst_8 {dimension_numbers = #tpu.dot_dimension_numbers<[1], [0], [0], [1], [0, 0, 1, 1], [], []>} : vector<2x2xf32>, vector<2x64xf32>, vector<2x64xf32> -> vector<2x64xf32>
    %11 = vector.broadcast %8 : vector<1x64xf32> to vector<2x64xf32>
    %12 = arith.addf %10, %11 : vector<2x64xf32>
    %cst_9 = arith.constant 0.000000e+00 : f32
    %13 = vector.broadcast %cst_9 : f32 to vector<2x64xf32>
    %14 = arith.maximumf %12, %13 : vector<2x64xf32>
    %cst_10 = arith.constant dense<0.000000e+00> : vector<64xf32>
    %15 = vector.multi_reduction <add>, %14, %cst_10 [0] : vector<2x64xf32> to vector<64xf32>
    %16 = vector.shape_cast %15 : vector<64xf32> to vector<1x64xf32>
    %cst_11 = arith.constant 5.000000e-01 : f32
    %17 = vector.broadcast %cst_11 : f32 to vector<1x64xf32>
    %18 = arith.mulf %16, %17 : vector<1x64xf32>
    %19 = arith.mulf %14, %14 : vector<2x64xf32>
    %cst_12 = arith.constant dense<0.000000e+00> : vector<64xf32>
    %20 = vector.multi_reduction <add>, %19, %cst_12 [0] : vector<2x64xf32> to vector<64xf32>
    %21 = vector.shape_cast %20 : vector<64xf32> to vector<1x64xf32>
    %cst_13 = arith.constant 5.000000e-01 : f32
    %22 = vector.broadcast %cst_13 : f32 to vector<1x64xf32>
    %23 = arith.mulf %21, %22 : vector<1x64xf32>
    %24 = arith.mulf %18, %18 : vector<1x64xf32>
    %25 = arith.subf %23, %24 : vector<1x64xf32>
    %26 = vector.broadcast %18 : vector<1x64xf32> to vector<2x64xf32>
    %27 = arith.subf %14, %26 : vector<2x64xf32>
    %cst_14 = arith.constant 9.99999974E-6 : f32
    %28 = vector.broadcast %cst_14 : f32 to vector<1x64xf32>
    %29 = arith.addf %25, %28 : vector<1x64xf32>
    %30 = math.rsqrt %29 : vector<1x64xf32>
    %31 = vector.broadcast %30 : vector<1x64xf32> to vector<2x64xf32>
    %32 = arith.mulf %27, %31 : vector<2x64xf32>
    %c0_15 = arith.constant 0 : index
    %c0_16 = arith.constant 0 : index
    %33 = vector.load %arg4[%c0_15, %c0_16] : memref<64x64xf32, #tpu.memory_space<vmem>>, vector<64x64xf32>
    %c0_17 = arith.constant 0 : index
    %c0_18 = arith.constant 0 : index
    %34 = vector.load %arg5[%c0_17, %c0_18] : memref<1x64xf32, #tpu.memory_space<vmem>>, vector<1x64xf32>
    %cst_19 = arith.constant dense<0.000000e+00> : vector<2x64xf32>
    %35 = tpu.matmul %32, %33, %cst_19 {dimension_numbers = #tpu.dot_dimension_numbers<[1], [0], [0], [1], [0, 0, 1, 1], [], []>} : vector<2x64xf32>, vector<64x64xf32>, vector<2x64xf32> -> vector<2x64xf32>
    %cst_20 = arith.constant dense<0.000000e+00> : vector<2x64xf32>
    %36 = tpu.matmul %5, %35, %cst_20 {dimension_numbers = #tpu.dot_dimension_numbers<[1], [0], [0], [1], [0, 0, 1, 1], [], []>} : vector<2x2xf32>, vector<2x64xf32>, vector<2x64xf32> -> vector<2x64xf32>
    %37 = vector.broadcast %34 : vector<1x64xf32> to vector<2x64xf32>
    %38 = arith.addf %36, %37 : vector<2x64xf32>
    %cst_21 = arith.constant 0.000000e+00 : f32
    %39 = vector.broadcast %cst_21 : f32 to vector<2x64xf32>
    %40 = arith.maximumf %38, %39 : vector<2x64xf32>
    %cst_22 = arith.constant dense<0.000000e+00> : vector<64xf32>
    %41 = vector.multi_reduction <add>, %40, %cst_22 [0] : vector<2x64xf32> to vector<64xf32>
    %42 = vector.shape_cast %41 : vector<64xf32> to vector<1x64xf32>
    %cst_23 = arith.constant 5.000000e-01 : f32
    %43 = vector.broadcast %cst_23 : f32 to vector<1x64xf32>
    %44 = arith.mulf %42, %43 : vector<1x64xf32>
    %45 = arith.mulf %40, %40 : vector<2x64xf32>
    %cst_24 = arith.constant dense<0.000000e+00> : vector<64xf32>
    %46 = vector.multi_reduction <add>, %45, %cst_24 [0] : vector<2x64xf32> to vector<64xf32>
    %47 = vector.shape_cast %46 : vector<64xf32> to vector<1x64xf32>
    %cst_25 = arith.constant 5.000000e-01 : f32
    %48 = vector.broadcast %cst_25 : f32 to vector<1x64xf32>
    %49 = arith.mulf %47, %48 : vector<1x64xf32>
    %50 = arith.mulf %44, %44 : vector<1x64xf32>
    %51 = arith.subf %49, %50 : vector<1x64xf32>
    %52 = vector.broadcast %44 : vector<1x64xf32> to vector<2x64xf32>
    %53 = arith.subf %40, %52 : vector<2x64xf32>
    %cst_26 = arith.constant 9.99999974E-6 : f32
    %54 = vector.broadcast %cst_26 : f32 to vector<1x64xf32>
    %55 = arith.addf %51, %54 : vector<1x64xf32>
    %56 = math.rsqrt %55 : vector<1x64xf32>
    %57 = vector.broadcast %56 : vector<1x64xf32> to vector<2x64xf32>
    %58 = arith.mulf %53, %57 : vector<2x64xf32>
    %c0_27 = arith.constant 0 : index
    %c0_28 = arith.constant 0 : index
    %59 = vector.load %arg6[%c0_27, %c0_28] : memref<64x64xf32, #tpu.memory_space<vmem>>, vector<64x64xf32>
    %c0_29 = arith.constant 0 : index
    %c0_30 = arith.constant 0 : index
    %60 = vector.load %arg7[%c0_29, %c0_30] : memref<1x64xf32, #tpu.memory_space<vmem>>, vector<1x64xf32>
    %cst_31 = arith.constant dense<0.000000e+00> : vector<2x64xf32>
    %61 = tpu.matmul %58, %59, %cst_31 {dimension_numbers = #tpu.dot_dimension_numbers<[1], [0], [0], [1], [0, 0, 1, 1], [], []>} : vector<2x64xf32>, vector<64x64xf32>, vector<2x64xf32> -> vector<2x64xf32>
    %cst_32 = arith.constant dense<0.000000e+00> : vector<2x64xf32>
    %62 = tpu.matmul %5, %61, %cst_32 {dimension_numbers = #tpu.dot_dimension_numbers<[1], [0], [0], [1], [0, 0, 1, 1], [], []>} : vector<2x2xf32>, vector<2x64xf32>, vector<2x64xf32> -> vector<2x64xf32>
    %63 = vector.broadcast %60 : vector<1x64xf32> to vector<2x64xf32>
    %64 = arith.addf %62, %63 : vector<2x64xf32>
    %cst_33 = arith.constant 0.000000e+00 : f32
    %65 = vector.broadcast %cst_33 : f32 to vector<2x64xf32>
    %66 = arith.maximumf %64, %65 : vector<2x64xf32>
    %cst_34 = arith.constant dense<0.000000e+00> : vector<64xf32>
    %67 = vector.multi_reduction <add>, %66, %cst_34 [0] : vector<2x64xf32> to vector<64xf32>
    %68 = vector.shape_cast %67 : vector<64xf32> to vector<1x64xf32>
    %cst_35 = arith.constant 5.000000e-01 : f32
    %69 = vector.broadcast %cst_35 : f32 to vector<1x64xf32>
    %70 = arith.mulf %68, %69 : vector<1x64xf32>
    %71 = arith.mulf %66, %66 : vector<2x64xf32>
    %cst_36 = arith.constant dense<0.000000e+00> : vector<64xf32>
    %72 = vector.multi_reduction <add>, %71, %cst_36 [0] : vector<2x64xf32> to vector<64xf32>
    %73 = vector.shape_cast %72 : vector<64xf32> to vector<1x64xf32>
    %cst_37 = arith.constant 5.000000e-01 : f32
    %74 = vector.broadcast %cst_37 : f32 to vector<1x64xf32>
    %75 = arith.mulf %73, %74 : vector<1x64xf32>
    %76 = arith.mulf %70, %70 : vector<1x64xf32>
    %77 = arith.subf %75, %76 : vector<1x64xf32>
    %78 = vector.broadcast %70 : vector<1x64xf32> to vector<2x64xf32>
    %79 = arith.subf %66, %78 : vector<2x64xf32>
    %cst_38 = arith.constant 9.99999974E-6 : f32
    %80 = vector.broadcast %cst_38 : f32 to vector<1x64xf32>
    %81 = arith.addf %77, %80 : vector<1x64xf32>
    %82 = math.rsqrt %81 : vector<1x64xf32>
    %83 = vector.broadcast %82 : vector<1x64xf32> to vector<2x64xf32>
    %84 = arith.mulf %79, %83 : vector<2x64xf32>
    %c0_39 = arith.constant 0 : index
    %c0_40 = arith.constant 0 : index
    %85 = vector.load %arg8[%c0_39, %c0_40] : memref<2x2xf32, #tpu.memory_space<vmem>>, vector<2x2xf32>
    %cst_41 = arith.constant dense<0.000000e+00> : vector<2x64xf32>
    %86 = tpu.matmul %85, %84, %cst_41 {dimension_numbers = #tpu.dot_dimension_numbers<[1], [0], [0], [1], [0, 0, 1, 1], [], []>} : vector<2x2xf32>, vector<2x64xf32>, vector<2x64xf32> -> vector<2x64xf32>
    %c0_42 = arith.constant 0 : index
    %c0_43 = arith.constant 0 : index
    %87 = vector.load %arg9[%c0_42, %c0_43] : memref<64x64xf32, #tpu.memory_space<vmem>>, vector<64x64xf32>
    %cst_44 = arith.constant dense<0.000000e+00> : vector<2x64xf32>
    %88 = tpu.matmul %86, %87, %cst_44 {dimension_numbers = #tpu.dot_dimension_numbers<[1], [0], [0], [1], [0, 0, 1, 1], [], []>} : vector<2x64xf32>, vector<64x64xf32>, vector<2x64xf32> -> vector<2x64xf32>
    %c0_45 = arith.constant 0 : index
    %c0_46 = arith.constant 0 : index
    %89 = vector.load %arg10[%c0_45, %c0_46] : memref<1x64xf32, #tpu.memory_space<vmem>>, vector<1x64xf32>
    %90 = vector.broadcast %89 : vector<1x64xf32> to vector<2x64xf32>
    %91 = arith.addf %88, %90 : vector<2x64xf32>
    %cst_47 = arith.constant 0.000000e+00 : f32
    %92 = vector.broadcast %cst_47 : f32 to vector<2x64xf32>
    %93 = arith.maximumf %91, %92 : vector<2x64xf32>
    %c0_48 = arith.constant 0 : index
    %c0_49 = arith.constant 0 : index
    %94 = vector.load %arg11[%c0_48, %c0_49] : memref<64x8xf32, #tpu.memory_space<vmem>>, vector<64x8xf32>
    %cst_50 = arith.constant dense<0.000000e+00> : vector<2x8xf32>
    %95 = tpu.matmul %93, %94, %cst_50 {dimension_numbers = #tpu.dot_dimension_numbers<[1], [0], [0], [1], [0, 0, 1, 1], [], []>} : vector<2x64xf32>, vector<64x8xf32>, vector<2x8xf32> -> vector<2x8xf32>
    %c0_51 = arith.constant 0 : index
    %c0_52 = arith.constant 0 : index
    %96 = vector.load %arg12[%c0_51, %c0_52] : memref<1x8xf32, #tpu.memory_space<vmem>>, vector<1x8xf32>
    %97 = vector.broadcast %96 : vector<1x8xf32> to vector<2x8xf32>
    %98 = arith.addf %95, %97 : vector<2x8xf32>
    %cst_53 = arith.constant dense<0xFF800000> : vector<2xf32>
    %99 = vector.multi_reduction <maximumf>, %98, %cst_53 [1] : vector<2x8xf32> to vector<2xf32>
    %100 = vector.shape_cast %99 : vector<2xf32> to vector<2x1xf32>
    %101 = vector.broadcast %100 : vector<2x1xf32> to vector<2x8xf32>
    %102 = arith.subf %98, %101 : vector<2x8xf32>
    %103 = math.exp %102 : vector<2x8xf32>
    %cst_54 = arith.constant dense<0.000000e+00> : vector<2xf32>
    %104 = vector.multi_reduction <add>, %103, %cst_54 [1] : vector<2x8xf32> to vector<2xf32>
    %105 = vector.shape_cast %104 : vector<2xf32> to vector<2x1xf32>
    %106 = math.log %105 : vector<2x1xf32>
    %107 = vector.broadcast %106 : vector<2x1xf32> to vector<2x8xf32>
    %108 = arith.subf %102, %107 : vector<2x8xf32>
    %c0_55 = arith.constant 0 : index
    %c0_56 = arith.constant 0 : index
    %109 = vector.load %arg13[%c0_55, %c0_56] : memref<2x8xf32, #tpu.memory_space<vmem>>, vector<2x8xf32>
    tpu.vector_store %arg13[%c0_55, %c0_56], %108 {strides = array<i32>} : memref<2x8xf32, #tpu.memory_space<vmem>>, vector<2x8xf32>,
    return
  }
}

module attributes {stable_mosaic.version = 11 : i64} {
  func.func @_diffpool_level_kernel(%arg0: memref<8x64xf32, #tpu.memory_space<vmem>>, %arg1: memref<8x8xf32, #tpu.memory_space<vmem>>, %arg2: memref<8x1xf32, #tpu.memory_space<vmem>>, %arg3: memref<64x64xf32, #tpu.memory_space<vmem>>, %arg4: memref<1x64xf32, #tpu.memory_space<vmem>>, %arg5: memref<64x64xf32, #tpu.memory_space<vmem>>, %arg6: memref<1x64xf32, #tpu.memory_space<vmem>>, %arg7: memref<64x2xf32, #tpu.memory_space<vmem>>, %arg8: memref<1x2xf32, #tpu.memory_space<vmem>>, %arg9: memref<64x64xf32, #tpu.memory_space<vmem>>, %arg10: memref<1x64xf32, #tpu.memory_space<vmem>>, %arg11: memref<64x64xf32, #tpu.memory_space<vmem>>, %arg12: memref<1x64xf32, #tpu.memory_space<vmem>>, %arg13: memref<64x64xf32, #tpu.memory_space<vmem>>, %arg14: memref<1x64xf32, #tpu.memory_space<vmem>>, %arg15: memref<2x64xf32, #tpu.memory_space<vmem>>, %arg16: memref<2x2xf32, #tpu.memory_space<vmem>>, %arg17: memref<1x1xf32, #tpu.memory_space<vmem>>, %arg18: memref<1x1xf32, #tpu.memory_space<vmem>>) attributes {dimension_semantics = [], scalar_prefetch = 0 : i64, scratch_operands = 0 : i64, tpu.core_type = #tpu.core_type<tc>} {
    %c0 = arith.constant 0 : index
    %c0_0 = arith.constant 0 : index
    %0 = vector.load %arg1[%c0, %c0_0] : memref<8x8xf32, #tpu.memory_space<vmem>>, vector<8x8xf32>
    %1 = tpu.iota {dimensions = array<i32: 0>} : vector<8x8xi32>
    %2 = tpu.iota {dimensions = array<i32: 1>} : vector<8x8xi32>
    %3 = arith.cmpi eq, %1, %2 : vector<8x8xi32>
    %c0_1 = arith.constant 0 : index
    %c0_2 = arith.constant 0 : index
    %4 = vector.load %arg1[%c0_1, %c0_2] : memref<8x8xf32, #tpu.memory_space<vmem>>, vector<8x8xf32>
    %cst = arith.constant 1.000000e+00 : f32
    %5 = vector.broadcast %cst : f32 to vector<8x8xf32>
    %6 = arith.select %3, %5, %4 : vector<8x8xi1>, vector<8x8xf32>
    %c0_3 = arith.constant 0 : index
    %c0_4 = arith.constant 0 : index
    %7 = vector.load %arg2[%c0_3, %c0_4] : memref<8x1xf32, #tpu.memory_space<vmem>>, vector<8x1xf32>
    %c0_5 = arith.constant 0 : index
    %c0_6 = arith.constant 0 : index
    %8 = vector.load %arg0[%c0_5, %c0_6] : memref<8x64xf32, #tpu.memory_space<vmem>>, vector<8x64xf32>
    %c0_7 = arith.constant 0 : index
    %c0_8 = arith.constant 0 : index
    %9 = vector.load %arg3[%c0_7, %c0_8] : memref<64x64xf32, #tpu.memory_space<vmem>>, vector<64x64xf32>
    %c0_9 = arith.constant 0 : index
    %c0_10 = arith.constant 0 : index
    %10 = vector.load %arg4[%c0_9, %c0_10] : memref<1x64xf32, #tpu.memory_space<vmem>>, vector<1x64xf32>
    %cst_11 = arith.constant dense<0.000000e+00> : vector<8x64xf32>
    %11 = tpu.matmul %8, %9, %cst_11 {dimension_numbers = #tpu.dot_dimension_numbers<[1], [0], [0], [1], [0, 0, 1, 1], [], []>} : vector<8x64xf32>, vector<64x64xf32>, vector<8x64xf32> -> vector<8x64xf32>
    %cst_12 = arith.constant dense<0.000000e+00> : vector<8x64xf32>
    %12 = tpu.matmul %6, %11, %cst_12 {dimension_numbers = #tpu.dot_dimension_numbers<[1], [0], [0], [1], [0, 0, 1, 1], [], []>} : vector<8x8xf32>, vector<8x64xf32>, vector<8x64xf32> -> vector<8x64xf32>
    %13 = vector.broadcast %10 : vector<1x64xf32> to vector<8x64xf32>
    %14 = arith.addf %12, %13 : vector<8x64xf32>
    %15 = vector.broadcast %7 : vector<8x1xf32> to vector<8x64xf32>
    %16 = arith.mulf %14, %15 : vector<8x64xf32>
    %cst_13 = arith.constant 0.000000e+00 : f32
    %17 = vector.broadcast %cst_13 : f32 to vector<8x64xf32>
    %18 = arith.maximumf %16, %17 : vector<8x64xf32>
    %cst_14 = arith.constant dense<0.000000e+00> : vector<64xf32>
    %19 = vector.multi_reduction <add>, %18, %cst_14 [0] : vector<8x64xf32> to vector<64xf32>
    %20 = vector.shape_cast %19 : vector<64xf32> to vector<1x64xf32>
    %cst_15 = arith.constant 1.250000e-01 : f32
    %21 = vector.broadcast %cst_15 : f32 to vector<1x64xf32>
    %22 = arith.mulf %20, %21 : vector<1x64xf32>
    %23 = arith.mulf %18, %18 : vector<8x64xf32>
    %cst_16 = arith.constant dense<0.000000e+00> : vector<64xf32>
    %24 = vector.multi_reduction <add>, %23, %cst_16 [0] : vector<8x64xf32> to vector<64xf32>
    %25 = vector.shape_cast %24 : vector<64xf32> to vector<1x64xf32>
    %cst_17 = arith.constant 1.250000e-01 : f32
    %26 = vector.broadcast %cst_17 : f32 to vector<1x64xf32>
    %27 = arith.mulf %25, %26 : vector<1x64xf32>
    %28 = arith.mulf %22, %22 : vector<1x64xf32>
    %29 = arith.subf %27, %28 : vector<1x64xf32>
    %30 = vector.broadcast %22 : vector<1x64xf32> to vector<8x64xf32>
    %31 = arith.subf %18, %30 : vector<8x64xf32>
    %cst_18 = arith.constant 9.99999974E-6 : f32
    %32 = vector.broadcast %cst_18 : f32 to vector<1x64xf32>
    %33 = arith.addf %29, %32 : vector<1x64xf32>
    %34 = math.rsqrt %33 : vector<1x64xf32>
    %35 = vector.broadcast %34 : vector<1x64xf32> to vector<8x64xf32>
    %36 = arith.mulf %31, %35 : vector<8x64xf32>
    %c0_19 = arith.constant 0 : index
    %c0_20 = arith.constant 0 : index
    %37 = vector.load %arg5[%c0_19, %c0_20] : memref<64x64xf32, #tpu.memory_space<vmem>>, vector<64x64xf32>
    %c0_21 = arith.constant 0 : index
    %c0_22 = arith.constant 0 : index
    %38 = vector.load %arg6[%c0_21, %c0_22] : memref<1x64xf32, #tpu.memory_space<vmem>>, vector<1x64xf32>
    %cst_23 = arith.constant dense<0.000000e+00> : vector<8x64xf32>
    %39 = tpu.matmul %36, %37, %cst_23 {dimension_numbers = #tpu.dot_dimension_numbers<[1], [0], [0], [1], [0, 0, 1, 1], [], []>} : vector<8x64xf32>, vector<64x64xf32>, vector<8x64xf32> -> vector<8x64xf32>
    %cst_24 = arith.constant dense<0.000000e+00> : vector<8x64xf32>
    %40 = tpu.matmul %6, %39, %cst_24 {dimension_numbers = #tpu.dot_dimension_numbers<[1], [0], [0], [1], [0, 0, 1, 1], [], []>} : vector<8x8xf32>, vector<8x64xf32>, vector<8x64xf32> -> vector<8x64xf32>
    %41 = vector.broadcast %38 : vector<1x64xf32> to vector<8x64xf32>
    %42 = arith.addf %40, %41 : vector<8x64xf32>
    %43 = vector.broadcast %7 : vector<8x1xf32> to vector<8x64xf32>
    %44 = arith.mulf %42, %43 : vector<8x64xf32>
    %cst_25 = arith.constant 0.000000e+00 : f32
    %45 = vector.broadcast %cst_25 : f32 to vector<8x64xf32>
    %46 = arith.maximumf %44, %45 : vector<8x64xf32>
    %cst_26 = arith.constant dense<0.000000e+00> : vector<64xf32>
    %47 = vector.multi_reduction <add>, %46, %cst_26 [0] : vector<8x64xf32> to vector<64xf32>
    %48 = vector.shape_cast %47 : vector<64xf32> to vector<1x64xf32>
    %cst_27 = arith.constant 1.250000e-01 : f32
    %49 = vector.broadcast %cst_27 : f32 to vector<1x64xf32>
    %50 = arith.mulf %48, %49 : vector<1x64xf32>
    %51 = arith.mulf %46, %46 : vector<8x64xf32>
    %cst_28 = arith.constant dense<0.000000e+00> : vector<64xf32>
    %52 = vector.multi_reduction <add>, %51, %cst_28 [0] : vector<8x64xf32> to vector<64xf32>
    %53 = vector.shape_cast %52 : vector<64xf32> to vector<1x64xf32>
    %cst_29 = arith.constant 1.250000e-01 : f32
    %54 = vector.broadcast %cst_29 : f32 to vector<1x64xf32>
    %55 = arith.mulf %53, %54 : vector<1x64xf32>
    %56 = arith.mulf %50, %50 : vector<1x64xf32>
    %57 = arith.subf %55, %56 : vector<1x64xf32>
    %58 = vector.broadcast %50 : vector<1x64xf32> to vector<8x64xf32>
    %59 = arith.subf %46, %58 : vector<8x64xf32>
    %cst_30 = arith.constant 9.99999974E-6 : f32
    %60 = vector.broadcast %cst_30 : f32 to vector<1x64xf32>
    %61 = arith.addf %57, %60 : vector<1x64xf32>
    %62 = math.rsqrt %61 : vector<1x64xf32>
    %63 = vector.broadcast %62 : vector<1x64xf32> to vector<8x64xf32>
    %64 = arith.mulf %59, %63 : vector<8x64xf32>
    %c0_31 = arith.constant 0 : index
    %c0_32 = arith.constant 0 : index
    %65 = vector.load %arg7[%c0_31, %c0_32] : memref<64x2xf32, #tpu.memory_space<vmem>>, vector<64x2xf32>
    %c0_33 = arith.constant 0 : index
    %c0_34 = arith.constant 0 : index
    %66 = vector.load %arg8[%c0_33, %c0_34] : memref<1x2xf32, #tpu.memory_space<vmem>>, vector<1x2xf32>
    %cst_35 = arith.constant dense<0.000000e+00> : vector<8x2xf32>
    %67 = tpu.matmul %64, %65, %cst_35 {dimension_numbers = #tpu.dot_dimension_numbers<[1], [0], [0], [1], [0, 0, 1, 1], [], []>} : vector<8x64xf32>, vector<64x2xf32>, vector<8x2xf32> -> vector<8x2xf32>
    %cst_36 = arith.constant dense<0.000000e+00> : vector<8x2xf32>
    %68 = tpu.matmul %6, %67, %cst_36 {dimension_numbers = #tpu.dot_dimension_numbers<[1], [0], [0], [1], [0, 0, 1, 1], [], []>} : vector<8x8xf32>, vector<8x2xf32>, vector<8x2xf32> -> vector<8x2xf32>
    %69 = vector.broadcast %66 : vector<1x2xf32> to vector<8x2xf32>
    %70 = arith.addf %68, %69 : vector<8x2xf32>
    %71 = vector.broadcast %7 : vector<8x1xf32> to vector<8x2xf32>
    %72 = arith.mulf %70, %71 : vector<8x2xf32>
    %cst_37 = arith.constant 0.000000e+00 : f32
    %73 = vector.broadcast %cst_37 : f32 to vector<8x2xf32>
    %74 = arith.maximumf %72, %73 : vector<8x2xf32>
    %cst_38 = arith.constant dense<0.000000e+00> : vector<2xf32>
    %75 = vector.multi_reduction <add>, %74, %cst_38 [0] : vector<8x2xf32> to vector<2xf32>
    %76 = vector.shape_cast %75 : vector<2xf32> to vector<1x2xf32>
    %cst_39 = arith.constant 1.250000e-01 : f32
    %77 = vector.broadcast %cst_39 : f32 to vector<1x2xf32>
    %78 = arith.mulf %76, %77 : vector<1x2xf32>
    %79 = arith.mulf %74, %74 : vector<8x2xf32>
    %cst_40 = arith.constant dense<0.000000e+00> : vector<2xf32>
    %80 = vector.multi_reduction <add>, %79, %cst_40 [0] : vector<8x2xf32> to vector<2xf32>
    %81 = vector.shape_cast %80 : vector<2xf32> to vector<1x2xf32>
    %cst_41 = arith.constant 1.250000e-01 : f32
    %82 = vector.broadcast %cst_41 : f32 to vector<1x2xf32>
    %83 = arith.mulf %81, %82 : vector<1x2xf32>
    %84 = arith.mulf %78, %78 : vector<1x2xf32>
    %85 = arith.subf %83, %84 : vector<1x2xf32>
    %86 = vector.broadcast %78 : vector<1x2xf32> to vector<8x2xf32>
    %87 = arith.subf %74, %86 : vector<8x2xf32>
    %cst_42 = arith.constant 9.99999974E-6 : f32
    %88 = vector.broadcast %cst_42 : f32 to vector<1x2xf32>
    %89 = arith.addf %85, %88 : vector<1x2xf32>
    %90 = math.rsqrt %89 : vector<1x2xf32>
    %91 = vector.broadcast %90 : vector<1x2xf32> to vector<8x2xf32>
    %92 = arith.mulf %87, %91 : vector<8x2xf32>
    %c0_43 = arith.constant 0 : index
    %c0_44 = arith.constant 0 : index
    %93 = vector.load %arg9[%c0_43, %c0_44] : memref<64x64xf32, #tpu.memory_space<vmem>>, vector<64x64xf32>
    %c0_45 = arith.constant 0 : index
    %c0_46 = arith.constant 0 : index
    %94 = vector.load %arg10[%c0_45, %c0_46] : memref<1x64xf32, #tpu.memory_space<vmem>>, vector<1x64xf32>
    %cst_47 = arith.constant dense<0.000000e+00> : vector<8x64xf32>
    %95 = tpu.matmul %8, %93, %cst_47 {dimension_numbers = #tpu.dot_dimension_numbers<[1], [0], [0], [1], [0, 0, 1, 1], [], []>} : vector<8x64xf32>, vector<64x64xf32>, vector<8x64xf32> -> vector<8x64xf32>
    %cst_48 = arith.constant dense<0.000000e+00> : vector<8x64xf32>
    %96 = tpu.matmul %6, %95, %cst_48 {dimension_numbers = #tpu.dot_dimension_numbers<[1], [0], [0], [1], [0, 0, 1, 1], [], []>} : vector<8x8xf32>, vector<8x64xf32>, vector<8x64xf32> -> vector<8x64xf32>
    %97 = vector.broadcast %94 : vector<1x64xf32> to vector<8x64xf32>
    %98 = arith.addf %96, %97 : vector<8x64xf32>
    %99 = vector.broadcast %7 : vector<8x1xf32> to vector<8x64xf32>
    %100 = arith.mulf %98, %99 : vector<8x64xf32>
    %cst_49 = arith.constant 0.000000e+00 : f32
    %101 = vector.broadcast %cst_49 : f32 to vector<8x64xf32>
    %102 = arith.maximumf %100, %101 : vector<8x64xf32>
    %cst_50 = arith.constant dense<0.000000e+00> : vector<64xf32>
    %103 = vector.multi_reduction <add>, %102, %cst_50 [0] : vector<8x64xf32> to vector<64xf32>
    %104 = vector.shape_cast %103 : vector<64xf32> to vector<1x64xf32>
    %cst_51 = arith.constant 1.250000e-01 : f32
    %105 = vector.broadcast %cst_51 : f32 to vector<1x64xf32>
    %106 = arith.mulf %104, %105 : vector<1x64xf32>
    %107 = arith.mulf %102, %102 : vector<8x64xf32>
    %cst_52 = arith.constant dense<0.000000e+00> : vector<64xf32>
    %108 = vector.multi_reduction <add>, %107, %cst_52 [0] : vector<8x64xf32> to vector<64xf32>
    %109 = vector.shape_cast %108 : vector<64xf32> to vector<1x64xf32>
    %cst_53 = arith.constant 1.250000e-01 : f32
    %110 = vector.broadcast %cst_53 : f32 to vector<1x64xf32>
    %111 = arith.mulf %109, %110 : vector<1x64xf32>
    %112 = arith.mulf %106, %106 : vector<1x64xf32>
    %113 = arith.subf %111, %112 : vector<1x64xf32>
    %114 = vector.broadcast %106 : vector<1x64xf32> to vector<8x64xf32>
    %115 = arith.subf %102, %114 : vector<8x64xf32>
    %cst_54 = arith.constant 9.99999974E-6 : f32
    %116 = vector.broadcast %cst_54 : f32 to vector<1x64xf32>
    %117 = arith.addf %113, %116 : vector<1x64xf32>
    %118 = math.rsqrt %117 : vector<1x64xf32>
    %119 = vector.broadcast %118 : vector<1x64xf32> to vector<8x64xf32>
    %120 = arith.mulf %115, %119 : vector<8x64xf32>
    %c0_55 = arith.constant 0 : index
    %c0_56 = arith.constant 0 : index
    %121 = vector.load %arg11[%c0_55, %c0_56] : memref<64x64xf32, #tpu.memory_space<vmem>>, vector<64x64xf32>
    %c0_57 = arith.constant 0 : index
    %c0_58 = arith.constant 0 : index
    %122 = vector.load %arg12[%c0_57, %c0_58] : memref<1x64xf32, #tpu.memory_space<vmem>>, vector<1x64xf32>
    %cst_59 = arith.constant dense<0.000000e+00> : vector<8x64xf32>
    %123 = tpu.matmul %120, %121, %cst_59 {dimension_numbers = #tpu.dot_dimension_numbers<[1], [0], [0], [1], [0, 0, 1, 1], [], []>} : vector<8x64xf32>, vector<64x64xf32>, vector<8x64xf32> -> vector<8x64xf32>
    %cst_60 = arith.constant dense<0.000000e+00> : vector<8x64xf32>
    %124 = tpu.matmul %6, %123, %cst_60 {dimension_numbers = #tpu.dot_dimension_numbers<[1], [0], [0], [1], [0, 0, 1, 1], [], []>} : vector<8x8xf32>, vector<8x64xf32>, vector<8x64xf32> -> vector<8x64xf32>
    %125 = vector.broadcast %122 : vector<1x64xf32> to vector<8x64xf32>
    %126 = arith.addf %124, %125 : vector<8x64xf32>
    %127 = vector.broadcast %7 : vector<8x1xf32> to vector<8x64xf32>
    %128 = arith.mulf %126, %127 : vector<8x64xf32>
    %cst_61 = arith.constant 0.000000e+00 : f32
    %129 = vector.broadcast %cst_61 : f32 to vector<8x64xf32>
    %130 = arith.maximumf %128, %129 : vector<8x64xf32>
    %cst_62 = arith.constant dense<0.000000e+00> : vector<64xf32>
    %131 = vector.multi_reduction <add>, %130, %cst_62 [0] : vector<8x64xf32> to vector<64xf32>
    %132 = vector.shape_cast %131 : vector<64xf32> to vector<1x64xf32>
    %cst_63 = arith.constant 1.250000e-01 : f32
    %133 = vector.broadcast %cst_63 : f32 to vector<1x64xf32>
    %134 = arith.mulf %132, %133 : vector<1x64xf32>
    %135 = arith.mulf %130, %130 : vector<8x64xf32>
    %cst_64 = arith.constant dense<0.000000e+00> : vector<64xf32>
    %136 = vector.multi_reduction <add>, %135, %cst_64 [0] : vector<8x64xf32> to vector<64xf32>
    %137 = vector.shape_cast %136 : vector<64xf32> to vector<1x64xf32>
    %cst_65 = arith.constant 1.250000e-01 : f32
    %138 = vector.broadcast %cst_65 : f32 to vector<1x64xf32>
    %139 = arith.mulf %137, %138 : vector<1x64xf32>
    %140 = arith.mulf %134, %134 : vector<1x64xf32>
    %141 = arith.subf %139, %140 : vector<1x64xf32>
    %142 = vector.broadcast %134 : vector<1x64xf32> to vector<8x64xf32>
    %143 = arith.subf %130, %142 : vector<8x64xf32>
    %cst_66 = arith.constant 9.99999974E-6 : f32
    %144 = vector.broadcast %cst_66 : f32 to vector<1x64xf32>
    %145 = arith.addf %141, %144 : vector<1x64xf32>
    %146 = math.rsqrt %145 : vector<1x64xf32>
    %147 = vector.broadcast %146 : vector<1x64xf32> to vector<8x64xf32>
    %148 = arith.mulf %143, %147 : vector<8x64xf32>
    %c0_67 = arith.constant 0 : index
    %c0_68 = arith.constant 0 : index
    %149 = vector.load %arg13[%c0_67, %c0_68] : memref<64x64xf32, #tpu.memory_space<vmem>>, vector<64x64xf32>
    %c0_69 = arith.constant 0 : index
    %c0_70 = arith.constant 0 : index
    %150 = vector.load %arg14[%c0_69, %c0_70] : memref<1x64xf32, #tpu.memory_space<vmem>>, vector<1x64xf32>
    %cst_71 = arith.constant dense<0.000000e+00> : vector<8x64xf32>
    %151 = tpu.matmul %148, %149, %cst_71 {dimension_numbers = #tpu.dot_dimension_numbers<[1], [0], [0], [1], [0, 0, 1, 1], [], []>} : vector<8x64xf32>, vector<64x64xf32>, vector<8x64xf32> -> vector<8x64xf32>
    %cst_72 = arith.constant dense<0.000000e+00> : vector<8x64xf32>
    %152 = tpu.matmul %6, %151, %cst_72 {dimension_numbers = #tpu.dot_dimension_numbers<[1], [0], [0], [1], [0, 0, 1, 1], [], []>} : vector<8x8xf32>, vector<8x64xf32>, vector<8x64xf32> -> vector<8x64xf32>
    %153 = vector.broadcast %150 : vector<1x64xf32> to vector<8x64xf32>
    %154 = arith.addf %152, %153 : vector<8x64xf32>
    %155 = vector.broadcast %7 : vector<8x1xf32> to vector<8x64xf32>
    %156 = arith.mulf %154, %155 : vector<8x64xf32>
    %cst_73 = arith.constant 0.000000e+00 : f32
    %157 = vector.broadcast %cst_73 : f32 to vector<8x64xf32>
    %158 = arith.maximumf %156, %157 : vector<8x64xf32>
    %cst_74 = arith.constant dense<0.000000e+00> : vector<64xf32>
    %159 = vector.multi_reduction <add>, %158, %cst_74 [0] : vector<8x64xf32> to vector<64xf32>
    %160 = vector.shape_cast %159 : vector<64xf32> to vector<1x64xf32>
    %cst_75 = arith.constant 1.250000e-01 : f32
    %161 = vector.broadcast %cst_75 : f32 to vector<1x64xf32>
    %162 = arith.mulf %160, %161 : vector<1x64xf32>
    %163 = arith.mulf %158, %158 : vector<8x64xf32>
    %cst_76 = arith.constant dense<0.000000e+00> : vector<64xf32>
    %164 = vector.multi_reduction <add>, %163, %cst_76 [0] : vector<8x64xf32> to vector<64xf32>
    %165 = vector.shape_cast %164 : vector<64xf32> to vector<1x64xf32>
    %cst_77 = arith.constant 1.250000e-01 : f32
    %166 = vector.broadcast %cst_77 : f32 to vector<1x64xf32>
    %167 = arith.mulf %165, %166 : vector<1x64xf32>
    %168 = arith.mulf %162, %162 : vector<1x64xf32>
    %169 = arith.subf %167, %168 : vector<1x64xf32>
    %170 = vector.broadcast %162 : vector<1x64xf32> to vector<8x64xf32>
    %171 = arith.subf %158, %170 : vector<8x64xf32>
    %cst_78 = arith.constant 9.99999974E-6 : f32
    %172 = vector.broadcast %cst_78 : f32 to vector<1x64xf32>
    %173 = arith.addf %169, %172 : vector<1x64xf32>
    %174 = math.rsqrt %173 : vector<1x64xf32>
    %175 = vector.broadcast %174 : vector<1x64xf32> to vector<8x64xf32>
    %176 = arith.mulf %171, %175 : vector<8x64xf32>
    %cst_79 = arith.constant dense<0xFF800000> : vector<8xf32>
    %177 = vector.multi_reduction <maximumf>, %92, %cst_79 [1] : vector<8x2xf32> to vector<8xf32>
    %178 = vector.shape_cast %177 : vector<8xf32> to vector<8x1xf32>
    %179 = vector.broadcast %178 : vector<8x1xf32> to vector<8x2xf32>
    %180 = arith.subf %92, %179 : vector<8x2xf32>
    %181 = math.exp %180 : vector<8x2xf32>
    %cst_80 = arith.constant dense<0.000000e+00> : vector<8xf32>
    %182 = vector.multi_reduction <add>, %181, %cst_80 [1] : vector<8x2xf32> to vector<8xf32>
    %183 = vector.shape_cast %182 : vector<8xf32> to vector<8x1xf32>
    %184 = tpu.reciprocal %183 {approx = true} : vector<8x1xf32> -> vector<8x1xf32>
    %185 = vector.broadcast %184 : vector<8x1xf32> to vector<8x2xf32>
    %186 = arith.mulf %181, %185 : vector<8x2xf32>
    %187 = vector.broadcast %7 : vector<8x1xf32> to vector<8x2xf32>
    %188 = arith.mulf %186, %187 : vector<8x2xf32>
    %189 = vector.broadcast %7 : vector<8x1xf32> to vector<8x64xf32>
    %190 = arith.mulf %176, %189 : vector<8x64xf32>
    %cst_81 = arith.constant dense<0.000000e+00> : vector<2x64xf32>
    %191 = tpu.matmul %188, %190, %cst_81 {dimension_numbers = #tpu.dot_dimension_numbers<[0], [0], [1], [1], [0, 1, 1, 1], [], []>} : vector<8x2xf32>, vector<8x64xf32>, vector<2x64xf32> -> vector<2x64xf32>
    %c0_82 = arith.constant 0 : index
    %c0_83 = arith.constant 0 : index
    %192 = vector.load %arg15[%c0_82, %c0_83] : memref<2x64xf32, #tpu.memory_space<vmem>>, vector<2x64xf32>
    tpu.vector_store %arg15[%c0_82, %c0_83], %191 {strides = array<i32>} : memref<2x64xf32, #tpu.memory_space<vmem>>, vector<2x64xf32>,
    %cst_84 = arith.constant dense<0.000000e+00> : vector<2x8xf32>
    %193 = tpu.matmul %188, %0, %cst_84 {dimension_numbers = #tpu.dot_dimension_numbers<[0], [0], [1], [1], [0, 1, 1, 1], [], []>} : vector<8x2xf32>, vector<8x8xf32>, vector<2x8xf32> -> vector<2x8xf32>
    %cst_85 = arith.constant dense<0.000000e+00> : vector<2x2xf32>
    %194 = tpu.matmul %193, %188, %cst_85 {dimension_numbers = #tpu.dot_dimension_numbers<[1], [0], [0], [1], [0, 0, 1, 1], [], []>} : vector<2x8xf32>, vector<8x2xf32>, vector<2x2xf32> -> vector<2x2xf32>
    %c0_86 = arith.constant 0 : index
    %c0_87 = arith.constant 0 : index
    %195 = vector.load %arg16[%c0_86, %c0_87] : memref<2x2xf32, #tpu.memory_space<vmem>>, vector<2x2xf32>
    tpu.vector_store %arg16[%c0_86, %c0_87], %194 {strides = array<i32>} : memref<2x2xf32, #tpu.memory_space<vmem>>, vector<2x2xf32>,
    %cst_88 = arith.constant dense<0.000000e+00> : vector<8x8xf32>
    %196 = tpu.matmul %188, %188, %cst_88 {dimension_numbers = #tpu.dot_dimension_numbers<[1], [1], [0], [0], [0, 0, 1, 0], [], []>} : vector<8x2xf32>, vector<8x2xf32>, vector<8x8xf32> -> vector<8x8xf32>
    %197 = arith.subf %0, %196 : vector<8x8xf32>
    %198 = arith.mulf %197, %197 : vector<8x8xf32>
    %199 = vector.shape_cast %198 : vector<8x8xf32> to vector<1x8x8xf32>
    %cst_89 = arith.constant dense<0.000000e+00> : vector<1xf32>
    %200 = vector.multi_reduction <add>, %199, %cst_89 [1, 2] : vector<1x8x8xf32> to vector<1xf32>
    %201 = vector.shape_cast %200 : vector<1xf32> to vector<1x1x1xf32>
    %202 = vector.extract %201[0, 0, 0] : f32 from vector<1x1x1xf32>
    %203 = vector.broadcast %202 : f32 to vector<1x1xf32>
    %204 = math.sqrt %203 : vector<1x1xf32>
    %cst_90 = arith.constant 1.562500e-02 : f32
    %205 = vector.broadcast %cst_90 : f32 to vector<1x1xf32>
    %206 = arith.mulf %204, %205 : vector<1x1xf32>
    %c0_91 = arith.constant 0 : index
    %c0_92 = arith.constant 0 : index
    %207 = vector.load %arg17[%c0_91, %c0_92] : memref<1x1xf32, #tpu.memory_space<vmem>>, vector<1x1xf32>
    tpu.vector_store %arg17[%c0_91, %c0_92], %206 {strides = array<i32>} : memref<1x1xf32, #tpu.memory_space<vmem>>, vector<1x1xf32>,
    %cst_93 = arith.constant 0.000000e+00 : f32
    %208 = vector.broadcast %cst_93 : f32 to vector<8x2xf32>
    %209 = arith.subf %208, %188 : vector<8x2xf32>
    %cst_94 = arith.constant 1.000000e-15 : f32
    %210 = vector.broadcast %cst_94 : f32 to vector<8x2xf32>
    %211 = arith.addf %188, %210 : vector<8x2xf32>
    %212 = math.log %211 : vector<8x2xf32>
    %213 = arith.mulf %209, %212 : vector<8x2xf32>
    %214 = vector.shape_cast %213 : vector<8x2xf32> to vector<1x8x2xf32>
    %cst_95 = arith.constant dense<0.000000e+00> : vector<1xf32>
    %215 = vector.multi_reduction <add>, %214, %cst_95 [1, 2] : vector<1x8x2xf32> to vector<1xf32>
    %216 = vector.shape_cast %215 : vector<1xf32> to vector<1x1x1xf32>
    %217 = vector.extract %216[0, 0, 0] : f32 from vector<1x1x1xf32>
    %218 = vector.broadcast %217 : f32 to vector<1x1xf32>
    %cst_96 = arith.constant 1.250000e-01 : f32
    %219 = vector.broadcast %cst_96 : f32 to vector<1x1xf32>
    %220 = arith.mulf %218, %219 : vector<1x1xf32>
    %c0_97 = arith.constant 0 : index
    %c0_98 = arith.constant 0 : index
    %221 = vector.load %arg18[%c0_97, %c0_98] : memref<1x1xf32, #tpu.memory_space<vmem>>, vector<1x1xf32>
    tpu.vector_store %arg18[%c0_97, %c0_98], %220 {strides = array<i32>} : memref<1x1xf32, #tpu.memory_space<vmem>>, vector<1x1xf32>,
    return
  }
}

</mosaic_0001>

<llo_original>
// kernel: diffpool_forward.5
$region0: #{diffpool_forward.5}
  #allocation0 [shape = 'u32[]', space=smem, size = 0x4, offset = 0x4, fixed_abs, tag = 'smem constant byte address 0x4 - core index']
  #allocation1 [shape = 'u32[144,128]{1,0:T(1,128)}', space=vmem, size = 0x12000, scoped, tag = 'internal scratch']
  %s0 = inlined_call_operand.vmem [shape: f32[2,64], index: 0, kind: input, shape index: {}]
  %s1 = inlined_call_operand.vmem [shape: f32[2,2], index: 1, kind: input, shape index: {}]
  %s2 = inlined_call_operand.vmem [shape: f32[64,64], index: 2, kind: input, shape index: {}]
  %s3 = inlined_call_operand.vmem [shape: f32[1,64], index: 3, kind: input, shape index: {}]
  %s4 = inlined_call_operand.vmem [shape: f32[64,64], index: 4, kind: input, shape index: {}]
  %s5 = inlined_call_operand.vmem [shape: f32[1,64], index: 5, kind: input, shape index: {}]
  %s6 = inlined_call_operand.vmem [shape: f32[64,64], index: 6, kind: input, shape index: {}]
  %s7 = inlined_call_operand.vmem [shape: f32[1,64], index: 7, kind: input, shape index: {}]
  %s8 = inlined_call_operand.vmem [shape: f32[2,2], index: 8, kind: input, shape index: {}]
  %s9 = inlined_call_operand.vmem [shape: f32[64,64], index: 9, kind: input, shape index: {}]
  %s10 = inlined_call_operand.vmem [shape: f32[1,64], index: 10, kind: input, shape index: {}]
  %s11 = inlined_call_operand.vmem [shape: f32[64,8], index: 11, kind: input, shape index: {}]
  %s12 = inlined_call_operand.vmem [shape: f32[1,8], index: 12, kind: input, shape index: {}]
  %s13 = inlined_call_operand.hbm [shape: f32[2,8], index: 13, kind: output, shape index: {}]
  %s14 = sld [smem:[#allocation0]]
  $region62: #{diffpool_forward.5} parent=0
    _
  %s16 = ssub.s32 1, %s14
  %s17 = scalar_select 0, %s16, %s14
  $region1: #{diffpool_forward.5} parent=0
    #allocation2 [shape = 'u8[1024]{0}', space=vmem, size = 0x400, scoped, tag = 'output window, operand 0, single buffered']
    #allocation3 [shape = 's32[1]{0}', space=sflag, size = 0x4, scoped, tag = 'scoped memory for diffpool_forward.5']
    %18 = vsyncpa [#allocation3], 0
    // Predicated region
    $region2: #{diffpool_forward.5} parent=1 // pred_check
      _
    $region3: #{diffpool_forward.5} parent=1 // pred_check_branch
      %20 = sbr.rel (0) target = $region5
    $region4: #{diffpool_forward.5} parent=1 // pred_region
      _
    $region5: #{diffpool_forward.5} parent=1 // pred_fallthru
      _
    // Predicated region
    $region6: #{diffpool_forward.5} parent=1 // pred_check
      _
    $region7: #{diffpool_forward.5} parent=1 // pred_check_branch
      %22 = sbr.rel (0) target = $region9
    $region8: #{diffpool_forward.5} parent=1 // pred_region
      _
    $region9: #{diffpool_forward.5} parent=1 // pred_fallthru
      _
    // Predicated region
    $region10: #{diffpool_forward.5} parent=1 // pred_check
      _
    $region11: #{diffpool_forward.5} parent=1 // pred_check_branch
      %24 = sbr.rel (0) target = $region13
    $region12: #{diffpool_forward.5} parent=1 // pred_region
      _
    $region13: #{diffpool_forward.5} parent=1 // pred_fallthru
      _
    // Predicated region
    $region14: #{diffpool_forward.5} parent=1 // pred_check
      _
    $region15: #{diffpool_forward.5} parent=1 // pred_check_branch
      %26 = sbr.rel (0) target = $region17
    $region16: #{diffpool_forward.5} parent=1 // pred_region
      _
    $region17: #{diffpool_forward.5} parent=1 // pred_fallthru
      _
    // Predicated region
    $region18: #{diffpool_forward.5} parent=1 // pred_check
      _
    $region19: #{diffpool_forward.5} parent=1 // pred_check_branch
      %28 = sbr.rel (0) target = $region21
    $region20: #{diffpool_forward.5} parent=1 // pred_region
      _
    $region21: #{diffpool_forward.5} parent=1 // pred_fallthru
      _
    // Predicated region
    $region22: #{diffpool_forward.5} parent=1 // pred_check
      _
    $region23: #{diffpool_forward.5} parent=1 // pred_check_branch
      %30 = sbr.rel (0) target = $region25
    $region24: #{diffpool_forward.5} parent=1 // pred_region
      _
    $region25: #{diffpool_forward.5} parent=1 // pred_fallthru
      _
    // Predicated region
    $region26: #{diffpool_forward.5} parent=1 // pred_check
      _
    $region27: #{diffpool_forward.5} parent=1 // pred_check_branch
      %32 = sbr.rel (0) target = $region29
    $region28: #{diffpool_forward.5} parent=1 // pred_region
      _
    $region29: #{diffpool_forward.5} parent=1 // pred_fallthru
      _
    // Predicated region
    $region30: #{diffpool_forward.5} parent=1 // pred_check
      _
    $region31: #{diffpool_forward.5} parent=1 // pred_check_branch
      %34 = sbr.rel (0) target = $region33
    $region32: #{diffpool_forward.5} parent=1 // pred_region
      _
    $region33: #{diffpool_forward.5} parent=1 // pred_fallthru
      _
    // Predicated region
    $region34: #{diffpool_forward.5} parent=1 // pred_check
      _
    $region35: #{diffpool_forward.5} parent=1 // pred_check_branch
      %36 = sbr.rel (0) target = $region37
    $region36: #{diffpool_forward.5} parent=1 // pred_region
      _
    $region37: #{diffpool_forward.5} parent=1 // pred_fallthru
      _
    // Predicated region
    $region38: #{diffpool_forward.5} parent=1 // pred_check
      _
    $region39: #{diffpool_forward.5} parent=1 // pred_check_branch
      %38 = sbr.rel (0) target = $region41
    $region40: #{diffpool_forward.5} parent=1 // pred_region
      _
    $region41: #{diffpool_forward.5} parent=1 // pred_fallthru
      _
    // Predicated region
    $region42: #{diffpool_forward.5} parent=1 // pred_check
      _
    $region43: #{diffpool_forward.5} parent=1 // pred_check_branch
      %40 = sbr.rel (0) target = $region45
    $region44: #{diffpool_forward.5} parent=1 // pred_region
      _
    $region45: #{diffpool_forward.5} parent=1 // pred_fallthru
      _
    // Predicated region
    $region46: #{diffpool_forward.5} parent=1 // pred_check
      _
    $region47: #{diffpool_forward.5} parent=1 // pred_check_branch
      %42 = sbr.rel (0) target = $region49
    $region48: #{diffpool_forward.5} parent=1 // pred_region
      _
    $region49: #{diffpool_forward.5} parent=1 // pred_fallthru
      _
    // Predicated region
    $region50: #{diffpool_forward.5} parent=1 // pred_check
      _
    $region51: #{diffpool_forward.5} parent=1 // pred_check_branch
      %44 = sbr.rel (0) target = $region53
    $region52: #{diffpool_forward.5} parent=1 // pred_region
      _
    $region53: #{diffpool_forward.5} parent=1 // pred_fallthru
      _
    %v45 = vlaneseq
    %v46 = vshrl.u32 %v45, 7
    %v47 = vlaneseq
    %v48 = vand.u32 %v47, 127
    %vm49 = vcmp.eq.s32.totalorder %v46, %v48
    %v50 = vld [vmem:[%s1] sm:$0x3]
    %v51 = vsel %vm49, 1.0, %v50
    %v52 = vld [vmem:[%s0] sm:$0x3]
    %v53 = vld [vmem:[%s2] sm:$0xff]
    %v54 = vld [vmem:[%s2 + $0x8] sm:$0xff]
    %v55 = vld [vmem:[%s2 + $0x10] sm:$0xff]
    %v56 = vld [vmem:[%s2 + $0x18] sm:$0xff]
    %v57 = vld [vmem:[%s2 + $0x20] sm:$0xff]
    %v58 = vld [vmem:[%s2 + $0x28] sm:$0xff]
    %v59 = vld [vmem:[%s2 + $0x30] sm:$0xff]
    %v60 = vld [vmem:[%s2 + $0x38] sm:$0xff]
    %v61 = vld [vmem:[%s3] sm:$0x1]
    %vm62 = vcmask 523264
    %v64 = vsel %vm62, %v52, 0
    %66 = vmatprep.subr.mxu0 0.0
    %67 = vmatpush1.msra.mxu0 0.0
    %68 = vmatprep.subr.mxu0 0.0
    %69 = vmatpush1.msra.mxu0 0.0
    %70 = vmatprep.subr.mxu0 0.0
    %71 = vmatpush1.msra.mxu0 0.0
    %72 = vmatprep.subr.mxu0 0.0
    %73 = vmatpush1.msra.mxu0 0.0
    %74 = vmatprep.subr.mxu0 0.0
    %75 = vmatpush1.msra.mxu0 0.0
    %76 = vmatprep.subr.mxu0 0.0
    %77 = vmatpush1.msra.mxu0 0.0
    %78 = vmatprep.subr.mxu0 0.0
    %79 = vmatpush1.msra.mxu0 0.0
    %80 = vmatprep.subr.mxu0 0.0
    %81 = vmatpush1.msra.mxu0 0.0
    %82 = vmatprep.subr.mxu0 0.0
    %83 = vmatpush1.msra.mxu0 %v60
    %84 = vmatprep.subr.mxu0 0.0
    %85 = vmatpush1.msra.mxu0 %v59
    %86 = vmatprep.subr.mxu0 0.0
    %87 = vmatpush1.msra.mxu0 %v58
    %88 = vmatprep.subr.mxu0 0.0
    %89 = vmatpush1.msra.mxu0 %v57
    %90 = vmatprep.subr.mxu0 0.0
    %91 = vmatpush1.msra.mxu0 %v56
    %92 = vmatprep.subr.mxu0 0.0
    %93 = vmatpush1.msra.mxu0 %v55
    %94 = vmatprep.subr.mxu0 0.0
    %95 = vmatpush1.msra.mxu0 %v54
    %96 = vmatprep.subr.mxu0 0.0
    %97 = vmatpush1.msra.mxu0 %v53
    %98 = vmatprep.subr.mxu0 0.0
    %99 = vmatpush2.msra.mxu0 0.0
    %100 = vmatprep.subr.mxu0 0.0
    %101 = vmatpush2.msra.mxu0 0.0
    %102 = vmatprep.subr.mxu0 0.0
    %103 = vmatpush2.msra.mxu0 0.0
    %104 = vmatprep.subr.mxu0 0.0
    %105 = vmatpush2.msra.mxu0 0.0
    %106 = vmatprep.subr.mxu0 0.0
    %107 = vmatpush2.msra.mxu0 0.0
    %108 = vmatprep.subr.mxu0 0.0
    %109 = vmatpush2.msra.mxu0 0.0
    %110 = vmatprep.subr.mxu0 0.0
    %111 = vmatpush2.msra.mxu0 0.0
    %112 = vmatprep.subr.mxu0 0.0
    %113 = vmatpush2.msra.mxu0 0.0
    %114 = vmatprep.subr.mxu0 0.0
    %115 = vmatpush2.msra.mxu0 0.0
    %116 = vmatprep.subr.mxu0 0.0
    %117 = vmatpush2.msra.mxu0 0.0
    %118 = vmatprep.subr.mxu0 0.0
    %119 = vmatpush2.msra.mxu0 0.0
    %120 = vmatprep.subr.mxu0 0.0
    %121 = vmatpush2.msra.mxu0 0.0
    %122 = vmatprep.subr.mxu0 0.0
    %123 = vmatpush2.msra.mxu0 0.0
    %124 = vmatprep.subr.mxu0 0.0
    %125 = vmatpush2.msra.mxu0 0.0
    %126 = vmatprep.subr.mxu0 0.0
    %127 = vmatpush2.msra.mxu0 0.0
    %128 = vmatprep.subr.mxu0 0.0
    %129 = vmatpush2.msra.mxu0 0.0
    %130 = vmatprep.mubr.f32.mxu0 0.0
    %131 = vmatmul.mubr.f32.gmra.mxu0 %v64
    %v132 = vpop.f32.mrf.mxu0
    %v133 = vadd.f32 0.0, %v132
    %v134 = vpop.f32.mrf.mxu0
    %135 = vdwg.mxu0
    %v137 = vlaneseq
    %v138 = vshrl.u32 %v137, 7
    %v139 = vsub.s32 0, %v138
    %v140 = vrot.slane %v61, %v139
    %vm142 = vcmask 15360
    %v144 = vsel %vm142, %v51, 0
    %vm146 = vcmask 1041408
    %v148 = vsel %vm146, %v133, 0
    %150 = vmatprep.subr.mxu0 0.0
    %151 = vmatpush1.msra.mxu0 0.0
    %152 = vmatprep.subr.mxu0 0.0
    %153 = vmatpush1.msra.mxu0 0.0
    %154 = vmatprep.subr.mxu0 0.0
    %155 = vmatpush1.msra.mxu0 0.0
    %156 = vmatprep.subr.mxu0 0.0
    %157 = vmatpush1.msra.mxu0 0.0
    %158 = vmatprep.subr.mxu0 0.0
    %159 = vmatpush1.msra.mxu0 0.0
    %160 = vmatprep.subr.mxu0 0.0
    %161 = vmatpush1.msra.mxu0 0.0
    %162 = vmatprep.subr.mxu0 0.0
    %163 = vmatpush1.msra.mxu0 0.0
    %164 = vmatprep.subr.mxu0 0.0
    %165 = vmatpush1.msra.mxu0 0.0
    %166 = vmatprep.subr.mxu0 0.0
    %167 = vmatpush1.msra.mxu0 0.0
    %168 = vmatprep.subr.mxu0 0.0
    %169 = vmatpush1.msra.mxu0 0.0
    %170 = vmatprep.subr.mxu0 0.0
    %171 = vmatpush1.msra.mxu0 0.0
    %172 = vmatprep.subr.mxu0 0.0
    %173 = vmatpush1.msra.mxu0 0.0
    %174 = vmatprep.subr.mxu0 0.0
    %175 = vmatpush1.msra.mxu0 0.0
    %176 = vmatprep.subr.mxu0 0.0
    %177 = vmatpush1.msra.mxu0 0.0
    %178 = vmatprep.subr.mxu0 0.0
    %179 = vmatpush1.msra.mxu0 0.0
    %180 = vmatprep.subr.mxu0 0.0
    %181 = vmatpush1.msra.mxu0 %v148
    %182 = vmatprep.subr.mxu0 0.0
    %183 = vmatpush2.msra.mxu0 0.0
    %184 = vmatprep.subr.mxu0 0.0
    %185 = vmatpush2.msra.mxu0 0.0
    %186 = vmatprep.subr.mxu0 0.0
    %187 = vmatpush2.msra.mxu0 0.0
    %188 = vmatprep.subr.mxu0 0.0
    %189 = vmatpush2.msra.mxu0 0.0
    %190 = vmatprep.subr.mxu0 0.0
    %191 = vmatpush2.msra.mxu0 0.0
    %192 = vmatprep.subr.mxu0 0.0
    %193 = vmatpush2.msra.mxu0 0.0
    %194 = vmatprep.subr.mxu0 0.0
    %195 = vmatpush2.msra.mxu0 0.0
    %196 = vmatprep.subr.mxu0 0.0
    %197 = vmatpush2.msra.mxu0 0.0
    %198 = vmatprep.subr.mxu0 0.0
    %199 = vmatpush2.msra.mxu0 0.0
    %200 = vmatprep.subr.mxu0 0.0
    %201 = vmatpush2.msra.mxu0 0.0
    %202 = vmatprep.subr.mxu0 0.0
    %203 = vmatpush2.msra.mxu0 0.0
    %204 = vmatprep.subr.mxu0 0.0
    %205 = vmatpush2.msra.mxu0 0.0
    %206 = vmatprep.subr.mxu0 0.0
    %207 = vmatpush2.msra.mxu0 0.0
    %208 = vmatprep.subr.mxu0 0.0
    %209 = vmatpush2.msra.mxu0 0.0
    %210 = vmatprep.subr.mxu0 0.0
    %211 = vmatpush2.msra.mxu0 0.0
    %212 = vmatprep.subr.mxu0 0.0
    %213 = vmatpush2.msra.mxu0 0.0
    %214 = vmatprep.mubr.f32.mxu0 0.0
    %215 = vmatmul.mubr.f32.gmra.mxu0 %v144
    %v216 = vpop.f32.mrf.mxu0
    %v217 = vadd.f32 %v140, %v216
    %v218 = vpop.f32.mrf.mxu0
    %219 = vdwg.mxu0
    %v220 = vmax.f32 %v217, 0.0
    %vm221 = vcmask 517120
    %v222 = vsel %vm221, %v220, 0.0
    %v223 = vrot.slane %v222, 4
    %v224 = vadd.f32 %v222, %v223
    %v225 = vrot.slane %v224, 2
    %v226 = vadd.f32 %v224, %v225
    %v227 = vrot.slane %v226, 1
    %v228 = vadd.f32 %v226, %v227
    %v229 = vmul.f32 %v228, 0.5
    %v230 = vmul.f32 %v220, %v220
    %v231 = vsel %vm221, %v230, 0.0
    %v232 = vrot.slane %v231, 4
    %v233 = vadd.f32 %v231, %v232
    %v234 = vrot.slane %v233, 2
    %v235 = vadd.f32 %v233, %v234
    %v236 = vrot.slane %v235, 1
    %v237 = vadd.f32 %v235, %v236
    %v238 = vmul.f32 %v237, 0.5
    %v239 = vmul.f32 %v229, %v229
    %v240 = vsub.f32 %v238, %v239
    %v241 = vsub.f32 %v220, %v229
    %v242 = vadd.f32 %v240, 1e-05
    %v243 = vrsqrt.pop %v242
    %v244 = vmul.f32 %v241, %v243
    %v245 = vld [vmem:[%s4] sm:$0xff]
    %v246 = vld [vmem:[%s4 + $0x8] sm:$0xff]
    %v247 = vld [vmem:[%s4 + $0x10] sm:$0xff]
    %v248 = vld [vmem:[%s4 + $0x18] sm:$0xff]
    %v249 = vld [vmem:[%s4 + $0x20] sm:$0xff]
    %v250 = vld [vmem:[%s4 + $0x28] sm:$0xff]
    %v251 = vld [vmem:[%s4 + $0x30] sm:$0xff]
    %v252 = vld [vmem:[%s4 + $0x38] sm:$0xff]
    %v253 = vld [vmem:[%s5] sm:$0x1]
    %v255 = vsel %vm62, %v244, 0
    %257 = vmatprep.subr.mxu0 0.0
    %258 = vmatpush1.msra.mxu0 0.0
    %259 = vmatprep.subr.mxu0 0.0
    %260 = vmatpush1.msra.mxu0 0.0
    %261 = vmatprep.subr.mxu0 0.0
    %262 = vmatpush1.msra.mxu0 0.0
    %263 = vmatprep.subr.mxu0 0.0
    %264 = vmatpush1.msra.mxu0 0.0
    %265 = vmatprep.subr.mxu0 0.0
    %266 = vmatpush1.msra.mxu0 0.0
    %267 = vmatprep.subr.mxu0 0.0
    %268 = vmatpush1.msra.mxu0 0.0
    %269 = vmatprep.subr.mxu0 0.0
    %270 = vmatpush1.msra.mxu0 0.0
    %271 = vmatprep.subr.mxu0 0.0
    %272 = vmatpush1.msra.mxu0 0.0
    %273 = vmatprep.subr.mxu0 0.0
    %274 = vmatpush1.msra.mxu0 %v252
    %275 = vmatprep.subr.mxu0 0.0
    %276 = vmatpush1.msra.mxu0 %v251
    %277 = vmatprep.subr.mxu0 0.0
    %278 = vmatpush1.msra.mxu0 %v250
    %279 = vmatprep.subr.mxu0 0.0
    %280 = vmatpush1.msra.mxu0 %v249
    %281 = vmatprep.subr.mxu0 0.0
    %282 = vmatpush1.msra.mxu0 %v248
    %283 = vmatprep.subr.mxu0 0.0
    %284 = vmatpush1.msra.mxu0 %v247
    %285 = vmatprep.subr.mxu0 0.0
    %286 = vmatpush1.msra.mxu0 %v246
    %287 = vmatprep.subr.mxu0 0.0
    %288 = vmatpush1.msra.mxu0 %v245
    %289 = vmatprep.subr.mxu0 0.0
    %290 = vmatpush2.msra.mxu0 0.0
    %291 = vmatprep.subr.mxu0 0.0
    %292 = vmatpush2.msra.mxu0 0.0
    %293 = vmatprep.subr.mxu0 0.0
    %294 = vmatpush2.msra.mxu0 0.0
    %295 = vmatprep.subr.mxu0 0.0
    %296 = vmatpush2.msra.mxu0 0.0
    %297 = vmatprep.subr.mxu0 0.0
    %298 = vmatpush2.msra.mxu0 0.0
    %299 = vmatprep.subr.mxu0 0.0
    %300 = vmatpush2.msra.mxu0 0.0
    %301 = vmatprep.subr.mxu0 0.0
    %302 = vmatpush2.msra.mxu0 0.0
    %303 = vmatprep.subr.mxu0 0.0
    %304 = vmatpush2.msra.mxu0 0.0
    %305 = vmatprep.subr.mxu0 0.0
    %306 = vmatpush2.msra.mxu0 0.0
    %307 = vmatprep.subr.mxu0 0.0
    %308 = vmatpush2.msra.mxu0 0.0
    %309 = vmatprep.subr.mxu0 0.0
    %310 = vmatpush2.msra.mxu0 0.0
    %311 = vmatprep.subr.mxu0 0.0
    %312 = vmatpush2.msra.mxu0 0.0
    %313 = vmatprep.subr.mxu0 0.0
    %314 = vmatpush2.msra.mxu0 0.0
    %315 = vmatprep.subr.mxu0 0.0
    %316 = vmatpush2.msra.mxu0 0.0
    %317 = vmatprep.subr.mxu0 0.0
    %318 = vmatpush2.msra.mxu0 0.0
    %319 = vmatprep.subr.mxu0 0.0
    %320 = vmatpush2.msra.mxu0 0.0
    %321 = vmatprep.mubr.f32.mxu0 0.0
    %322 = vmatmul.mubr.f32.gmra.mxu0 %v255
    %v323 = vpop.f32.mrf.mxu0
    %v324 = vadd.f32 0.0, %v323
    %v325 = vpop.f32.mrf.mxu0
    %326 = vdwg.mxu0
    %v328 = vlaneseq
    %v329 = vshrl.u32 %v328, 7
    %v330 = vsub.s32 0, %v329
    %v331 = vrot.slane %v253, %v330
    %v334 = vsel %vm146, %v324, 0
    %336 = vmatprep.subr.mxu0 0.0
    %337 = vmatpush1.msra.mxu0 0.0
    %338 = vmatprep.subr.mxu0 0.0
    %339 = vmatpush1.msra.mxu0 0.0
    %340 = vmatprep.subr.mxu0 0.0
    %341 = vmatpush1.msra.mxu0 0.0
    %342 = vmatprep.subr.mxu0 0.0
    %343 = vmatpush1.msra.mxu0 0.0
    %344 = vmatprep.subr.mxu0 0.0
    %345 = vmatpush1.msra.mxu0 0.0
    %346 = vmatprep.subr.mxu0 0.0
    %347 = vmatpush1.msra.mxu0 0.0
    %348 = vmatprep.subr.mxu0 0.0
    %349 = vmatpush1.msra.mxu0 0.0
    %350 = vmatprep.subr.mxu0 0.0
    %351 = vmatpush1.msra.mxu0 0.0
    %352 = vmatprep.subr.mxu0 0.0
    %353 = vmatpush1.msra.mxu0 0.0
    %354 = vmatprep.subr.mxu0 0.0
    %355 = vmatpush1.msra.mxu0 0.0
    %356 = vmatprep.subr.mxu0 0.0
    %357 = vmatpush1.msra.mxu0 0.0
    %358 = vmatprep.subr.mxu0 0.0
    %359 = vmatpush1.msra.mxu0 0.0
    %360 = vmatprep.subr.mxu0 0.0
    %361 = vmatpush1.msra.mxu0 0.0
    %362 = vmatprep.subr.mxu0 0.0
    %363 = vmatpush1.msra.mxu0 0.0
    %364 = vmatprep.subr.mxu0 0.0
    %365 = vmatpush1.msra.mxu0 0.0
    %366 = vmatprep.subr.mxu0 0.0
    %367 = vmatpush1.msra.mxu0 %v334
    %368 = vmatprep.subr.mxu0 0.0
    %369 = vmatpush2.msra.mxu0 0.0
    %370 = vmatprep.subr.mxu0 0.0
    %371 = vmatpush2.msra.mxu0 0.0
    %372 = vmatprep.subr.mxu0 0.0
    %373 = vmatpush2.msra.mxu0 0.0
    %374 = vmatprep.subr.mxu0 0.0
    %375 = vmatpush2.msra.mxu0 0.0
    %376 = vmatprep.subr.mxu0 0.0
    %377 = vmatpush2.msra.mxu0 0.0
    %378 = vmatprep.subr.mxu0 0.0
    %379 = vmatpush2.msra.mxu0 0.0
    %380 = vmatprep.subr.mxu0 0.0
    %381 = vmatpush2.msra.mxu0 0.0
    %382 = vmatprep.subr.mxu0 0.0
    %383 = vmatpush2.msra.mxu0 0.0
    %384 = vmatprep.subr.mxu0 0.0
    %385 = vmatpush2.msra.mxu0 0.0
    %386 = vmatprep.subr.mxu0 0.0
    %387 = vmatpush2.msra.mxu0 0.0
    %388 = vmatprep.subr.mxu0 0.0
    %389 = vmatpush2.msra.mxu0 0.0
    %390 = vmatprep.subr.mxu0 0.0
    %391 = vmatpush2.msra.mxu0 0.0
    %392 = vmatprep.subr.mxu0 0.0
    %393 = vmatpush2.msra.mxu0 0.0
    %394 = vmatprep.subr.mxu0 0.0
    %395 = vmatpush2.msra.mxu0 0.0
    %396 = vmatprep.subr.mxu0 0.0
    %397 = vmatpush2.msra.mxu0 0.0
    %398 = vmatprep.subr.mxu0 0.0
    %399 = vmatpush2.msra.mxu0 0.0
    %400 = vmatprep.mubr.f32.mxu0 0.0
    %401 = vmatmul.mubr.f32.gmra.mxu0 %v144
    %v402 = vpop.f32.mrf.mxu0
    %v403 = vadd.f32 %v331, %v402
    %v404 = vpop.f32.mrf.mxu0
    %405 = vdwg.mxu0
    %v406 = vmax.f32 %v403, 0.0
    %v407 = vsel %vm221, %v406, 0.0
    %v408 = vrot.slane %v407, 4
    %v409 = vadd.f32 %v407, %v408
    %v410 = vrot.slane %v409, 2
    %v411 = vadd.f32 %v409, %v410
    %v412 = vrot.slane %v411, 1
    %v413 = vadd.f32 %v411, %v412
    %v414 = vmul.f32 %v413, 0.5
    %v415 = vmul.f32 %v406, %v406
    %v416 = vsel %vm221, %v415, 0.0
    %v417 = vrot.slane %v416, 4
    %v418 = vadd.f32 %v416, %v417
    %v419 = vrot.slane %v418, 2
    %v420 = vadd.f32 %v418, %v419
    %v421 = vrot.slane %v420, 1
    %v422 = vadd.f32 %v420, %v421
    %v423 = vmul.f32 %v422, 0.5
    %v424 = vmul.f32 %v414, %v414
    %v425 = vsub.f32 %v423, %v424
    %v426 = vsub.f32 %v406, %v414
    %v427 = vadd.f32 %v425, 1e-05
    %v428 = vrsqrt.pop %v427
    %v429 = vmul.f32 %v426, %v428
    %v430 = vld [vmem:[%s6] sm:$0xff]
    %v431 = vld [vmem:[%s6 + $0x8] sm:$0xff]
    %v432 = vld [vmem:[%s6 + $0x10] sm:$0xff]
    %v433 = vld [vmem:[%s6 + $0x18] sm:$0xff]
    %v434 = vld [vmem:[%s6 + $0x20] sm:$0xff]
    %v435 = vld [vmem:[%s6 + $0x28] sm:$0xff]
    %v436 = vld [vmem:[%s6 + $0x30] sm:$0xff]
    %v437 = vld [vmem:[%s6 + $0x38] sm:$0xff]
    %v438 = vld [vmem:[%s7] sm:$0x1]
    %v440 = vsel %vm62, %v429, 0
    %442 = vmatprep.subr.mxu0 0.0
    %443 = vmatpush1.msra.mxu0 0.0
    %444 = vmatprep.subr.mxu0 0.0
    %445 = vmatpush1.msra.mxu0 0.0
    %446 = vmatprep.subr.mxu0 0.0
    %447 = vmatpush1.msra.mxu0 0.0
    %448 = vmatprep.subr.mxu0 0.0
    %449 = vmatpush1.msra.mxu0 0.0
    %450 = vmatprep.subr.mxu0 0.0
    %451 = vmatpush1.msra.mxu0 0.0
    %452 = vmatprep.subr.mxu0 0.0
    %453 = vmatpush1.msra.mxu0 0.0
    %454 = vmatprep.subr.mxu0 0.0
    %455 = vmatpush1.msra.mxu0 0.0
    %456 = vmatprep.subr.mxu0 0.0
    %457 = vmatpush1.msra.mxu0 0.0
    %458 = vmatprep.subr.mxu0 0.0
    %459 = vmatpush1.msra.mxu0 %v437
    %460 = vmatprep.subr.mxu0 0.0
    %461 = vmatpush1.msra.mxu0 %v436
    %462 = vmatprep.subr.mxu0 0.0
    %463 = vmatpush1.msra.mxu0 %v435
    %464 = vmatprep.subr.mxu0 0.0
    %465 = vmatpush1.msra.mxu0 %v434
    %466 = vmatprep.subr.mxu0 0.0
    %467 = vmatpush1.msra.mxu0 %v433
    %468 = vmatprep.subr.mxu0 0.0
    %469 = vmatpush1.msra.mxu0 %v432
    %470 = vmatprep.subr.mxu0 0.0
    %471 = vmatpush1.msra.mxu0 %v431
    %472 = vmatprep.subr.mxu0 0.0
    %473 = vmatpush1.msra.mxu0 %v430
    %474 = vmatprep.subr.mxu0 0.0
    %475 = vmatpush2.msra.mxu0 0.0
    %476 = vmatprep.subr.mxu0 0.0
    %477 = vmatpush2.msra.mxu0 0.0
    %478 = vmatprep.subr.mxu0 0.0
    %479 = vmatpush2.msra.mxu0 0.0
    %480 = vmatprep.subr.mxu0 0.0
    %481 = vmatpush2.msra.mxu0 0.0
    %482 = vmatprep.subr.mxu0 0.0
    %483 = vmatpush2.msra.mxu0 0.0
    %484 = vmatprep.subr.mxu0 0.0
    %485 = vmatpush2.msra.mxu0 0.0
    %486 = vmatprep.subr.mxu0 0.0
    %487 = vmatpush2.msra.mxu0 0.0
    %488 = vmatprep.subr.mxu0 0.0
    %489 = vmatpush2.msra.mxu0 0.0
    %490 = vmatprep.subr.mxu0 0.0
    %491 = vmatpush2.msra.mxu0 0.0
    %492 = vmatprep.subr.mxu0 0.0
    %493 = vmatpush2.msra.mxu0 0.0
    %494 = vmatprep.subr.mxu0 0.0
    %495 = vmatpush2.msra.mxu0 0.0
    %496 = vmatprep.subr.mxu0 0.0
    %497 = vmatpush2.msra.mxu0 0.0
    %498 = vmatprep.subr.mxu0 0.0
    %499 = vmatpush2.msra.mxu0 0.0
    %500 = vmatprep.subr.mxu0 0.0
    %501 = vmatpush2.msra.mxu0 0.0
    %502 = vmatprep.subr.mxu0 0.0
    %503 = vmatpush2.msra.mxu0 0.0
    %504 = vmatprep.subr.mxu0 0.0
    %505 = vmatpush2.msra.mxu0 0.0
    %506 = vmatprep.mubr.f32.mxu0 0.0
    %507 = vmatmul.mubr.f32.gmra.mxu0 %v440
    %v508 = vpop.f32.mrf.mxu0
    %v509 = vadd.f32 0.0, %v508
    %v510 = vpop.f32.mrf.mxu0
    %511 = vdwg.mxu0
    %v513 = vlaneseq
    %v514 = vshrl.u32 %v513, 7
    %v515 = vsub.s32 0, %v514
    %v516 = vrot.slane %v438, %v515
    %v519 = vsel %vm146, %v509, 0
    %521 = vmatprep.subr.mxu0 0.0
    %522 = vmatpush1.msra.mxu0 0.0
    %523 = vmatprep.subr.mxu0 0.0
    %524 = vmatpush1.msra.mxu0 0.0
    %525 = vmatprep.subr.mxu0 0.0
    %526 = vmatpush1.msra.mxu0 0.0
    %527 = vmatprep.subr.mxu0 0.0
    %528 = vmatpush1.msra.mxu0 0.0
    %529 = vmatprep.subr.mxu0 0.0
    %530 = vmatpush1.msra.mxu0 0.0
    %531 = vmatprep.subr.mxu0 0.0
    %532 = vmatpush1.msra.mxu0 0.0
    %533 = vmatprep.subr.mxu0 0.0
    %534 = vmatpush1.msra.mxu0 0.0
    %535 = vmatprep.subr.mxu0 0.0
    %536 = vmatpush1.msra.mxu0 0.0
    %537 = vmatprep.subr.mxu0 0.0
    %538 = vmatpush1.msra.mxu0 0.0
    %539 = vmatprep.subr.mxu0 0.0
    %540 = vmatpush1.msra.mxu0 0.0
    %541 = vmatprep.subr.mxu0 0.0
    %542 = vmatpush1.msra.mxu0 0.0
    %543 = vmatprep.subr.mxu0 0.0
    %544 = vmatpush1.msra.mxu0 0.0
    %545 = vmatprep.subr.mxu0 0.0
    %546 = vmatpush1.msra.mxu0 0.0
    %547 = vmatprep.subr.mxu0 0.0
    %548 = vmatpush1.msra.mxu0 0.0
    %549 = vmatprep.subr.mxu0 0.0
    %550 = vmatpush1.msra.mxu0 0.0
    %551 = vmatprep.subr.mxu0 0.0
    %552 = vmatpush1.msra.mxu0 %v519
    %553 = vmatprep.subr.mxu0 0.0
    %554 = vmatpush2.msra.mxu0 0.0
    %555 = vmatprep.subr.mxu0 0.0
    %556 = vmatpush2.msra.mxu0 0.0
    %557 = vmatprep.subr.mxu0 0.0
    %558 = vmatpush2.msra.mxu0 0.0
    %559 = vmatprep.subr.mxu0 0.0
    %560 = vmatpush2.msra.mxu0 0.0
    %561 = vmatprep.subr.mxu0 0.0
    %562 = vmatpush2.msra.mxu0 0.0
    %563 = vmatprep.subr.mxu0 0.0
    %564 = vmatpush2.msra.mxu0 0.0
    %565 = vmatprep.subr.mxu0 0.0
    %566 = vmatpush2.msra.mxu0 0.0
    %567 = vmatprep.subr.mxu0 0.0
    %568 = vmatpush2.msra.mxu0 0.0
    %569 = vmatprep.subr.mxu0 0.0
    %570 = vmatpush2.msra.mxu0 0.0
    %571 = vmatprep.subr.mxu0 0.0
    %572 = vmatpush2.msra.mxu0 0.0
    %573 = vmatprep.subr.mxu0 0.0
    %574 = vmatpush2.msra.mxu0 0.0
    %575 = vmatprep.subr.mxu0 0.0
    %576 = vmatpush2.msra.mxu0 0.0
    %577 = vmatprep.subr.mxu0 0.0
    %578 = vmatpush2.msra.mxu0 0.0
    %579 = vmatprep.subr.mxu0 0.0
    %580 = vmatpush2.msra.mxu0 0.0
    %581 = vmatprep.subr.mxu0 0.0
    %582 = vmatpush2.msra.mxu0 0.0
    %583 = vmatprep.subr.mxu0 0.0
    %584 = vmatpush2.msra.mxu0 0.0
    %585 = vmatprep.mubr.f32.mxu0 0.0
    %586 = vmatmul.mubr.f32.gmra.mxu0 %v144
    %v587 = vpop.f32.mrf.mxu0
    %v588 = vadd.f32 %v516, %v587
    %v589 = vpop.f32.mrf.mxu0
    %590 = vdwg.mxu0
    %v591 = vmax.f32 %v588, 0.0
    %v592 = vsel %vm221, %v591, 0.0
    %v593 = vrot.slane %v592, 4
    %v594 = vadd.f32 %v592, %v593
    %v595 = vrot.slane %v594, 2
    %v596 = vadd.f32 %v594, %v595
    %v597 = vrot.slane %v596, 1
    %v598 = vadd.f32 %v596, %v597
    %v599 = vmul.f32 %v598, 0.5
    %v600 = vmul.f32 %v591, %v591
    %v601 = vsel %vm221, %v600, 0.0
    %v602 = vrot.slane %v601, 4
    %v603 = vadd.f32 %v601, %v602
    %v604 = vrot.slane %v603, 2
    %v605 = vadd.f32 %v603, %v604
    %v606 = vrot.slane %v605, 1
    %v607 = vadd.f32 %v605, %v606
    %v608 = vmul.f32 %v607, 0.5
    %v609 = vmul.f32 %v599, %v599
    %v610 = vsub.f32 %v608, %v609
    %v611 = vsub.f32 %v591, %v599
    %v612 = vadd.f32 %v610, 1e-05
    %v613 = vrsqrt.pop %v612
    %v614 = vmul.f32 %v611, %v613
    %v615 = vld [vmem:[%s8] sm:$0x3]
    %v617 = vsel %vm142, %v615, 0
    %v620 = vsel %vm146, %v614, 0
    %622 = vmatprep.subr.mxu0 0.0
    %623 = vmatpush1.msra.mxu0 0.0
    %624 = vmatprep.subr.mxu0 0.0
    %625 = vmatpush1.msra.mxu0 0.0
    %626 = vmatprep.subr.mxu0 0.0
    %627 = vmatpush1.msra.mxu0 0.0
    %628 = vmatprep.subr.mxu0 0.0
    %629 = vmatpush1.msra.mxu0 0.0
    %630 = vmatprep.subr.mxu0 0.0
    %631 = vmatpush1.msra.mxu0 0.0
    %632 = vmatprep.subr.mxu0 0.0
    %633 = vmatpush1.msra.mxu0 0.0
    %634 = vmatprep.subr.mxu0 0.0
    %635 = vmatpush1.msra.mxu0 0.0
    %636 = vmatprep.subr.mxu0 0.0
    %637 = vmatpush1.msra.mxu0 0.0
    %638 = vmatprep.subr.mxu0 0.0
    %639 = vmatpush1.msra.mxu0 0.0
    %640 = vmatprep.subr.mxu0 0.0
    %641 = vmatpush1.msra.mxu0 0.0
    %642 = vmatprep.subr.mxu0 0.0
    %643 = vmatpush1.msra.mxu0 0.0
    %644 = vmatprep.subr.mxu0 0.0
    %645 = vmatpush1.msra.mxu0 0.0
    %646 = vmatprep.subr.mxu0 0.0
    %647 = vmatpush1.msra.mxu0 0.0
    %648 = vmatprep.subr.mxu0 0.0
    %649 = vmatpush1.msra.mxu0 0.0
    %650 = vmatprep.subr.mxu0 0.0
    %651 = vmatpush1.msra.mxu0 0.0
    %652 = vmatprep.subr.mxu0 0.0
    %653 = vmatpush1.msra.mxu0 %v620
    %654 = vmatprep.subr.mxu0 0.0
    %655 = vmatpush2.msra.mxu0 0.0
    %656 = vmatprep.subr.mxu0 0.0
    %657 = vmatpush2.msra.mxu0 0.0
    %658 = vmatprep.subr.mxu0 0.0
    %659 = vmatpush2.msra.mxu0 0.0
    %660 = vmatprep.subr.mxu0 0.0
    %661 = vmatpush2.msra.mxu0 0.0
    %662 = vmatprep.subr.mxu0 0.0
    %663 = vmatpush2.msra.mxu0 0.0
    %664 = vmatprep.subr.mxu0 0.0
    %665 = vmatpush2.msra.mxu0 0.0
    %666 = vmatprep.subr.mxu0 0.0
    %667 = vmatpush2.msra.mxu0 0.0
    %668 = vmatprep.subr.mxu0 0.0
    %669 = vmatpush2.msra.mxu0 0.0
    %670 = vmatprep.subr.mxu0 0.0
    %671 = vmatpush2.msra.mxu0 0.0
    %672 = vmatprep.subr.mxu0 0.0
    %673 = vmatpush2.msra.mxu0 0.0
    %674 = vmatprep.subr.mxu0 0.0
    %675 = vmatpush2.msra.mxu0 0.0
    %676 = vmatprep.subr.mxu0 0.0
    %677 = vmatpush2.msra.mxu0 0.0
    %678 = vmatprep.subr.mxu0 0.0
    %679 = vmatpush2.msra.mxu0 0.0
    %680 = vmatprep.subr.mxu0 0.0
    %681 = vmatpush2.msra.mxu0 0.0
    %682 = vmatprep.subr.mxu0 0.0
    %683 = vmatpush2.msra.mxu0 0.0
    %684 = vmatprep.subr.mxu0 0.0
    %685 = vmatpush2.msra.mxu0 0.0
    %686 = vmatprep.mubr.f32.mxu0 0.0
    %687 = vmatmul.mubr.f32.gmra.mxu0 %v617
    %v688 = vpop.f32.mrf.mxu0
    %v689 = vadd.f32 0.0, %v688
    %v690 = vpop.f32.mrf.mxu0
    %691 = vdwg.mxu0
    %v692 = vld [vmem:[%s9] sm:$0xff]
    %v693 = vld [vmem:[%s9 + $0x8] sm:$0xff]
    %v694 = vld [vmem:[%s9 + $0x10] sm:$0xff]
    %v695 = vld [vmem:[%s9 + $0x18] sm:$0xff]
    %v696 = vld [vmem:[%s9 + $0x20] sm:$0xff]
    %v697 = vld [vmem:[%s9 + $0x28] sm:$0xff]
    %v698 = vld [vmem:[%s9 + $0x30] sm:$0xff]
    %v699 = vld [vmem:[%s9 + $0x38] sm:$0xff]
    %v700 = vld [vmem:[%s10] sm:$0x1]
    %v702 = vlaneseq
    %v703 = vshrl.u32 %v702, 7
    %v704 = vsub.s32 0, %v703
    %v705 = vrot.slane %v700, %v704
    %v708 = vsel %vm62, %v689, 0
    %710 = vmatprep.subr.mxu0 0.0
    %711 = vmatpush1.msra.mxu0 0.0
    %712 = vmatprep.subr.mxu0 0.0
    %713 = vmatpush1.msra.mxu0 0.0
    %714 = vmatprep.subr.mxu0 0.0
    %715 = vmatpush1.msra.mxu0 0.0
    %716 = vmatprep.subr.mxu0 0.0
    %717 = vmatpush1.msra.mxu0 0.0
    %718 = vmatprep.subr.mxu0 0.0
    %719 = vmatpush1.msra.mxu0 0.0
    %720 = vmatprep.subr.mxu0 0.0
    %721 = vmatpush1.msra.mxu0 0.0
    %722 = vmatprep.subr.mxu0 0.0
    %723 = vmatpush1.msra.mxu0 0.0
    %724 = vmatprep.subr.mxu0 0.0
    %725 = vmatpush1.msra.mxu0 0.0
    %726 = vmatprep.subr.mxu0 0.0
    %727 = vmatpush1.msra.mxu0 %v699
    %728 = vmatprep.subr.mxu0 0.0
    %729 = vmatpush1.msra.mxu0 %v698
    %730 = vmatprep.subr.mxu0 0.0
    %731 = vmatpush1.msra.mxu0 %v697
    %732 = vmatprep.subr.mxu0 0.0
    %733 = vmatpush1.msra.mxu0 %v696
    %734 = vmatprep.subr.mxu0 0.0
    %735 = vmatpush1.msra.mxu0 %v695
    %736 = vmatprep.subr.mxu0 0.0
    %737 = vmatpush1.msra.mxu0 %v694
    %738 = vmatprep.subr.mxu0 0.0
    %739 = vmatpush1.msra.mxu0 %v693
    %740 = vmatprep.subr.mxu0 0.0
    %741 = vmatpush1.msra.mxu0 %v692
    %742 = vmatprep.subr.mxu0 0.0
    %743 = vmatpush2.msra.mxu0 0.0
    %744 = vmatprep.subr.mxu0 0.0
    %745 = vmatpush2.msra.mxu0 0.0
    %746 = vmatprep.subr.mxu0 0.0
    %747 = vmatpush2.msra.mxu0 0.0
    %748 = vmatprep.subr.mxu0 0.0
    %749 = vmatpush2.msra.mxu0 0.0
    %750 = vmatprep.subr.mxu0 0.0
    %751 = vmatpush2.msra.mxu0 0.0
    %752 = vmatprep.subr.mxu0 0.0
    %753 = vmatpush2.msra.mxu0 0.0
    %754 = vmatprep.subr.mxu0 0.0
    %755 = vmatpush2.msra.mxu0 0.0
    %756 = vmatprep.subr.mxu0 0.0
    %757 = vmatpush2.msra.mxu0 0.0
    %758 = vmatprep.subr.mxu0 0.0
    %759 = vmatpush2.msra.mxu0 0.0
    %760 = vmatprep.subr.mxu0 0.0
    %761 = vmatpush2.msra.mxu0 0.0
    %762 = vmatprep.subr.mxu0 0.0
    %763 = vmatpush2.msra.mxu0 0.0
    %764 = vmatprep.subr.mxu0 0.0
    %765 = vmatpush2.msra.mxu0 0.0
    %766 = vmatprep.subr.mxu0 0.0
    %767 = vmatpush2.msra.mxu0 0.0
    %768 = vmatprep.subr.mxu0 0.0
    %769 = vmatpush2.msra.mxu0 0.0
    %770 = vmatprep.subr.mxu0 0.0
    %771 = vmatpush2.msra.mxu0 0.0
    %772 = vmatprep.subr.mxu0 0.0
    %773 = vmatpush2.msra.mxu0 0.0
    %774 = vmatprep.mubr.f32.mxu0 0.0
    %775 = vmatmul.mubr.f32.gmra.mxu0 %v708
    %v776 = vpop.f32.mrf.mxu0
    %v777 = vadd.f32 %v705, %v776
    %v778 = vpop.f32.mrf.mxu0
    %779 = vdwg.mxu0
    %v780 = vmax.f32 %v777, 0.0
    %v781 = vld [vmem:[%s11] sm:$0xff]
    %v782 = vld [vmem:[%s11 + $0x8] sm:$0xff]
    %v783 = vld [vmem:[%s11 + $0x10] sm:$0xff]
    %v784 = vld [vmem:[%s11 + $0x18] sm:$0xff]
    %v785 = vld [vmem:[%s11 + $0x20] sm:$0xff]
    %v786 = vld [vmem:[%s11 + $0x28] sm:$0xff]
    %v787 = vld [vmem:[%s11 + $0x30] sm:$0xff]
    %v788 = vld [vmem:[%s11 + $0x38] sm:$0xff]
    %v789 = vld [vmem:[%s12] sm:$0x1]
    %v791 = vlaneseq
    %v792 = vshrl.u32 %v791, 7
    %v793 = vsub.s32 0, %v792
    %v794 = vrot.slane %v789, %v793
    %v797 = vsel %vm62, %v780, 0
    %799 = vmatprep.subr.mxu0 0.0
    %800 = vmatpush1.msra.mxu0 0.0
    %801 = vmatprep.subr.mxu0 0.0
    %802 = vmatpush1.msra.mxu0 0.0
    %803 = vmatprep.subr.mxu0 0.0
    %804 = vmatpush1.msra.mxu0 0.0
    %805 = vmatprep.subr.mxu0 0.0
    %806 = vmatpush1.msra.mxu0 0.0
    %807 = vmatprep.subr.mxu0 0.0
    %808 = vmatpush1.msra.mxu0 0.0
    %809 = vmatprep.subr.mxu0 0.0
    %810 = vmatpush1.msra.mxu0 0.0
    %811 = vmatprep.subr.mxu0 0.0
    %812 = vmatpush1.msra.mxu0 0.0
    %813 = vmatprep.subr.mxu0 0.0
    %814 = vmatpush1.msra.mxu0 0.0
    %815 = vmatprep.subr.mxu0 0.0
    %816 = vmatpush1.msra.mxu0 %v788
    %817 = vmatprep.subr.mxu0 0.0
    %818 = vmatpush1.msra.mxu0 %v787
    %819 = vmatprep.subr.mxu0 0.0
    %820 = vmatpush1.msra.mxu0 %v786
    %821 = vmatprep.subr.mxu0 0.0
    %822 = vmatpush1.msra.mxu0 %v785
    %823 = vmatprep.subr.mxu0 0.0
    %824 = vmatpush1.msra.mxu0 %v784
    %825 = vmatprep.subr.mxu0 0.0
    %826 = vmatpush1.msra.mxu0 %v783
    %827 = vmatprep.subr.mxu0 0.0
    %828 = vmatpush1.msra.mxu0 %v782
    %829 = vmatprep.subr.mxu0 0.0
    %830 = vmatpush1.msra.mxu0 %v781
    %831 = vmatprep.subr.mxu0 0.0
    %832 = vmatpush2.msra.mxu0 0.0
    %833 = vmatprep.subr.mxu0 0.0
    %834 = vmatpush2.msra.mxu0 0.0
    %835 = vmatprep.subr.mxu0 0.0
    %836 = vmatpush2.msra.mxu0 0.0
    %837 = vmatprep.subr.mxu0 0.0
    %838 = vmatpush2.msra.mxu0 0.0
    %839 = vmatprep.subr.mxu0 0.0
    %840 = vmatpush2.msra.mxu0 0.0
    %841 = vmatprep.subr.mxu0 0.0
    %842 = vmatpush2.msra.mxu0 0.0
    %843 = vmatprep.subr.mxu0 0.0
    %844 = vmatpush2.msra.mxu0 0.0
    %845 = vmatprep.subr.mxu0 0.0
    %846 = vmatpush2.msra.mxu0 0.0
    %847 = vmatprep.subr.mxu0 0.0
    %848 = vmatpush2.msra.mxu0 0.0
    %849 = vmatprep.subr.mxu0 0.0
    %850 = vmatpush2.msra.mxu0 0.0
    %851 = vmatprep.subr.mxu0 0.0
    %852 = vmatpush2.msra.mxu0 0.0
    %853 = vmatprep.subr.mxu0 0.0
    %854 = vmatpush2.msra.mxu0 0.0
    %855 = vmatprep.subr.mxu0 0.0
    %856 = vmatpush2.msra.mxu0 0.0
    %857 = vmatprep.subr.mxu0 0.0
    %858 = vmatpush2.msra.mxu0 0.0
    %859 = vmatprep.subr.mxu0 0.0
    %860 = vmatpush2.msra.mxu0 0.0
    %861 = vmatprep.subr.mxu0 0.0
    %862 = vmatpush2.msra.mxu0 0.0
    %863 = vmatprep.mubr.f32.mxu0 0.0
    %864 = vmatmul.mubr.f32.gmra.mxu0 %v797
    %v865 = vpop.f32.mrf.mxu0
    %v866 = vadd.f32 %v794, %v865
    %v867 = vpop.f32.mrf.mxu0
    %868 = vdwg.mxu0
    %vm869 = vcmask 58368
    %v870 = vsel %vm869, %v866, -inf
    %871 = vmax.xlane.f32.xlu0 %v870
    %v872 = vpop.xlane.xlu0 %871
    %v873 = vsub.f32 %v866, %v872
    %v874 = vmul.f32 %v873, 1.442695
    %v875 = vpow.pop %v874
    %v876 = vsel %vm869, %v875, 0.0
    %877 = vadd.xlane.f32.xlu0 %v876
    %v878 = vpop.xlane.xlu0 %877
    %v879 = vlog2.pop %v878
    %v880 = vmul.f32 %v879, 0.6931472
    %v881 = vsub.f32 %v873, %v880
    %882 = vst.msk [vmem:[#allocation2] sm:$0x3] %vm869, %v881
    // Predicated region
    $region54: #{diffpool_forward.5} parent=1 // pred_check
      _
    $region55: #{diffpool_forward.5} parent=1 // pred_check_branch
      %884 = sbr.rel (0) target = $region57
    $region56: #{diffpool_forward.5} parent=1 // pred_region
      %s886 = ssub.s32 32, 32
      %887 = vsyncadd [#allocation3], %s886
      %s889 = sshll.u32 [#allocation2], 4
      %s890 = int_to_ptr.vmem [resolvable:$true] %s889
      %892 = dma.vmem_to_hbm [thread:$0]  %s890, 32, %s13, [#allocation3]
    $region57: #{diffpool_forward.5} parent=1 // pred_fallthru
      _
    // Predicated region
    $region58: #{diffpool_forward.5} parent=1 // pred_check
      _
    $region59: #{diffpool_forward.5} parent=1 // pred_check_branch
      %894 = sbr.rel (0) target = $region61
    $region60: #{diffpool_forward.5} parent=1 // pred_region
      %895 = dma.done [#allocation3], 32
    $region61: #{diffpool_forward.5} parent=1 // pred_fallthru
      _
    %896 = vsyncpa [#allocation3], 1

// kernel: diffpool_forward.4
$region0: #{diffpool_forward.4}
  #allocation0 [shape = 'u32[]', space=smem, size = 0x4, offset = 0x4, fixed_abs, tag = 'smem constant byte address 0x4 - core index']
  #allocation1 [shape = 'u32[144,128]{1,0:T(1,128)}', space=vmem, size = 0x12000, scoped, tag = 'internal scratch']
  %s0 = inlined_call_operand.vmem [shape: f32[8,64], index: 0, kind: input, shape index: {}]
  %s1 = inlined_call_operand.vmem [shape: f32[8,8], index: 1, kind: input, shape index: {}]
  %s2 = inlined_call_operand.vmem [shape: f32[8,1], index: 2, kind: input, shape index: {}]
  %s3 = inlined_call_operand.vmem [shape: f32[64,64], index: 3, kind: input, shape index: {}]
  %s4 = inlined_call_operand.vmem [shape: f32[1,64], index: 4, kind: input, shape index: {}]
  %s5 = inlined_call_operand.vmem [shape: f32[64,64], index: 5, kind: input, shape index: {}]
  %s6 = inlined_call_operand.vmem [shape: f32[1,64], index: 6, kind: input, shape index: {}]
  %s7 = inlined_call_operand.vmem [shape: f32[64,2], index: 7, kind: input, shape index: {}]
  %s8 = inlined_call_operand.vmem [shape: f32[1,2], index: 8, kind: input, shape index: {}]
  %s9 = inlined_call_operand.vmem [shape: f32[64,64], index: 9, kind: input, shape index: {}]
  %s10 = inlined_call_operand.vmem [shape: f32[1,64], index: 10, kind: input, shape index: {}]
  %s11 = inlined_call_operand.vmem [shape: f32[64,64], index: 11, kind: input, shape index: {}]
  %s12 = inlined_call_operand.vmem [shape: f32[1,64], index: 12, kind: input, shape index: {}]
  %s13 = inlined_call_operand.vmem [shape: f32[64,64], index: 13, kind: input, shape index: {}]
  %s14 = inlined_call_operand.vmem [shape: f32[1,64], index: 14, kind: input, shape index: {}]
  %s15 = inlined_call_operand.vmem [shape: f32[2,64], index: 15, kind: output, shape index: {0}]
  %s16 = inlined_call_operand.vmem [shape: f32[2,2], index: 16, kind: output, shape index: {1}]
  %s17 = inlined_call_operand.hbm [shape: f32[1,1], index: 17, kind: output, shape index: {2}]
  %s18 = inlined_call_operand.hbm [shape: f32[1,1], index: 18, kind: output, shape index: {3}]
  %19 = xla_tuple %s15, %s16, %s17, %s18
  %s20 = sld [smem:[#allocation0]]
  $region94: #{diffpool_forward.4} parent=0
    _
  %s22 = ssub.s32 1, %s20
  %s23 = scalar_select 0, %s22, %s20
  $region1: #{diffpool_forward.4} parent=0
    #allocation2 [shape = 'u8[512]{0}', space=vmem, size = 0x400, scoped, tag = 'output window, operand 2, single buffered']
    #allocation3 [shape = 's32[1]{0}', space=sflag, size = 0x4, scoped, tag = 'scoped memory for diffpool_forward.4']
    #allocation4 [shape = 'u8[512]{0}', space=vmem, size = 0x400, scoped, tag = 'output window, operand 3, single buffered']
    #allocation5 [shape = 's32[1]{0}', space=sflag, size = 0x4, scoped, tag = 'scoped memory for diffpool_forward.4']
    %24 = vsyncpa [#allocation3], 0
    %25 = vsyncpa [#allocation5], 0
    // Predicated region
    $region2: #{diffpool_forward.4} parent=1 // pred_check
      _
    $region3: #{diffpool_forward.4} parent=1 // pred_check_branch
      %27 = sbr.rel (0) target = $region5
    $region4: #{diffpool_forward.4} parent=1 // pred_region
      _
    $region5: #{diffpool_forward.4} parent=1 // pred_fallthru
      _
    // Predicated region
    $region6: #{diffpool_forward.4} parent=1 // pred_check
      _
    $region7: #{diffpool_forward.4} parent=1 // pred_check_branch
      %29 = sbr.rel (0) target = $region9
    $region8: #{diffpool_forward.4} parent=1 // pred_region
      _
    $region9: #{diffpool_forward.4} parent=1 // pred_fallthru
      _
    // Predicated region
    $region10: #{diffpool_forward.4} parent=1 // pred_check
      _
    $region11: #{diffpool_forward.4} parent=1 // pred_check_branch
      %31 = sbr.rel (0) target = $region13
    $region12: #{diffpool_forward.4} parent=1 // pred_region
      _
    $region13: #{diffpool_forward.4} parent=1 // pred_fallthru
      _
    // Predicated region
    $region14: #{diffpool_forward.4} parent=1 // pred_check
      _
    $region15: #{diffpool_forward.4} parent=1 // pred_check_branch
      %33 = sbr.rel (0) target = $region17
    $region16: #{diffpool_forward.4} parent=1 // pred_region
      _
    $region17: #{diffpool_forward.4} parent=1 // pred_fallthru
      _
    // Predicated region
    $region18: #{diffpool_forward.4} parent=1 // pred_check
      _
    $region19: #{diffpool_forward.4} parent=1 // pred_check_branch
      %35 = sbr.rel (0) target = $region21
    $region20: #{diffpool_forward.4} parent=1 // pred_region
      _
    $region21: #{diffpool_forward.4} parent=1 // pred_fallthru
      _
    // Predicated region
    $region22: #{diffpool_forward.4} parent=1 // pred_check
      _
    $region23: #{diffpool_forward.4} parent=1 // pred_check_branch
      %37 = sbr.rel (0) target = $region25
    $region24: #{diffpool_forward.4} parent=1 // pred_region
      _
    $region25: #{diffpool_forward.4} parent=1 // pred_fallthru
      _
    // Predicated region
    $region26: #{diffpool_forward.4} parent=1 // pred_check
      _
    $region27: #{diffpool_forward.4} parent=1 // pred_check_branch
      %39 = sbr.rel (0) target = $region29
    $region28: #{diffpool_forward.4} parent=1 // pred_region
      _
    $region29: #{diffpool_forward.4} parent=1 // pred_fallthru
      _
    // Predicated region
    $region30: #{diffpool_forward.4} parent=1 // pred_check
      _
    $region31: #{diffpool_forward.4} parent=1 // pred_check_branch
      %41 = sbr.rel (0) target = $region33
    $region32: #{diffpool_forward.4} parent=1 // pred_region
      _
    $region33: #{diffpool_forward.4} parent=1 // pred_fallthru
      _
    // Predicated region
    $region34: #{diffpool_forward.4} parent=1 // pred_check
      _
    $region35: #{diffpool_forward.4} parent=1 // pred_check_branch
      %43 = sbr.rel (0) target = $region37
    $region36: #{diffpool_forward.4} parent=1 // pred_region
      _
    $region37: #{diffpool_forward.4} parent=1 // pred_fallthru
      _
    // Predicated region
    $region38: #{diffpool_forward.4} parent=1 // pred_check
      _
    $region39: #{diffpool_forward.4} parent=1 // pred_check_branch
      %45 = sbr.rel (0) target = $region41
    $region40: #{diffpool_forward.4} parent=1 // pred_region
      _
    $region41: #{diffpool_forward.4} parent=1 // pred_fallthru
      _
    // Predicated region
    $region42: #{diffpool_forward.4} parent=1 // pred_check
      _
    $region43: #{diffpool_forward.4} parent=1 // pred_check_branch
      %47 = sbr.rel (0) target = $region45
    $region44: #{diffpool_forward.4} parent=1 // pred_region
      _
    $region45: #{diffpool_forward.4} parent=1 // pred_fallthru
      _
    // Predicated region
    $region46: #{diffpool_forward.4} parent=1 // pred_check
      _
    $region47: #{diffpool_forward.4} parent=1 // pred_check_branch
      %49 = sbr.rel (0) target = $region49
    $region48: #{diffpool_forward.4} parent=1 // pred_region
      _
    $region49: #{diffpool_forward.4} parent=1 // pred_fallthru
      _
    // Predicated region
    $region50: #{diffpool_forward.4} parent=1 // pred_check
      _
    $region51: #{diffpool_forward.4} parent=1 // pred_check_branch
      %51 = sbr.rel (0) target = $region53
    $region52: #{diffpool_forward.4} parent=1 // pred_region
      _
    $region53: #{diffpool_forward.4} parent=1 // pred_fallthru
      _
    // Predicated region
    $region54: #{diffpool_forward.4} parent=1 // pred_check
      _
    $region55: #{diffpool_forward.4} parent=1 // pred_check_branch
      %53 = sbr.rel (0) target = $region57
    $region56: #{diffpool_forward.4} parent=1 // pred_region
      _
    $region57: #{diffpool_forward.4} parent=1 // pred_fallthru
      _
    // Predicated region
    $region58: #{diffpool_forward.4} parent=1 // pred_check
      _
    $region59: #{diffpool_forward.4} parent=1 // pred_check_branch
      %55 = sbr.rel (0) target = $region61
    $region60: #{diffpool_forward.4} parent=1 // pred_region
      _
    $region61: #{diffpool_forward.4} parent=1 // pred_fallthru
      _
    %v56 = vld [vmem:[%s1] sm:$0xff]
    %v57 = vlaneseq
    %v58 = vshrl.u32 %v57, 7
    %v59 = vlaneseq
    %v60 = vand.u32 %v59, 127
    %vm61 = vcmp.eq.s32.totalorder %v58, %v60
    %v62 = vsel %vm61, 1.0, %v56
    %v63 = vld [vmem:[%s2] sm:$0xff]
    %v64 = vld [vmem:[%s0] sm:$0xff]
    %v65 = vld [vmem:[%s3] sm:$0xff]
    %v66 = vld [vmem:[%s3 + $0x8] sm:$0xff]
    %v67 = vld [vmem:[%s3 + $0x10] sm:$0xff]
    %v68 = vld [vmem:[%s3 + $0x18] sm:$0xff]
    %v69 = vld [vmem:[%s3 + $0x20] sm:$0xff]
    %v70 = vld [vmem:[%s3 + $0x28] sm:$0xff]
    %v71 = vld [vmem:[%s3 + $0x30] sm:$0xff]
    %v72 = vld [vmem:[%s3 + $0x38] sm:$0xff]
    %v73 = vld [vmem:[%s4] sm:$0x1]
    %vm74 = vcmask 523264
    %v76 = vsel %vm74, %v64, 0
    %78 = vmatprep.subr.mxu0 0.0
    %79 = vmatpush1.msra.mxu0 0.0
    %80 = vmatprep.subr.mxu0 0.0
    %81 = vmatpush1.msra.mxu0 0.0
    %82 = vmatprep.subr.mxu0 0.0
    %83 = vmatpush1.msra.mxu0 0.0
    %84 = vmatprep.subr.mxu0 0.0
    %85 = vmatpush1.msra.mxu0 0.0
    %86 = vmatprep.subr.mxu0 0.0
    %87 = vmatpush1.msra.mxu0 0.0
    %88 = vmatprep.subr.mxu0 0.0
    %89 = vmatpush1.msra.mxu0 0.0
    %90 = vmatprep.subr.mxu0 0.0
    %91 = vmatpush1.msra.mxu0 0.0
    %92 = vmatprep.subr.mxu0 0.0
    %93 = vmatpush1.msra.mxu0 0.0
    %94 = vmatprep.subr.mxu0 0.0
    %95 = vmatpush1.msra.mxu0 %v72
    %96 = vmatprep.subr.mxu0 0.0
    %97 = vmatpush1.msra.mxu0 %v71
    %98 = vmatprep.subr.mxu0 0.0
    %99 = vmatpush1.msra.mxu0 %v70
    %100 = vmatprep.subr.mxu0 0.0
    %101 = vmatpush1.msra.mxu0 %v69
    %102 = vmatprep.subr.mxu0 0.0
    %103 = vmatpush1.msra.mxu0 %v68
    %104 = vmatprep.subr.mxu0 0.0
    %105 = vmatpush1.msra.mxu0 %v67
    %106 = vmatprep.subr.mxu0 0.0
    %107 = vmatpush1.msra.mxu0 %v66
    %108 = vmatprep.subr.mxu0 0.0
    %109 = vmatpush1.msra.mxu0 %v65
    %110 = vmatprep.subr.mxu0 0.0
    %111 = vmatpush2.msra.mxu0 0.0
    %112 = vmatprep.subr.mxu0 0.0
    %113 = vmatpush2.msra.mxu0 0.0
    %114 = vmatprep.subr.mxu0 0.0
    %115 = vmatpush2.msra.mxu0 0.0
    %116 = vmatprep.subr.mxu0 0.0
    %117 = vmatpush2.msra.mxu0 0.0
    %118 = vmatprep.subr.mxu0 0.0
    %119 = vmatpush2.msra.mxu0 0.0
    %120 = vmatprep.subr.mxu0 0.0
    %121 = vmatpush2.msra.mxu0 0.0
    %122 = vmatprep.subr.mxu0 0.0
    %123 = vmatpush2.msra.mxu0 0.0
    %124 = vmatprep.subr.mxu0 0.0
    %125 = vmatpush2.msra.mxu0 0.0
    %126 = vmatprep.subr.mxu0 0.0
    %127 = vmatpush2.msra.mxu0 0.0
    %128 = vmatprep.subr.mxu0 0.0
    %129 = vmatpush2.msra.mxu0 0.0
    %130 = vmatprep.subr.mxu0 0.0
    %131 = vmatpush2.msra.mxu0 0.0
    %132 = vmatprep.subr.mxu0 0.0
    %133 = vmatpush2.msra.mxu0 0.0
    %134 = vmatprep.subr.mxu0 0.0
    %135 = vmatpush2.msra.mxu0 0.0
    %136 = vmatprep.subr.mxu0 0.0
    %137 = vmatpush2.msra.mxu0 0.0
    %138 = vmatprep.subr.mxu0 0.0
    %139 = vmatpush2.msra.mxu0 0.0
    %140 = vmatprep.subr.mxu0 0.0
    %141 = vmatpush2.msra.mxu0 0.0
    %142 = vmatprep.mubr.f32.mxu0 0.0
    %143 = vmatmul.mubr.f32.gmra.mxu0 %v76
    %v144 = vpop.f32.mrf.mxu0
    %v145 = vadd.f32 0.0, %v144
    %v146 = vpop.f32.mrf.mxu0
    %147 = vdwg.mxu0
    %v149 = vlaneseq
    %v150 = vshrl.u32 %v149, 7
    %v151 = vsub.s32 0, %v150
    %v152 = vrot.slane %v73, %v151
    %vm154 = vcmask 64512
    %v156 = vsel %vm154, %v62, 0
    %158 = vmatprep.subr.mxu0 0.0
    %159 = vmatpush1.msra.mxu0 0.0
    %160 = vmatprep.subr.mxu0 0.0
    %161 = vmatpush1.msra.mxu0 0.0
    %162 = vmatprep.subr.mxu0 0.0
    %163 = vmatpush1.msra.mxu0 0.0
    %164 = vmatprep.subr.mxu0 0.0
    %165 = vmatpush1.msra.mxu0 0.0
    %166 = vmatprep.subr.mxu0 0.0
    %167 = vmatpush1.msra.mxu0 0.0
    %168 = vmatprep.subr.mxu0 0.0
    %169 = vmatpush1.msra.mxu0 0.0
    %170 = vmatprep.subr.mxu0 0.0
    %171 = vmatpush1.msra.mxu0 0.0
    %172 = vmatprep.subr.mxu0 0.0
    %173 = vmatpush1.msra.mxu0 0.0
    %174 = vmatprep.subr.mxu0 0.0
    %175 = vmatpush1.msra.mxu0 0.0
    %176 = vmatprep.subr.mxu0 0.0
    %177 = vmatpush1.msra.mxu0 0.0
    %178 = vmatprep.subr.mxu0 0.0
    %179 = vmatpush1.msra.mxu0 0.0
    %180 = vmatprep.subr.mxu0 0.0
    %181 = vmatpush1.msra.mxu0 0.0
    %182 = vmatprep.subr.mxu0 0.0
    %183 = vmatpush1.msra.mxu0 0.0
    %184 = vmatprep.subr.mxu0 0.0
    %185 = vmatpush1.msra.mxu0 0.0
    %186 = vmatprep.subr.mxu0 0.0
    %187 = vmatpush1.msra.mxu0 0.0
    %188 = vmatprep.subr.mxu0 0.0
    %189 = vmatpush1.msra.mxu0 %v145
    %190 = vmatprep.subr.mxu0 0.0
    %191 = vmatpush2.msra.mxu0 0.0
    %192 = vmatprep.subr.mxu0 0.0
    %193 = vmatpush2.msra.mxu0 0.0
    %194 = vmatprep.subr.mxu0 0.0
    %195 = vmatpush2.msra.mxu0 0.0
    %196 = vmatprep.subr.mxu0 0.0
    %197 = vmatpush2.msra.mxu0 0.0
    %198 = vmatprep.subr.mxu0 0.0
    %199 = vmatpush2.msra.mxu0 0.0
    %200 = vmatprep.subr.mxu0 0.0
    %201 = vmatpush2.msra.mxu0 0.0
    %202 = vmatprep.subr.mxu0 0.0
    %203 = vmatpush2.msra.mxu0 0.0
    %204 = vmatprep.subr.mxu0 0.0
    %205 = vmatpush2.msra.mxu0 0.0
    %206 = vmatprep.subr.mxu0 0.0
    %207 = vmatpush2.msra.mxu0 0.0
    %208 = vmatprep.subr.mxu0 0.0
    %209 = vmatpush2.msra.mxu0 0.0
    %210 = vmatprep.subr.mxu0 0.0
    %211 = vmatpush2.msra.mxu0 0.0
    %212 = vmatprep.subr.mxu0 0.0
    %213 = vmatpush2.msra.mxu0 0.0
    %214 = vmatprep.subr.mxu0 0.0
    %215 = vmatpush2.msra.mxu0 0.0
    %216 = vmatprep.subr.mxu0 0.0
    %217 = vmatpush2.msra.mxu0 0.0
    %218 = vmatprep.subr.mxu0 0.0
    %219 = vmatpush2.msra.mxu0 0.0
    %220 = vmatprep.subr.mxu0 0.0
    %221 = vmatpush2.msra.mxu0 0.0
    %222 = vmatprep.mubr.f32.mxu0 0.0
    %223 = vmatmul.mubr.f32.gmra.mxu0 %v156
    %v224 = vpop.f32.mrf.mxu0
    %v225 = vadd.f32 %v152, %v224
    %v226 = vpop.f32.mrf.mxu0
    %227 = vdwg.mxu0
    %229 = vset.pattern.permute.xlu0 0
    %230 = vperm.xlu0 %229, %v63
    %v231 = vpop.permute.xlu0 %230
    %v233 = vmul.f32 %v225, %v231
    %v234 = vmax.f32 %v233, 0.0
    %v235 = vsel %vm74, %v234, 0.0
    %v236 = vrot.slane %v235, 4
    %v237 = vadd.f32 %v235, %v236
    %v238 = vrot.slane %v237, 2
    %v239 = vadd.f32 %v237, %v238
    %v240 = vrot.slane %v239, 1
    %v241 = vadd.f32 %v239, %v240
    %v242 = vmul.f32 %v241, 0.125
    %v243 = vmul.f32 %v234, %v234
    %v244 = vsel %vm74, %v243, 0.0
    %v245 = vrot.slane %v244, 4
    %v246 = vadd.f32 %v244, %v245
    %v247 = vrot.slane %v246, 2
    %v248 = vadd.f32 %v246, %v247
    %v249 = vrot.slane %v248, 1
    %v250 = vadd.f32 %v248, %v249
    %v251 = vmul.f32 %v250, 0.125
    %v252 = vmul.f32 %v242, %v242
    %v253 = vsub.f32 %v251, %v252
    %v254 = vsub.f32 %v234, %v242
    %v255 = vadd.f32 %v253, 1e-05
    %v256 = vrsqrt.pop %v255
    %v257 = vmul.f32 %v254, %v256
    %v258 = vld [vmem:[%s5] sm:$0xff]
    %v259 = vld [vmem:[%s5 + $0x8] sm:$0xff]
    %v260 = vld [vmem:[%s5 + $0x10] sm:$0xff]
    %v261 = vld [vmem:[%s5 + $0x18] sm:$0xff]
    %v262 = vld [vmem:[%s5 + $0x20] sm:$0xff]
    %v263 = vld [vmem:[%s5 + $0x28] sm:$0xff]
    %v264 = vld [vmem:[%s5 + $0x30] sm:$0xff]
    %v265 = vld [vmem:[%s5 + $0x38] sm:$0xff]
    %v266 = vld [vmem:[%s6] sm:$0x1]
    %v268 = vsel %vm74, %v257, 0
    %270 = vmatprep.subr.mxu0 0.0
    %271 = vmatpush1.msra.mxu0 0.0
    %272 = vmatprep.subr.mxu0 0.0
    %273 = vmatpush1.msra.mxu0 0.0
    %274 = vmatprep.subr.mxu0 0.0
    %275 = vmatpush1.msra.mxu0 0.0
    %276 = vmatprep.subr.mxu0 0.0
    %277 = vmatpush1.msra.mxu0 0.0
    %278 = vmatprep.subr.mxu0 0.0
    %279 = vmatpush1.msra.mxu0 0.0
    %280 = vmatprep.subr.mxu0 0.0
    %281 = vmatpush1.msra.mxu0 0.0
    %282 = vmatprep.subr.mxu0 0.0
    %283 = vmatpush1.msra.mxu0 0.0
    %284 = vmatprep.subr.mxu0 0.0
    %285 = vmatpush1.msra.mxu0 0.0
    %286 = vmatprep.subr.mxu0 0.0
    %287 = vmatpush1.msra.mxu0 %v265
    %288 = vmatprep.subr.mxu0 0.0
    %289 = vmatpush1.msra.mxu0 %v264
    %290 = vmatprep.subr.mxu0 0.0
    %291 = vmatpush1.msra.mxu0 %v263
    %292 = vmatprep.subr.mxu0 0.0
    %293 = vmatpush1.msra.mxu0 %v262
    %294 = vmatprep.subr.mxu0 0.0
    %295 = vmatpush1.msra.mxu0 %v261
    %296 = vmatprep.subr.mxu0 0.0
    %297 = vmatpush1.msra.mxu0 %v260
    %298 = vmatprep.subr.mxu0 0.0
    %299 = vmatpush1.msra.mxu0 %v259
    %300 = vmatprep.subr.mxu0 0.0
    %301 = vmatpush1.msra.mxu0 %v258
    %302 = vmatprep.subr.mxu0 0.0
    %303 = vmatpush2.msra.mxu0 0.0
    %304 = vmatprep.subr.mxu0 0.0
    %305 = vmatpush2.msra.mxu0 0.0
    %306 = vmatprep.subr.mxu0 0.0
    %307 = vmatpush2.msra.mxu0 0.0
    %308 = vmatprep.subr.mxu0 0.0
    %309 = vmatpush2.msra.mxu0 0.0
    %310 = vmatprep.subr.mxu0 0.0
    %311 = vmatpush2.msra.mxu0 0.0
    %312 = vmatprep.subr.mxu0 0.0
    %313 = vmatpush2.msra.mxu0 0.0
    %314 = vmatprep.subr.mxu0 0.0
    %315 = vmatpush2.msra.mxu0 0.0
    %316 = vmatprep.subr.mxu0 0.0
    %317 = vmatpush2.msra.mxu0 0.0
    %318 = vmatprep.subr.mxu0 0.0
    %319 = vmatpush2.msra.mxu0 0.0
    %320 = vmatprep.subr.mxu0 0.0
    %321 = vmatpush2.msra.mxu0 0.0
    %322 = vmatprep.subr.mxu0 0.0
    %323 = vmatpush2.msra.mxu0 0.0
    %324 = vmatprep.subr.mxu0 0.0
    %325 = vmatpush2.msra.mxu0 0.0
    %326 = vmatprep.subr.mxu0 0.0
    %327 = vmatpush2.msra.mxu0 0.0
    %328 = vmatprep.subr.mxu0 0.0
    %329 = vmatpush2.msra.mxu0 0.0
    %330 = vmatprep.subr.mxu0 0.0
    %331 = vmatpush2.msra.mxu0 0.0
    %332 = vmatprep.subr.mxu0 0.0
    %333 = vmatpush2.msra.mxu0 0.0
    %334 = vmatprep.mubr.f32.mxu0 0.0
    %335 = vmatmul.mubr.f32.gmra.mxu0 %v268
    %v336 = vpop.f32.mrf.mxu0
    %v337 = vadd.f32 0.0, %v336
    %v338 = vpop.f32.mrf.mxu0
    %339 = vdwg.mxu0
    %v341 = vlaneseq
    %v342 = vshrl.u32 %v341, 7
    %v343 = vsub.s32 0, %v342
    %v344 = vrot.slane %v266, %v343
    %346 = vmatprep.subr.mxu0 0.0
    %347 = vmatpush1.msra.mxu0 0.0
    %348 = vmatprep.subr.mxu0 0.0
    %349 = vmatpush1.msra.mxu0 0.0
    %350 = vmatprep.subr.mxu0 0.0
    %351 = vmatpush1.msra.mxu0 0.0
    %352 = vmatprep.subr.mxu0 0.0
    %353 = vmatpush1.msra.mxu0 0.0
    %354 = vmatprep.subr.mxu0 0.0
    %355 = vmatpush1.msra.mxu0 0.0
    %356 = vmatprep.subr.mxu0 0.0
    %357 = vmatpush1.msra.mxu0 0.0
    %358 = vmatprep.subr.mxu0 0.0
    %359 = vmatpush1.msra.mxu0 0.0
    %360 = vmatprep.subr.mxu0 0.0
    %361 = vmatpush1.msra.mxu0 0.0
    %362 = vmatprep.subr.mxu0 0.0
    %363 = vmatpush1.msra.mxu0 0.0
    %364 = vmatprep.subr.mxu0 0.0
    %365 = vmatpush1.msra.mxu0 0.0
    %366 = vmatprep.subr.mxu0 0.0
    %367 = vmatpush1.msra.mxu0 0.0
    %368 = vmatprep.subr.mxu0 0.0
    %369 = vmatpush1.msra.mxu0 0.0
    %370 = vmatprep.subr.mxu0 0.0
    %371 = vmatpush1.msra.mxu0 0.0
    %372 = vmatprep.subr.mxu0 0.0
    %373 = vmatpush1.msra.mxu0 0.0
    %374 = vmatprep.subr.mxu0 0.0
    %375 = vmatpush1.msra.mxu0 0.0
    %376 = vmatprep.subr.mxu0 0.0
    %377 = vmatpush1.msra.mxu0 %v337
    %378 = vmatprep.subr.mxu0 0.0
    %379 = vmatpush2.msra.mxu0 0.0
    %380 = vmatprep.subr.mxu0 0.0
    %381 = vmatpush2.msra.mxu0 0.0
    %382 = vmatprep.subr.mxu0 0.0
    %383 = vmatpush2.msra.mxu0 0.0
    %384 = vmatprep.subr.mxu0 0.0
    %385 = vmatpush2.msra.mxu0 0.0
    %386 = vmatprep.subr.mxu0 0.0
    %387 = vmatpush2.msra.mxu0 0.0
    %388 = vmatprep.subr.mxu0 0.0
    %389 = vmatpush2.msra.mxu0 0.0
    %390 = vmatprep.subr.mxu0 0.0
    %391 = vmatpush2.msra.mxu0 0.0
    %392 = vmatprep.subr.mxu0 0.0
    %393 = vmatpush2.msra.mxu0 0.0
    %394 = vmatprep.subr.mxu0 0.0
    %395 = vmatpush2.msra.mxu0 0.0
    %396 = vmatprep.subr.mxu0 0.0
    %397 = vmatpush2.msra.mxu0 0.0
    %398 = vmatprep.subr.mxu0 0.0
    %399 = vmatpush2.msra.mxu0 0.0
    %400 = vmatprep.subr.mxu0 0.0
    %401 = vmatpush2.msra.mxu0 0.0
    %402 = vmatprep.subr.mxu0 0.0
    %403 = vmatpush2.msra.mxu0 0.0
    %404 = vmatprep.subr.mxu0 0.0
    %405 = vmatpush2.msra.mxu0 0.0
    %406 = vmatprep.subr.mxu0 0.0
    %407 = vmatpush2.msra.mxu0 0.0
    %408 = vmatprep.subr.mxu0 0.0
    %409 = vmatpush2.msra.mxu0 0.0
    %410 = vmatprep.mubr.f32.mxu0 0.0
    %411 = vmatmul.mubr.f32.gmra.mxu0 %v156
    %v412 = vpop.f32.mrf.mxu0
    %v413 = vadd.f32 %v344, %v412
    %v414 = vpop.f32.mrf.mxu0
    %415 = vdwg.mxu0
    %v416 = vmul.f32 %v413, %v231
    %v417 = vmax.f32 %v416, 0.0
    %v418 = vsel %vm74, %v417, 0.0
    %v419 = vrot.slane %v418, 4
    %v420 = vadd.f32 %v418, %v419
    %v421 = vrot.slane %v420, 2
    %v422 = vadd.f32 %v420, %v421
    %v423 = vrot.slane %v422, 1
    %v424 = vadd.f32 %v422, %v423
    %v425 = vmul.f32 %v424, 0.125
    %v426 = vmul.f32 %v417, %v417
    %v427 = vsel %vm74, %v426, 0.0
    %v428 = vrot.slane %v427, 4
    %v429 = vadd.f32 %v427, %v428
    %v430 = vrot.slane %v429, 2
    %v431 = vadd.f32 %v429, %v430
    %v432 = vrot.slane %v431, 1
    %v433 = vadd.f32 %v431, %v432
    %v434 = vmul.f32 %v433, 0.125
    %v435 = vmul.f32 %v425, %v425
    %v436 = vsub.f32 %v434, %v435
    %v437 = vsub.f32 %v417, %v425
    %v438 = vadd.f32 %v436, 1e-05
    %v439 = vrsqrt.pop %v438
    %v440 = vmul.f32 %v437, %v439
    %v441 = vld [vmem:[%s7] sm:$0xff]
    %v442 = vld [vmem:[%s7 + $0x8] sm:$0xff]
    %v443 = vld [vmem:[%s7 + $0x10] sm:$0xff]
    %v444 = vld [vmem:[%s7 + $0x18] sm:$0xff]
    %v445 = vld [vmem:[%s7 + $0x20] sm:$0xff]
    %v446 = vld [vmem:[%s7 + $0x28] sm:$0xff]
    %v447 = vld [vmem:[%s7 + $0x30] sm:$0xff]
    %v448 = vld [vmem:[%s7 + $0x38] sm:$0xff]
    %v449 = vld [vmem:[%s8] sm:$0x1]
    %v451 = vsel %vm74, %v440, 0
    %453 = vmatprep.subr.mxu0 0.0
    %454 = vmatpush1.msra.mxu0 0.0
    %455 = vmatprep.subr.mxu0 0.0
    %456 = vmatpush1.msra.mxu0 0.0
    %457 = vmatprep.subr.mxu0 0.0
    %458 = vmatpush1.msra.mxu0 0.0
    %459 = vmatprep.subr.mxu0 0.0
    %460 = vmatpush1.msra.mxu0 0.0
    %461 = vmatprep.subr.mxu0 0.0
    %462 = vmatpush1.msra.mxu0 0.0
    %463 = vmatprep.subr.mxu0 0.0
    %464 = vmatpush1.msra.mxu0 0.0
    %465 = vmatprep.subr.mxu0 0.0
    %466 = vmatpush1.msra.mxu0 0.0
    %467 = vmatprep.subr.mxu0 0.0
    %468 = vmatpush1.msra.mxu0 0.0
    %469 = vmatprep.subr.mxu0 0.0
    %470 = vmatpush1.msra.mxu0 %v448
    %471 = vmatprep.subr.mxu0 0.0
    %472 = vmatpush1.msra.mxu0 %v447
    %473 = vmatprep.subr.mxu0 0.0
    %474 = vmatpush1.msra.mxu0 %v446
    %475 = vmatprep.subr.mxu0 0.0
    %476 = vmatpush1.msra.mxu0 %v445
    %477 = vmatprep.subr.mxu0 0.0
    %478 = vmatpush1.msra.mxu0 %v444
    %479 = vmatprep.subr.mxu0 0.0
    %480 = vmatpush1.msra.mxu0 %v443
    %481 = vmatprep.subr.mxu0 0.0
    %482 = vmatpush1.msra.mxu0 %v442
    %483 = vmatprep.subr.mxu0 0.0
    %484 = vmatpush1.msra.mxu0 %v441
    %485 = vmatprep.subr.mxu0 0.0
    %486 = vmatpush2.msra.mxu0 0.0
    %487 = vmatprep.subr.mxu0 0.0
    %488 = vmatpush2.msra.mxu0 0.0
    %489 = vmatprep.subr.mxu0 0.0
    %490 = vmatpush2.msra.mxu0 0.0
    %491 = vmatprep.subr.mxu0 0.0
    %492 = vmatpush2.msra.mxu0 0.0
    %493 = vmatprep.subr.mxu0 0.0
    %494 = vmatpush2.msra.mxu0 0.0
    %495 = vmatprep.subr.mxu0 0.0
    %496 = vmatpush2.msra.mxu0 0.0
    %497 = vmatprep.subr.mxu0 0.0
    %498 = vmatpush2.msra.mxu0 0.0
    %499 = vmatprep.subr.mxu0 0.0
    %500 = vmatpush2.msra.mxu0 0.0
    %501 = vmatprep.subr.mxu0 0.0
    %502 = vmatpush2.msra.mxu0 0.0
    %503 = vmatprep.subr.mxu0 0.0
    %504 = vmatpush2.msra.mxu0 0.0
    %505 = vmatprep.subr.mxu0 0.0
    %506 = vmatpush2.msra.mxu0 0.0
    %507 = vmatprep.subr.mxu0 0.0
    %508 = vmatpush2.msra.mxu0 0.0
    %509 = vmatprep.subr.mxu0 0.0
    %510 = vmatpush2.msra.mxu0 0.0
    %511 = vmatprep.subr.mxu0 0.0
    %512 = vmatpush2.msra.mxu0 0.0
    %513 = vmatprep.subr.mxu0 0.0
    %514 = vmatpush2.msra.mxu0 0.0
    %515 = vmatprep.subr.mxu0 0.0
    %516 = vmatpush2.msra.mxu0 0.0
    %517 = vmatprep.mubr.f32.mxu0 0.0
    %518 = vmatmul.mubr.f32.gmra.mxu0 %v451
    %v519 = vpop.f32.mrf.mxu0
    %v520 = vadd.f32 0.0, %v519
    %v521 = vpop.f32.mrf.mxu0
    %522 = vdwg.mxu0
    %v524 = vlaneseq
    %v525 = vshrl.u32 %v524, 7
    %v526 = vsub.s32 0, %v525
    %v527 = vrot.slane %v449, %v526
    %529 = vmatprep.subr.mxu0 0.0
    %530 = vmatpush1.msra.mxu0 0.0
    %531 = vmatprep.subr.mxu0 0.0
    %532 = vmatpush1.msra.mxu0 0.0
    %533 = vmatprep.subr.mxu0 0.0
    %534 = vmatpush1.msra.mxu0 0.0
    %535 = vmatprep.subr.mxu0 0.0
    %536 = vmatpush1.msra.mxu0 0.0
    %537 = vmatprep.subr.mxu0 0.0
    %538 = vmatpush1.msra.mxu0 0.0
    %539 = vmatprep.subr.mxu0 0.0
    %540 = vmatpush1.msra.mxu0 0.0
    %541 = vmatprep.subr.mxu0 0.0
    %542 = vmatpush1.msra.mxu0 0.0
    %543 = vmatprep.subr.mxu0 0.0
    %544 = vmatpush1.msra.mxu0 0.0
    %545 = vmatprep.subr.mxu0 0.0
    %546 = vmatpush1.msra.mxu0 0.0
    %547 = vmatprep.subr.mxu0 0.0
    %548 = vmatpush1.msra.mxu0 0.0
    %549 = vmatprep.subr.mxu0 0.0
    %550 = vmatpush1.msra.mxu0 0.0
    %551 = vmatprep.subr.mxu0 0.0
    %552 = vmatpush1.msra.mxu0 0.0
    %553 = vmatprep.subr.mxu0 0.0
    %554 = vmatpush1.msra.mxu0 0.0
    %555 = vmatprep.subr.mxu0 0.0
    %556 = vmatpush1.msra.mxu0 0.0
    %557 = vmatprep.subr.mxu0 0.0
    %558 = vmatpush1.msra.mxu0 0.0
    %559 = vmatprep.subr.mxu0 0.0
    %560 = vmatpush1.msra.mxu0 %v520
    %561 = vmatprep.subr.mxu0 0.0
    %562 = vmatpush2.msra.mxu0 0.0
    %563 = vmatprep.subr.mxu0 0.0
    %564 = vmatpush2.msra.mxu0 0.0
    %565 = vmatprep.subr.mxu0 0.0
    %566 = vmatpush2.msra.mxu0 0.0
    %567 = vmatprep.subr.mxu0 0.0
    %568 = vmatpush2.msra.mxu0 0.0
    %569 = vmatprep.subr.mxu0 0.0
    %570 = vmatpush2.msra.mxu0 0.0
    %571 = vmatprep.subr.mxu0 0.0
    %572 = vmatpush2.msra.mxu0 0.0
    %573 = vmatprep.subr.mxu0 0.0
    %574 = vmatpush2.msra.mxu0 0.0
    %575 = vmatprep.subr.mxu0 0.0
    %576 = vmatpush2.msra.mxu0 0.0
    %577 = vmatprep.subr.mxu0 0.0
    %578 = vmatpush2.msra.mxu0 0.0
    %579 = vmatprep.subr.mxu0 0.0
    %580 = vmatpush2.msra.mxu0 0.0
    %581 = vmatprep.subr.mxu0 0.0
    %582 = vmatpush2.msra.mxu0 0.0
    %583 = vmatprep.subr.mxu0 0.0
    %584 = vmatpush2.msra.mxu0 0.0
    %585 = vmatprep.subr.mxu0 0.0
    %586 = vmatpush2.msra.mxu0 0.0
    %587 = vmatprep.subr.mxu0 0.0
    %588 = vmatpush2.msra.mxu0 0.0
    %589 = vmatprep.subr.mxu0 0.0
    %590 = vmatpush2.msra.mxu0 0.0
    %591 = vmatprep.subr.mxu0 0.0
    %592 = vmatpush2.msra.mxu0 0.0
    %593 = vmatprep.mubr.f32.mxu0 0.0
    %594 = vmatmul.mubr.f32.gmra.mxu0 %v156
    %v595 = vpop.f32.mrf.mxu0
    %v596 = vadd.f32 %v527, %v595
    %v597 = vpop.f32.mrf.mxu0
    %598 = vdwg.mxu0
    %v599 = vmul.f32 %v596, %v231
    %v600 = vmax.f32 %v599, 0.0
    %vm601 = vcmask 15360
    %v602 = vsel %vm601, %v600, 0.0
    %v603 = vrot.slane %v602, 4
    %v604 = vadd.f32 %v602, %v603
    %v605 = vrot.slane %v604, 2
    %v606 = vadd.f32 %v604, %v605
    %v607 = vrot.slane %v606, 1
    %v608 = vadd.f32 %v606, %v607
    %v609 = vmul.f32 %v608, 0.125
    %v610 = vmul.f32 %v600, %v600
    %v611 = vsel %vm601, %v610, 0.0
    %v612 = vrot.slane %v611, 4
    %v613 = vadd.f32 %v611, %v612
    %v614 = vrot.slane %v613, 2
    %v615 = vadd.f32 %v613, %v614
    %v616 = vrot.slane %v615, 1
    %v617 = vadd.f32 %v615, %v616
    %v618 = vmul.f32 %v617, 0.125
    %v619 = vmul.f32 %v609, %v609
    %v620 = vsub.f32 %v618, %v619
    %v621 = vsub.f32 %v600, %v609
    %v622 = vadd.f32 %v620, 1e-05
    %v623 = vrsqrt.pop %v622
    %v624 = vmul.f32 %v621, %v623
    %v625 = vld [vmem:[%s9] sm:$0xff]
    %v626 = vld [vmem:[%s9 + $0x8] sm:$0xff]
    %v627 = vld [vmem:[%s9 + $0x10] sm:$0xff]
    %v628 = vld [vmem:[%s9 + $0x18] sm:$0xff]
    %v629 = vld [vmem:[%s9 + $0x20] sm:$0xff]
    %v630 = vld [vmem:[%s9 + $0x28] sm:$0xff]
    %v631 = vld [vmem:[%s9 + $0x30] sm:$0xff]
    %v632 = vld [vmem:[%s9 + $0x38] sm:$0xff]
    %v633 = vld [vmem:[%s10] sm:$0x1]
    %634 = vmatprep.subr.mxu0 0.0
    %635 = vmatpush1.msra.mxu0 0.0
    %636 = vmatprep.subr.mxu0 0.0
    %637 = vmatpush1.msra.mxu0 0.0
    %638 = vmatprep.subr.mxu0 0.0
    %639 = vmatpush1.msra.mxu0 0.0
    %640 = vmatprep.subr.mxu0 0.0
    %641 = vmatpush1.msra.mxu0 0.0
    %642 = vmatprep.subr.mxu0 0.0
    %643 = vmatpush1.msra.mxu0 0.0
    %644 = vmatprep.subr.mxu0 0.0
    %645 = vmatpush1.msra.mxu0 0.0
    %646 = vmatprep.subr.mxu0 0.0
    %647 = vmatpush1.msra.mxu0 0.0
    %648 = vmatprep.subr.mxu0 0.0
    %649 = vmatpush1.msra.mxu0 0.0
    %650 = vmatprep.subr.mxu0 0.0
    %651 = vmatpush1.msra.mxu0 %v632
    %652 = vmatprep.subr.mxu0 0.0
    %653 = vmatpush1.msra.mxu0 %v631
    %654 = vmatprep.subr.mxu0 0.0
    %655 = vmatpush1.msra.mxu0 %v630
    %656 = vmatprep.subr.mxu0 0.0
    %657 = vmatpush1.msra.mxu0 %v629
    %658 = vmatprep.subr.mxu0 0.0
    %659 = vmatpush1.msra.mxu0 %v628
    %660 = vmatprep.subr.mxu0 0.0
    %661 = vmatpush1.msra.mxu0 %v627
    %662 = vmatprep.subr.mxu0 0.0
    %663 = vmatpush1.msra.mxu0 %v626
    %664 = vmatprep.subr.mxu0 0.0
    %665 = vmatpush1.msra.mxu0 %v625
    %666 = vmatprep.subr.mxu0 0.0
    %667 = vmatpush2.msra.mxu0 0.0
    %668 = vmatprep.subr.mxu0 0.0
    %669 = vmatpush2.msra.mxu0 0.0
    %670 = vmatprep.subr.mxu0 0.0
    %671 = vmatpush2.msra.mxu0 0.0
    %672 = vmatprep.subr.mxu0 0.0
    %673 = vmatpush2.msra.mxu0 0.0
    %674 = vmatprep.subr.mxu0 0.0
    %675 = vmatpush2.msra.mxu0 0.0
    %676 = vmatprep.subr.mxu0 0.0
    %677 = vmatpush2.msra.mxu0 0.0
    %678 = vmatprep.subr.mxu0 0.0
    %679 = vmatpush2.msra.mxu0 0.0
    %680 = vmatprep.subr.mxu0 0.0
    %681 = vmatpush2.msra.mxu0 0.0
    %682 = vmatprep.subr.mxu0 0.0
    %683 = vmatpush2.msra.mxu0 0.0
    %684 = vmatprep.subr.mxu0 0.0
    %685 = vmatpush2.msra.mxu0 0.0
    %686 = vmatprep.subr.mxu0 0.0
    %687 = vmatpush2.msra.mxu0 0.0
    %688 = vmatprep.subr.mxu0 0.0
    %689 = vmatpush2.msra.mxu0 0.0
    %690 = vmatprep.subr.mxu0 0.0
    %691 = vmatpush2.msra.mxu0 0.0
    %692 = vmatprep.subr.mxu0 0.0
    %693 = vmatpush2.msra.mxu0 0.0
    %694 = vmatprep.subr.mxu0 0.0
    %695 = vmatpush2.msra.mxu0 0.0
    %696 = vmatprep.subr.mxu0 0.0
    %697 = vmatpush2.msra.mxu0 0.0
    %698 = vmatprep.mubr.f32.mxu0 0.0
    %699 = vmatmul.mubr.f32.gmra.mxu0 %v76
    %v700 = vpop.f32.mrf.mxu0
    %v701 = vadd.f32 0.0, %v700
    %v702 = vpop.f32.mrf.mxu0
    %703 = vdwg.mxu0
    %v705 = vlaneseq
    %v706 = vshrl.u32 %v705, 7
    %v707 = vsub.s32 0, %v706
    %v708 = vrot.slane %v633, %v707
    %710 = vmatprep.subr.mxu0 0.0
    %711 = vmatpush1.msra.mxu0 0.0
    %712 = vmatprep.subr.mxu0 0.0
    %713 = vmatpush1.msra.mxu0 0.0
    %714 = vmatprep.subr.mxu0 0.0
    %715 = vmatpush1.msra.mxu0 0.0
    %716 = vmatprep.subr.mxu0 0.0
    %717 = vmatpush1.msra.mxu0 0.0
    %718 = vmatprep.subr.mxu0 0.0
    %719 = vmatpush1.msra.mxu0 0.0
    %720 = vmatprep.subr.mxu0 0.0
    %721 = vmatpush1.msra.mxu0 0.0
    %722 = vmatprep.subr.mxu0 0.0
    %723 = vmatpush1.msra.mxu0 0.0
    %724 = vmatprep.subr.mxu0 0.0
    %725 = vmatpush1.msra.mxu0 0.0
    %726 = vmatprep.subr.mxu0 0.0
    %727 = vmatpush1.msra.mxu0 0.0
    %728 = vmatprep.subr.mxu0 0.0
    %729 = vmatpush1.msra.mxu0 0.0
    %730 = vmatprep.subr.mxu0 0.0
    %731 = vmatpush1.msra.mxu0 0.0
    %732 = vmatprep.subr.mxu0 0.0
    %733 = vmatpush1.msra.mxu0 0.0
    %734 = vmatprep.subr.mxu0 0.0
    %735 = vmatpush1.msra.mxu0 0.0
    %736 = vmatprep.subr.mxu0 0.0
    %737 = vmatpush1.msra.mxu0 0.0
    %738 = vmatprep.subr.mxu0 0.0
    %739 = vmatpush1.msra.mxu0 0.0
    %740 = vmatprep.subr.mxu0 0.0
    %741 = vmatpush1.msra.mxu0 %v701
    %742 = vmatprep.subr.mxu0 0.0
    %743 = vmatpush2.msra.mxu0 0.0
    %744 = vmatprep.subr.mxu0 0.0
    %745 = vmatpush2.msra.mxu0 0.0
    %746 = vmatprep.subr.mxu0 0.0
    %747 = vmatpush2.msra.mxu0 0.0
    %748 = vmatprep.subr.mxu0 0.0
    %749 = vmatpush2.msra.mxu0 0.0
    %750 = vmatprep.subr.mxu0 0.0
    %751 = vmatpush2.msra.mxu0 0.0
    %752 = vmatprep.subr.mxu0 0.0
    %753 = vmatpush2.msra.mxu0 0.0
    %754 = vmatprep.subr.mxu0 0.0
    %755 = vmatpush2.msra.mxu0 0.0
    %756 = vmatprep.subr.mxu0 0.0
    %757 = vmatpush2.msra.mxu0 0.0
    %758 = vmatprep.subr.mxu0 0.0
    %759 = vmatpush2.msra.mxu0 0.0
    %760 = vmatprep.subr.mxu0 0.0
    %761 = vmatpush2.msra.mxu0 0.0
    %762 = vmatprep.subr.mxu0 0.0
    %763 = vmatpush2.msra.mxu0 0.0
    %764 = vmatprep.subr.mxu0 0.0
    %765 = vmatpush2.msra.mxu0 0.0
    %766 = vmatprep.subr.mxu0 0.0
    %767 = vmatpush2.msra.mxu0 0.0
    %768 = vmatprep.subr.mxu0 0.0
    %769 = vmatpush2.msra.mxu0 0.0
    %770 = vmatprep.subr.mxu0 0.0
    %771 = vmatpush2.msra.mxu0 0.0
    %772 = vmatprep.subr.mxu0 0.0
    %773 = vmatpush2.msra.mxu0 0.0
    %774 = vmatprep.mubr.f32.mxu0 0.0
    %775 = vmatmul.mubr.f32.gmra.mxu0 %v156
    %v776 = vpop.f32.mrf.mxu0
    %v777 = vadd.f32 %v708, %v776
    %v778 = vpop.f32.mrf.mxu0
    %779 = vdwg.mxu0
    %v780 = vmul.f32 %v777, %v231
    %v781 = vmax.f32 %v780, 0.0
    %v782 = vsel %vm74, %v781, 0.0
    %v783 = vrot.slane %v782, 4
    %v784 = vadd.f32 %v782, %v783
    %v785 = vrot.slane %v784, 2
    %v786 = vadd.f32 %v784, %v785
    %v787 = vrot.slane %v786, 1
    %v788 = vadd.f32 %v786, %v787
    %v789 = vmul.f32 %v788, 0.125
    %v790 = vmul.f32 %v781, %v781
    %v791 = vsel %vm74, %v790, 0.0
    %v792 = vrot.slane %v791, 4
    %v793 = vadd.f32 %v791, %v792
    %v794 = vrot.slane %v793, 2
    %v795 = vadd.f32 %v793, %v794
    %v796 = vrot.slane %v795, 1
    %v797 = vadd.f32 %v795, %v796
    %v798 = vmul.f32 %v797, 0.125
    %v799 = vmul.f32 %v789, %v789
    %v800 = vsub.f32 %v798, %v799
    %v801 = vsub.f32 %v781, %v789
    %v802 = vadd.f32 %v800, 1e-05
    %v803 = vrsqrt.pop %v802
    %v804 = vmul.f32 %v801, %v803
    %v805 = vld [vmem:[%s11] sm:$0xff]
    %v806 = vld [vmem:[%s11 + $0x8] sm:$0xff]
    %v807 = vld [vmem:[%s11 + $0x10] sm:$0xff]
    %v808 = vld [vmem:[%s11 + $0x18] sm:$0xff]
    %v809 = vld [vmem:[%s11 + $0x20] sm:$0xff]
    %v810 = vld [vmem:[%s11 + $0x28] sm:$0xff]
    %v811 = vld [vmem:[%s11 + $0x30] sm:$0xff]
    %v812 = vld [vmem:[%s11 + $0x38] sm:$0xff]
    %v813 = vld [vmem:[%s12] sm:$0x1]
    %v815 = vsel %vm74, %v804, 0
    %817 = vmatprep.subr.mxu0 0.0
    %818 = vmatpush1.msra.mxu0 0.0
    %819 = vmatprep.subr.mxu0 0.0
    %820 = vmatpush1.msra.mxu0 0.0
    %821 = vmatprep.subr.mxu0 0.0
    %822 = vmatpush1.msra.mxu0 0.0
    %823 = vmatprep.subr.mxu0 0.0
    %824 = vmatpush1.msra.mxu0 0.0
    %825 = vmatprep.subr.mxu0 0.0
    %826 = vmatpush1.msra.mxu0 0.0
    %827 = vmatprep.subr.mxu0 0.0
    %828 = vmatpush1.msra.mxu0 0.0
    %829 = vmatprep.subr.mxu0 0.0
    %830 = vmatpush1.msra.mxu0 0.0
    %831 = vmatprep.subr.mxu0 0.0
    %832 = vmatpush1.msra.mxu0 0.0
    %833 = vmatprep.subr.mxu0 0.0
    %834 = vmatpush1.msra.mxu0 %v812
    %835 = vmatprep.subr.mxu0 0.0
    %836 = vmatpush1.msra.mxu0 %v811
    %837 = vmatprep.subr.mxu0 0.0
    %838 = vmatpush1.msra.mxu0 %v810
    %839 = vmatprep.subr.mxu0 0.0
    %840 = vmatpush1.msra.mxu0 %v809
    %841 = vmatprep.subr.mxu0 0.0
    %842 = vmatpush1.msra.mxu0 %v808
    %843 = vmatprep.subr.mxu0 0.0
    %844 = vmatpush1.msra.mxu0 %v807
    %845 = vmatprep.subr.mxu0 0.0
    %846 = vmatpush1.msra.mxu0 %v806
    %847 = vmatprep.subr.mxu0 0.0
    %848 = vmatpush1.msra.mxu0 %v805
    %849 = vmatprep.subr.mxu0 0.0
    %850 = vmatpush2.msra.mxu0 0.0
    %851 = vmatprep.subr.mxu0 0.0
    %852 = vmatpush2.msra.mxu0 0.0
    %853 = vmatprep.subr.mxu0 0.0
    %854 = vmatpush2.msra.mxu0 0.0
    %855 = vmatprep.subr.mxu0 0.0
    %856 = vmatpush2.msra.mxu0 0.0
    %857 = vmatprep.subr.mxu0 0.0
    %858 = vmatpush2.msra.mxu0 0.0
    %859 = vmatprep.subr.mxu0 0.0
    %860 = vmatpush2.msra.mxu0 0.0
    %861 = vmatprep.subr.mxu0 0.0
    %862 = vmatpush2.msra.mxu0 0.0
    %863 = vmatprep.subr.mxu0 0.0
    %864 = vmatpush2.msra.mxu0 0.0
    %865 = vmatprep.subr.mxu0 0.0
    %866 = vmatpush2.msra.mxu0 0.0
    %867 = vmatprep.subr.mxu0 0.0
    %868 = vmatpush2.msra.mxu0 0.0
    %869 = vmatprep.subr.mxu0 0.0
    %870 = vmatpush2.msra.mxu0 0.0
    %871 = vmatprep.subr.mxu0 0.0
    %872 = vmatpush2.msra.mxu0 0.0
    %873 = vmatprep.subr.mxu0 0.0
    %874 = vmatpush2.msra.mxu0 0.0
    %875 = vmatprep.subr.mxu0 0.0
    %876 = vmatpush2.msra.mxu0 0.0
    %877 = vmatprep.subr.mxu0 0.0
    %878 = vmatpush2.msra.mxu0 0.0
    %879 = vmatprep.subr.mxu0 0.0
    %880 = vmatpush2.msra.mxu0 0.0
    %881 = vmatprep.mubr.f32.mxu0 0.0
    %882 = vmatmul.mubr.f32.gmra.mxu0 %v815
    %v883 = vpop.f32.mrf.mxu0
    %v884 = vadd.f32 0.0, %v883
    %v885 = vpop.f32.mrf.mxu0
    %886 = vdwg.mxu0
    %v888 = vlaneseq
    %v889 = vshrl.u32 %v888, 7
    %v890 = vsub.s32 0, %v889
    %v891 = vrot.slane %v813, %v890
    %893 = vmatprep.subr.mxu0 0.0
    %894 = vmatpush1.msra.mxu0 0.0
    %895 = vmatprep.subr.mxu0 0.0
    %896 = vmatpush1.msra.mxu0 0.0
    %897 = vmatprep.subr.mxu0 0.0
    %898 = vmatpush1.msra.mxu0 0.0
    %899 = vmatprep.subr.mxu0 0.0
    %900 = vmatpush1.msra.mxu0 0.0
    %901 = vmatprep.subr.mxu0 0.0
    %902 = vmatpush1.msra.mxu0 0.0
    %903 = vmatprep.subr.mxu0 0.0
    %904 = vmatpush1.msra.mxu0 0.0
    %905 = vmatprep.subr.mxu0 0.0
    %906 = vmatpush1.msra.mxu0 0.0
    %907 = vmatprep.subr.mxu0 0.0
    %908 = vmatpush1.msra.mxu0 0.0
    %909 = vmatprep.subr.mxu0 0.0
    %910 = vmatpush1.msra.mxu0 0.0
    %911 = vmatprep.subr.mxu0 0.0
    %912 = vmatpush1.msra.mxu0 0.0
    %913 = vmatprep.subr.mxu0 0.0
    %914 = vmatpush1.msra.mxu0 0.0
    %915 = vmatprep.subr.mxu0 0.0
    %916 = vmatpush1.msra.mxu0 0.0
    %917 = vmatprep.subr.mxu0 0.0
    %918 = vmatpush1.msra.mxu0 0.0
    %919 = vmatprep.subr.mxu0 0.0
    %920 = vmatpush1.msra.mxu0 0.0
    %921 = vmatprep.subr.mxu0 0.0
    %922 = vmatpush1.msra.mxu0 0.0
    %923 = vmatprep.subr.mxu0 0.0
    %924 = vmatpush1.msra.mxu0 %v884
    %925 = vmatprep.subr.mxu0 0.0
    %926 = vmatpush2.msra.mxu0 0.0
    %927 = vmatprep.subr.mxu0 0.0
    %928 = vmatpush2.msra.mxu0 0.0
    %929 = vmatprep.subr.mxu0 0.0
    %930 = vmatpush2.msra.mxu0 0.0
    %931 = vmatprep.subr.mxu0 0.0
    %932 = vmatpush2.msra.mxu0 0.0
    %933 = vmatprep.subr.mxu0 0.0
    %934 = vmatpush2.msra.mxu0 0.0
    %935 = vmatprep.subr.mxu0 0.0
    %936 = vmatpush2.msra.mxu0 0.0
    %937 = vmatprep.subr.mxu0 0.0
    %938 = vmatpush2.msra.mxu0 0.0
    %939 = vmatprep.subr.mxu0 0.0
    %940 = vmatpush2.msra.mxu0 0.0
    %941 = vmatprep.subr.mxu0 0.0
    %942 = vmatpush2.msra.mxu0 0.0
    %943 = vmatprep.subr.mxu0 0.0
    %944 = vmatpush2.msra.mxu0 0.0
    %945 = vmatprep.subr.mxu0 0.0
    %946 = vmatpush2.msra.mxu0 0.0
    %947 = vmatprep.subr.mxu0 0.0
    %948 = vmatpush2.msra.mxu0 0.0
    %949 = vmatprep.subr.mxu0 0.0
    %950 = vmatpush2.msra.mxu0 0.0
    %951 = vmatprep.subr.mxu0 0.0
    %952 = vmatpush2.msra.mxu0 0.0
    %953 = vmatprep.subr.mxu0 0.0
    %954 = vmatpush2.msra.mxu0 0.0
    %955 = vmatprep.subr.mxu0 0.0
    %956 = vmatpush2.msra.mxu0 0.0
    %957 = vmatprep.mubr.f32.mxu0 0.0
    %958 = vmatmul.mubr.f32.gmra.mxu0 %v156
    %v959 = vpop.f32.mrf.mxu0
    %v960 = vadd.f32 %v891, %v959
    %v961 = vpop.f32.mrf.mxu0
    %962 = vdwg.mxu0
    %v963 = vmul.f32 %v960, %v231
    %v964 = vmax.f32 %v963, 0.0
    %v965 = vsel %vm74, %v964, 0.0
    %v966 = vrot.slane %v965, 4
    %v967 = vadd.f32 %v965, %v966
    %v968 = vrot.slane %v967, 2
    %v969 = vadd.f32 %v967, %v968
    %v970 = vrot.slane %v969, 1
    %v971 = vadd.f32 %v969, %v970
    %v972 = vmul.f32 %v971, 0.125
    %v973 = vmul.f32 %v964, %v964
    %v974 = vsel %vm74, %v973, 0.0
    %v975 = vrot.slane %v974, 4
    %v976 = vadd.f32 %v974, %v975
    %v977 = vrot.slane %v976, 2
    %v978 = vadd.f32 %v976, %v977
    %v979 = vrot.slane %v978, 1
    %v980 = vadd.f32 %v978, %v979
    %v981 = vmul.f32 %v980, 0.125
    %v982 = vmul.f32 %v972, %v972
    %v983 = vsub.f32 %v981, %v982
    %v984 = vsub.f32 %v964, %v972
    %v985 = vadd.f32 %v983, 1e-05
    %v986 = vrsqrt.pop %v985
    %v987 = vmul.f32 %v984, %v986
    %v988 = vld [vmem:[%s13] sm:$0xff]
    %v989 = vld [vmem:[%s13 + $0x8] sm:$0xff]
    %v990 = vld [vmem:[%s13 + $0x10] sm:$0xff]
    %v991 = vld [vmem:[%s13 + $0x18] sm:$0xff]
    %v992 = vld [vmem:[%s13 + $0x20] sm:$0xff]
    %v993 = vld [vmem:[%s13 + $0x28] sm:$0xff]
    %v994 = vld [vmem:[%s13 + $0x30] sm:$0xff]
    %v995 = vld [vmem:[%s13 + $0x38] sm:$0xff]
    %v996 = vld [vmem:[%s14] sm:$0x1]
    %v998 = vsel %vm74, %v987, 0
    %1000 = vmatprep.subr.mxu0 0.0
    %1001 = vmatpush1.msra.mxu0 0.0
    %1002 = vmatprep.subr.mxu0 0.0
    %1003 = vmatpush1.msra.mxu0 0.0
    %1004 = vmatprep.subr.mxu0 0.0
    %1005 = vmatpush1.msra.mxu0 0.0
    %1006 = vmatprep.subr.mxu0 0.0
    %1007 = vmatpush1.msra.mxu0 0.0
    %1008 = vmatprep.subr.mxu0 0.0
    %1009 = vmatpush1.msra.mxu0 0.0
    %1010 = vmatprep.subr.mxu0 0.0
    %1011 = vmatpush1.msra.mxu0 0.0
    %1012 = vmatprep.subr.mxu0 0.0
    %1013 = vmatpush1.msra.mxu0 0.0
    %1014 = vmatprep.subr.mxu0 0.0
    %1015 = vmatpush1.msra.mxu0 0.0
    %1016 = vmatprep.subr.mxu0 0.0
    %1017 = vmatpush1.msra.mxu0 %v995
    %1018 = vmatprep.subr.mxu0 0.0
    %1019 = vmatpush1.msra.mxu0 %v994
    %1020 = vmatprep.subr.mxu0 0.0
    %1021 = vmatpush1.msra.mxu0 %v993
    %1022 = vmatprep.subr.mxu0 0.0
    %1023 = vmatpush1.msra.mxu0 %v992
    %1024 = vmatprep.subr.mxu0 0.0
    %1025 = vmatpush1.msra.mxu0 %v991
    %1026 = vmatprep.subr.mxu0 0.0
    %1027 = vmatpush1.msra.mxu0 %v990
    %1028 = vmatprep.subr.mxu0 0.0
    %1029 = vmatpush1.msra.mxu0 %v989
    %1030 = vmatprep.subr.mxu0 0.0
    %1031 = vmatpush1.msra.mxu0 %v988
    %1032 = vmatprep.subr.mxu0 0.0
    %1033 = vmatpush2.msra.mxu0 0.0
    %1034 = vmatprep.subr.mxu0 0.0
    %1035 = vmatpush2.msra.mxu0 0.0
    %1036 = vmatprep.subr.mxu0 0.0
    %1037 = vmatpush2.msra.mxu0 0.0
    %1038 = vmatprep.subr.mxu0 0.0
    %1039 = vmatpush2.msra.mxu0 0.0
    %1040 = vmatprep.subr.mxu0 0.0
    %1041 = vmatpush2.msra.mxu0 0.0
    %1042 = vmatprep.subr.mxu0 0.0
    %1043 = vmatpush2.msra.mxu0 0.0
    %1044 = vmatprep.subr.mxu0 0.0
    %1045 = vmatpush2.msra.mxu0 0.0
    %1046 = vmatprep.subr.mxu0 0.0
    %1047 = vmatpush2.msra.mxu0 0.0
    %1048 = vmatprep.subr.mxu0 0.0
    %1049 = vmatpush2.msra.mxu0 0.0
    %1050 = vmatprep.subr.mxu0 0.0
    %1051 = vmatpush2.msra.mxu0 0.0
    %1052 = vmatprep.subr.mxu0 0.0
    %1053 = vmatpush2.msra.mxu0 0.0
    %1054 = vmatprep.subr.mxu0 0.0
    %1055 = vmatpush2.msra.mxu0 0.0
    %1056 = vmatprep.subr.mxu0 0.0
    %1057 = vmatpush2.msra.mxu0 0.0
    %1058 = vmatprep.subr.mxu0 0.0
    %1059 = vmatpush2.msra.mxu0 0.0
    %1060 = vmatprep.subr.mxu0 0.0
    %1061 = vmatpush2.msra.mxu0 0.0
    %1062 = vmatprep.subr.mxu0 0.0
    %1063 = vmatpush2.msra.mxu0 0.0
    %1064 = vmatprep.mubr.f32.mxu0 0.0
    %1065 = vmatmul.mubr.f32.gmra.mxu0 %v998
    %v1066 = vpop.f32.mrf.mxu0
    %v1067 = vadd.f32 0.0, %v1066
    %v1068 = vpop.f32.mrf.mxu0
    %1069 = vdwg.mxu0
    %v1071 = vlaneseq
    %v1072 = vshrl.u32 %v1071, 7
    %v1073 = vsub.s32 0, %v1072
    %v1074 = vrot.slane %v996, %v1073
    %1076 = vmatprep.subr.mxu0 0.0
    %1077 = vmatpush1.msra.mxu0 0.0
    %1078 = vmatprep.subr.mxu0 0.0
    %1079 = vmatpush1.msra.mxu0 0.0
    %1080 = vmatprep.subr.mxu0 0.0
    %1081 = vmatpush1.msra.mxu0 0.0
    %1082 = vmatprep.subr.mxu0 0.0
    %1083 = vmatpush1.msra.mxu0 0.0
    %1084 = vmatprep.subr.mxu0 0.0
    %1085 = vmatpush1.msra.mxu0 0.0
    %1086 = vmatprep.subr.mxu0 0.0
    %1087 = vmatpush1.msra.mxu0 0.0
    %1088 = vmatprep.subr.mxu0 0.0
    %1089 = vmatpush1.msra.mxu0 0.0
    %1090 = vmatprep.subr.mxu0 0.0
    %1091 = vmatpush1.msra.mxu0 0.0
    %1092 = vmatprep.subr.mxu0 0.0
    %1093 = vmatpush1.msra.mxu0 0.0
    %1094 = vmatprep.subr.mxu0 0.0
    %1095 = vmatpush1.msra.mxu0 0.0
    %1096 = vmatprep.subr.mxu0 0.0
    %1097 = vmatpush1.msra.mxu0 0.0
    %1098 = vmatprep.subr.mxu0 0.0
    %1099 = vmatpush1.msra.mxu0 0.0
    %1100 = vmatprep.subr.mxu0 0.0
    %1101 = vmatpush1.msra.mxu0 0.0
    %1102 = vmatprep.subr.mxu0 0.0
    %1103 = vmatpush1.msra.mxu0 0.0
    %1104 = vmatprep.subr.mxu0 0.0
    %1105 = vmatpush1.msra.mxu0 0.0
    %1106 = vmatprep.subr.mxu0 0.0
    %1107 = vmatpush1.msra.mxu0 %v1067
    %1108 = vmatprep.subr.mxu0 0.0
    %1109 = vmatpush2.msra.mxu0 0.0
    %1110 = vmatprep.subr.mxu0 0.0
    %1111 = vmatpush2.msra.mxu0 0.0
    %1112 = vmatprep.subr.mxu0 0.0
    %1113 = vmatpush2.msra.mxu0 0.0
    %1114 = vmatprep.subr.mxu0 0.0
    %1115 = vmatpush2.msra.mxu0 0.0
    %1116 = vmatprep.subr.mxu0 0.0
    %1117 = vmatpush2.msra.mxu0 0.0
    %1118 = vmatprep.subr.mxu0 0.0
    %1119 = vmatpush2.msra.mxu0 0.0
    %1120 = vmatprep.subr.mxu0 0.0
    %1121 = vmatpush2.msra.mxu0 0.0
    %1122 = vmatprep.subr.mxu0 0.0
    %1123 = vmatpush2.msra.mxu0 0.0
    %1124 = vmatprep.subr.mxu0 0.0
    %1125 = vmatpush2.msra.mxu0 0.0
    %1126 = vmatprep.subr.mxu0 0.0
    %1127 = vmatpush2.msra.mxu0 0.0
    %1128 = vmatprep.subr.mxu0 0.0
    %1129 = vmatpush2.msra.mxu0 0.0
    %1130 = vmatprep.subr.mxu0 0.0
    %1131 = vmatpush2.msra.mxu0 0.0
    %1132 = vmatprep.subr.mxu0 0.0
    %1133 = vmatpush2.msra.mxu0 0.0
    %1134 = vmatprep.subr.mxu0 0.0
    %1135 = vmatpush2.msra.mxu0 0.0
    %1136 = vmatprep.subr.mxu0 0.0
    %1137 = vmatpush2.msra.mxu0 0.0
    %1138 = vmatprep.subr.mxu0 0.0
    %1139 = vmatpush2.msra.mxu0 0.0
    %1140 = vmatprep.mubr.f32.mxu0 0.0
    %1141 = vmatmul.mubr.f32.gmra.mxu0 %v156
    %v1142 = vpop.f32.mrf.mxu0
    %v1143 = vadd.f32 %v1074, %v1142
    %v1144 = vpop.f32.mrf.mxu0
    %1145 = vdwg.mxu0
    %v1146 = vmul.f32 %v1143, %v231
    %v1147 = vmax.f32 %v1146, 0.0
    %v1148 = vsel %vm74, %v1147, 0.0
    %v1149 = vrot.slane %v1148, 4
    %v1150 = vadd.f32 %v1148, %v1149
    %v1151 = vrot.slane %v1150, 2
    %v1152 = vadd.f32 %v1150, %v1151
    %v1153 = vrot.slane %v1152, 1
    %v1154 = vadd.f32 %v1152, %v1153
    %v1155 = vmul.f32 %v1154, 0.125
    %v1156 = vmul.f32 %v1147, %v1147
    %v1157 = vsel %vm74, %v1156, 0.0
    %v1158 = vrot.slane %v1157, 4
    %v1159 = vadd.f32 %v1157, %v1158
    %v1160 = vrot.slane %v1159, 2
    %v1161 = vadd.f32 %v1159, %v1160
    %v1162 = vrot.slane %v1161, 1
    %v1163 = vadd.f32 %v1161, %v1162
    %v1164 = vmul.f32 %v1163, 0.125
    %v1165 = vmul.f32 %v1155, %v1155
    %v1166 = vsub.f32 %v1164, %v1165
    %v1167 = vsub.f32 %v1147, %v1155
    %v1168 = vadd.f32 %v1166, 1e-05
    %v1169 = vrsqrt.pop %v1168
    %v1170 = vmul.f32 %v1167, %v1169
    %v1171 = vsel %vm601, %v624, -inf
    %1172 = vmax.xlane.f32.xlu0 %v1171
    %v1173 = vpop.xlane.xlu0 %1172
    %v1174 = vsub.f32 %v624, %v1173
    %v1175 = vmul.f32 %v1174, 1.442695
    %v1176 = vpow.pop %v1175
    %v1177 = vsel %vm601, %v1176, 0.0
    %1178 = vadd.xlane.f32.xlu0 %v1177
    %v1179 = vpop.xlane.xlu0 %1178
    %v1180 = vrcp.pop %v1179
    %v1181 = vmul.f32 %v1176, %v1180
    %v1182 = vmul.f32 %v1181, %v231
    %v1183 = vmul.f32 %v1170, %v231
    %1184 = vxpose.xlu0.b32.start [1/16] %v1182, 128
    %1185 = vxpose.xlu0.b32.cont [2/16] 0.0, 128
    %1186 = vxpose.xlu0.b32.cont [3/16] 0.0, 128
    %1187 = vxpose.xlu0.b32.cont [4/16] 0.0, 128
    %1188 = vxpose.xlu0.b32.cont [5/16] 0.0, 128
    %1189 = vxpose.xlu0.b32.cont [6/16] 0.0, 128
    %1190 = vxpose.xlu0.b32.cont [7/16] 0.0, 128
    %1191 = vxpose.xlu0.b32.cont [8/16] 0.0, 128
    %1192 = vxpose.xlu0.b32.cont [9/16] 0.0, 128
    %1193 = vxpose.xlu0.b32.cont [10/16] 0.0, 128
    %1194 = vxpose.xlu0.b32.cont [11/16] 0.0, 128
    %1195 = vxpose.xlu0.b32.cont [12/16] 0.0, 128
    %1196 = vxpose.xlu0.b32.cont [13/16] 0.0, 128
    %1197 = vxpose.xlu0.b32.cont [14/16] 0.0, 128
    %1198 = vxpose.xlu0.b32.cont [15/16] 0.0, 128
    %1199 = vxpose.xlu0.b32.end [16/16] 0.0, 128
    %v1200 = vpop.trf.xlu0
    %v1201 = vpop.trf.xlu0
    %v1202 = vpop.trf.xlu0
    %v1203 = vpop.trf.xlu0
    %v1204 = vpop.trf.xlu0
    %v1205 = vpop.trf.xlu0
    %v1206 = vpop.trf.xlu0
    %v1207 = vpop.trf.xlu0
    %v1208 = vpop.trf.xlu0
    %v1209 = vpop.trf.xlu0
    %v1210 = vpop.trf.xlu0
    %v1211 = vpop.trf.xlu0
    %v1212 = vpop.trf.xlu0
    %v1213 = vpop.trf.xlu0
    %v1214 = vpop.trf.xlu0
    %v1215 = vpop.trf.xlu0
    %v1217 = vsel %vm154, %v1200, 0
    %1219 = vmatprep.subr.mxu0 0.0
    %1220 = vmatpush1.msra.mxu0 0.0
    %1221 = vmatprep.subr.mxu0 0.0
    %1222 = vmatpush1.msra.mxu0 0.0
    %1223 = vmatprep.subr.mxu0 0.0
    %1224 = vmatpush1.msra.mxu0 0.0
    %1225 = vmatprep.subr.mxu0 0.0
    %1226 = vmatpush1.msra.mxu0 0.0
    %1227 = vmatprep.subr.mxu0 0.0
    %1228 = vmatpush1.msra.mxu0 0.0
    %1229 = vmatprep.subr.mxu0 0.0
    %1230 = vmatpush1.msra.mxu0 0.0
    %1231 = vmatprep.subr.mxu0 0.0
    %1232 = vmatpush1.msra.mxu0 0.0
    %1233 = vmatprep.subr.mxu0 0.0
    %1234 = vmatpush1.msra.mxu0 0.0
    %1235 = vmatprep.subr.mxu0 0.0
    %1236 = vmatpush1.msra.mxu0 0.0
    %1237 = vmatprep.subr.mxu0 0.0
    %1238 = vmatpush1.msra.mxu0 0.0
    %1239 = vmatprep.subr.mxu0 0.0
    %1240 = vmatpush1.msra.mxu0 0.0
    %1241 = vmatprep.subr.mxu0 0.0
    %1242 = vmatpush1.msra.mxu0 0.0
    %1243 = vmatprep.subr.mxu0 0.0
    %1244 = vmatpush1.msra.mxu0 0.0
    %1245 = vmatprep.subr.mxu0 0.0
    %1246 = vmatpush1.msra.mxu0 0.0
    %1247 = vmatprep.subr.mxu0 0.0
    %1248 = vmatpush1.msra.mxu0 0.0
    %1249 = vmatprep.subr.mxu0 0.0
    %1250 = vmatpush1.msra.mxu0 %v1183
    %1251 = vmatprep.subr.mxu0 0.0
    %1252 = vmatpush2.msra.mxu0 0.0
    %1253 = vmatprep.subr.mxu0 0.0
    %1254 = vmatpush2.msra.mxu0 0.0
    %1255 = vmatprep.subr.mxu0 0.0
    %1256 = vmatpush2.msra.mxu0 0.0
    %1257 = vmatprep.subr.mxu0 0.0
    %1258 = vmatpush2.msra.mxu0 0.0
    %1259 = vmatprep.subr.mxu0 0.0
    %1260 = vmatpush2.msra.mxu0 0.0
    %1261 = vmatprep.subr.mxu0 0.0
    %1262 = vmatpush2.msra.mxu0 0.0
    %1263 = vmatprep.subr.mxu0 0.0
    %1264 = vmatpush2.msra.mxu0 0.0
    %1265 = vmatprep.subr.mxu0 0.0
    %1266 = vmatpush2.msra.mxu0 0.0
    %1267 = vmatprep.subr.mxu0 0.0
    %1268 = vmatpush2.msra.mxu0 0.0
    %1269 = vmatprep.subr.mxu0 0.0
    %1270 = vmatpush2.msra.mxu0 0.0
    %1271 = vmatprep.subr.mxu0 0.0
    %1272 = vmatpush2.msra.mxu0 0.0
    %1273 = vmatprep.subr.mxu0 0.0
    %1274 = vmatpush2.msra.mxu0 0.0
    %1275 = vmatprep.subr.mxu0 0.0
    %1276 = vmatpush2.msra.mxu0 0.0
    %1277 = vmatprep.subr.mxu0 0.0
    %1278 = vmatpush2.msra.mxu0 0.0
    %1279 = vmatprep.subr.mxu0 0.0
    %1280 = vmatpush2.msra.mxu0 0.0
    %1281 = vmatprep.subr.mxu0 0.0
    %1282 = vmatpush2.msra.mxu0 0.0
    %1283 = vmatprep.mubr.f32.mxu0 0.0
    %1284 = vmatmul.mubr.f32.gmra.mxu0 %v1217
    %v1285 = vpop.f32.mrf.mxu0
    %v1286 = vadd.f32 0.0, %v1285
    %v1287 = vpop.f32.mrf.mxu0
    %1288 = vdwg.mxu0
    %vm1289 = vcmask 517120
    %1290 = vst.msk [vmem:[%s15] sm:$0x3] %vm1289, %v1286
    %1291 = vmatprep.subr.mxu0 0.0
    %1292 = vmatpush1.msra.mxu0 0.0
    %1293 = vmatprep.subr.mxu0 0.0
    %1294 = vmatpush1.msra.mxu0 0.0
    %1295 = vmatprep.subr.mxu0 0.0
    %1296 = vmatpush1.msra.mxu0 0.0
    %1297 = vmatprep.subr.mxu0 0.0
    %1298 = vmatpush1.msra.mxu0 0.0
    %1299 = vmatprep.subr.mxu0 0.0
    %1300 = vmatpush1.msra.mxu0 0.0
    %1301 = vmatprep.subr.mxu0 0.0
    %1302 = vmatpush1.msra.mxu0 0.0
    %1303 = vmatprep.subr.mxu0 0.0
    %1304 = vmatpush1.msra.mxu0 0.0
    %1305 = vmatprep.subr.mxu0 0.0
    %1306 = vmatpush1.msra.mxu0 0.0
    %1307 = vmatprep.subr.mxu0 0.0
    %1308 = vmatpush1.msra.mxu0 0.0
    %1309 = vmatprep.subr.mxu0 0.0
    %1310 = vmatpush1.msra.mxu0 0.0
    %1311 = vmatprep.subr.mxu0 0.0
    %1312 = vmatpush1.msra.mxu0 0.0
    %1313 = vmatprep.subr.mxu0 0.0
    %1314 = vmatpush1.msra.mxu0 0.0
    %1315 = vmatprep.subr.mxu0 0.0
    %1316 = vmatpush1.msra.mxu0 0.0
    %1317 = vmatprep.subr.mxu0 0.0
    %1318 = vmatpush1.msra.mxu0 0.0
    %1319 = vmatprep.subr.mxu0 0.0
    %1320 = vmatpush1.msra.mxu0 0.0
    %1321 = vmatprep.subr.mxu0 0.0
    %1322 = vmatpush1.msra.mxu0 %v56
    %1323 = vmatprep.subr.mxu0 0.0
    %1324 = vmatpush2.msra.mxu0 0.0
    %1325 = vmatprep.subr.mxu0 0.0
    %1326 = vmatpush2.msra.mxu0 0.0
    %1327 = vmatprep.subr.mxu0 0.0
    %1328 = vmatpush2.msra.mxu0 0.0
    %1329 = vmatprep.subr.mxu0 0.0
    %1330 = vmatpush2.msra.mxu0 0.0
    %1331 = vmatprep.subr.mxu0 0.0
    %1332 = vmatpush2.msra.mxu0 0.0
    %1333 = vmatprep.subr.mxu0 0.0
    %1334 = vmatpush2.msra.mxu0 0.0
    %1335 = vmatprep.subr.mxu0 0.0
    %1336 = vmatpush2.msra.mxu0 0.0
    %1337 = vmatprep.subr.mxu0 0.0
    %1338 = vmatpush2.msra.mxu0 0.0
    %1339 = vmatprep.subr.mxu0 0.0
    %1340 = vmatpush2.msra.mxu0 0.0
    %1341 = vmatprep.subr.mxu0 0.0
    %1342 = vmatpush2.msra.mxu0 0.0
    %1343 = vmatprep.subr.mxu0 0.0
    %1344 = vmatpush2.msra.mxu0 0.0
    %1345 = vmatprep.subr.mxu0 0.0
    %1346 = vmatpush2.msra.mxu0 0.0
    %1347 = vmatprep.subr.mxu0 0.0
    %1348 = vmatpush2.msra.mxu0 0.0
    %1349 = vmatprep.subr.mxu0 0.0
    %1350 = vmatpush2.msra.mxu0 0.0
    %1351 = vmatprep.subr.mxu0 0.0
    %1352 = vmatpush2.msra.mxu0 0.0
    %1353 = vmatprep.subr.mxu0 0.0
    %1354 = vmatpush2.msra.mxu0 0.0
    %1355 = vmatprep.mubr.f32.mxu0 0.0
    %1356 = vmatmul.mubr.f32.gmra.mxu0 %v1217
    %v1357 = vpop.f32.mrf.mxu0
    %v1358 = vadd.f32 0.0, %v1357
    %v1359 = vpop.f32.mrf.mxu0
    %1360 = vdwg.mxu0
    %v1362 = vsel %vm154, %v1358, 0
    %1364 = vmatprep.subr.mxu0 0.0
    %1365 = vmatpush1.msra.mxu0 0.0
    %1366 = vmatprep.subr.mxu0 0.0
    %1367 = vmatpush1.msra.mxu0 0.0
    %1368 = vmatprep.subr.mxu0 0.0
    %1369 = vmatpush1.msra.mxu0 0.0
    %1370 = vmatprep.subr.mxu0 0.0
    %1371 = vmatpush1.msra.mxu0 0.0
    %1372 = vmatprep.subr.mxu0 0.0
    %1373 = vmatpush1.msra.mxu0 0.0
    %1374 = vmatprep.subr.mxu0 0.0
    %1375 = vmatpush1.msra.mxu0 0.0
    %1376 = vmatprep.subr.mxu0 0.0
    %1377 = vmatpush1.msra.mxu0 0.0
    %1378 = vmatprep.subr.mxu0 0.0
    %1379 = vmatpush1.msra.mxu0 0.0
    %1380 = vmatprep.subr.mxu0 0.0
    %1381 = vmatpush1.msra.mxu0 0.0
    %1382 = vmatprep.subr.mxu0 0.0
    %1383 = vmatpush1.msra.mxu0 0.0
    %1384 = vmatprep.subr.mxu0 0.0
    %1385 = vmatpush1.msra.mxu0 0.0
    %1386 = vmatprep.subr.mxu0 0.0
    %1387 = vmatpush1.msra.mxu0 0.0
    %1388 = vmatprep.subr.mxu0 0.0
    %1389 = vmatpush1.msra.mxu0 0.0
    %1390 = vmatprep.subr.mxu0 0.0
    %1391 = vmatpush1.msra.mxu0 0.0
    %1392 = vmatprep.subr.mxu0 0.0
    %1393 = vmatpush1.msra.mxu0 0.0
    %1394 = vmatprep.subr.mxu0 0.0
    %1395 = vmatpush1.msra.mxu0 %v1182
    %1396 = vmatprep.subr.mxu0 0.0
    %1397 = vmatpush2.msra.mxu0 0.0
    %1398 = vmatprep.subr.mxu0 0.0
    %1399 = vmatpush2.msra.mxu0 0.0
    %1400 = vmatprep.subr.mxu0 0.0
    %1401 = vmatpush2.msra.mxu0 0.0
    %1402 = vmatprep.subr.mxu0 0.0
    %1403 = vmatpush2.msra.mxu0 0.0
    %1404 = vmatprep.subr.mxu0 0.0
    %1405 = vmatpush2.msra.mxu0 0.0
    %1406 = vmatprep.subr.mxu0 0.0
    %1407 = vmatpush2.msra.mxu0 0.0
    %1408 = vmatprep.subr.mxu0 0.0
    %1409 = vmatpush2.msra.mxu0 0.0
    %1410 = vmatprep.subr.mxu0 0.0
    %1411 = vmatpush2.msra.mxu0 0.0
    %1412 = vmatprep.subr.mxu0 0.0
    %1413 = vmatpush2.msra.mxu0 0.0
    %1414 = vmatprep.subr.mxu0 0.0
    %1415 = vmatpush2.msra.mxu0 0.0
    %1416 = vmatprep.subr.mxu0 0.0
    %1417 = vmatpush2.msra.mxu0 0.0
    %1418 = vmatprep.subr.mxu0 0.0
    %1419 = vmatpush2.msra.mxu0 0.0
    %1420 = vmatprep.subr.mxu0 0.0
    %1421 = vmatpush2.msra.mxu0 0.0
    %1422 = vmatprep.subr.mxu0 0.0
    %1423 = vmatpush2.msra.mxu0 0.0
    %1424 = vmatprep.subr.mxu0 0.0
    %1425 = vmatpush2.msra.mxu0 0.0
    %1426 = vmatprep.subr.mxu0 0.0
    %1427 = vmatpush2.msra.mxu0 0.0
    %1428 = vmatprep.mubr.f32.mxu0 0.0
    %1429 = vmatmul.mubr.f32.gmra.mxu0 %v1362
    %v1430 = vpop.f32.mrf.mxu0
    %v1431 = vadd.f32 0.0, %v1430
    %v1432 = vpop.f32.mrf.mxu0
    %1433 = vdwg.mxu0
    %vm1434 = vcmask 9216
    %1435 = vst.msk [vmem:[%s16] sm:$0x3] %vm1434, %v1431
    %v1437 = vsel %vm601, %v1182, 0
    %1439 = vmatprep.subr.mxu0 0.0
    %1440 = vmatpush1.xpose.msra.mxu0 0.0
    %1441 = vmatprep.subr.mxu0 0.0
    %1442 = vmatpush1.xpose.msra.mxu0 0.0
    %1443 = vmatprep.subr.mxu0 0.0
    %1444 = vmatpush1.xpose.msra.mxu0 0.0
    %1445 = vmatprep.subr.mxu0 0.0
    %1446 = vmatpush1.xpose.msra.mxu0 0.0
    %1447 = vmatprep.subr.mxu0 0.0
    %1448 = vmatpush1.xpose.msra.mxu0 0.0
    %1449 = vmatprep.subr.mxu0 0.0
    %1450 = vmatpush1.xpose.msra.mxu0 0.0
    %1451 = vmatprep.subr.mxu0 0.0
    %1452 = vmatpush1.xpose.msra.mxu0 0.0
    %1453 = vmatprep.subr.mxu0 0.0
    %1454 = vmatpush1.xpose.msra.mxu0 0.0
    %1455 = vmatprep.subr.mxu0 0.0
    %1456 = vmatpush1.xpose.msra.mxu0 0.0
    %1457 = vmatprep.subr.mxu0 0.0
    %1458 = vmatpush1.xpose.msra.mxu0 0.0
    %1459 = vmatprep.subr.mxu0 0.0
    %1460 = vmatpush1.xpose.msra.mxu0 0.0
    %1461 = vmatprep.subr.mxu0 0.0
    %1462 = vmatpush1.xpose.msra.mxu0 0.0
    %1463 = vmatprep.subr.mxu0 0.0
    %1464 = vmatpush1.xpose.msra.mxu0 0.0
    %1465 = vmatprep.subr.mxu0 0.0
    %1466 = vmatpush1.xpose.msra.mxu0 0.0
    %1467 = vmatprep.subr.mxu0 0.0
    %1468 = vmatpush1.xpose.msra.mxu0 0.0
    %1469 = vmatprep.subr.mxu0 0.0
    %1470 = vmatpush1.xpose.msra.mxu0 %v1437
    %1471 = vmatprep.subr.mxu0 0.0
    %1472 = vmatpush2.xpose.msra.mxu0 0.0
    %1473 = vmatprep.subr.mxu0 0.0
    %1474 = vmatpush2.xpose.msra.mxu0 0.0
    %1475 = vmatprep.subr.mxu0 0.0
    %1476 = vmatpush2.xpose.msra.mxu0 0.0
    %1477 = vmatprep.subr.mxu0 0.0
    %1478 = vmatpush2.xpose.msra.mxu0 0.0
    %1479 = vmatprep.subr.mxu0 0.0
    %1480 = vmatpush2.xpose.msra.mxu0 0.0
    %1481 = vmatprep.subr.mxu0 0.0
    %1482 = vmatpush2.xpose.msra.mxu0 0.0
    %1483 = vmatprep.subr.mxu0 0.0
    %1484 = vmatpush2.xpose.msra.mxu0 0.0
    %1485 = vmatprep.subr.mxu0 0.0
    %1486 = vmatpush2.xpose.msra.mxu0 0.0
    %1487 = vmatprep.subr.mxu0 0.0
    %1488 = vmatpush2.xpose.msra.mxu0 0.0
    %1489 = vmatprep.subr.mxu0 0.0
    %1490 = vmatpush2.xpose.msra.mxu0 0.0
    %1491 = vmatprep.subr.mxu0 0.0
    %1492 = vmatpush2.xpose.msra.mxu0 0.0
    %1493 = vmatprep.subr.mxu0 0.0
    %1494 = vmatpush2.xpose.msra.mxu0 0.0
    %1495 = vmatprep.subr.mxu0 0.0
    %1496 = vmatpush2.xpose.msra.mxu0 0.0
    %1497 = vmatprep.subr.mxu0 0.0
    %1498 = vmatpush2.xpose.msra.mxu0 0.0
    %1499 = vmatprep.subr.mxu0 0.0
    %1500 = vmatpush2.xpose.msra.mxu0 0.0
    %1501 = vmatprep.subr.mxu0 0.0
    %1502 = vmatpush2.xpose.msra.mxu0 0.0
    %1503 = vmatprep.mubr.f32.mxu0 0.0
    %1504 = vmatmul.mubr.f32.gmra.mxu0 %v1437
    %v1505 = vpop.f32.mrf.mxu0
    %v1506 = vadd.f32 0.0, %v1505
    %v1507 = vpop.f32.mrf.mxu0
    %1508 = vdwg.mxu0
    %v1509 = vsub.f32 %v56, %v1506
    %v1510 = vmul.f32 %v1509, %v1509
    %v1511 = vsel %vm154, %v1510, 0.0
    %1512 = vadd.xlane.f32.xlu0 %v1511
    %v1513 = vpop.xlane.xlu0 %1512
    %v1514 = vrot.slane %v1513, 4
    %v1515 = vadd.f32 %v1513, %v1514
    %v1516 = vrot.slane %v1515, 2
    %v1517 = vadd.f32 %v1515, %v1516
    %v1518 = vrot.slane %v1517, 1
    %v1519 = vadd.f32 %v1517, %v1518
    %s1520 = vtos %v1519
    %v1521 = vstv %s1520
    %v1522 = vrsqrt.pop %v1521
    %v1523 = vmul.f32 %v1521, %v1522
    %vm1524 = vcmp.eq.f32.partialorder %v1521, inf
    %v1525 = vsel %vm1524, %v1521, %v1523
    %vm1526 = vcmp.eq.f32.partialorder %v1521, 0.0
    %v1527 = vand.u32 %v1521, 2147483648
    %v1528 = vsel %vm1526, %v1527, %v1525
    %v1529 = vmul.f32 %v1528, 0.015625
    %vm1530 = vcmask 0
    %1531 = vst.msk [vmem:[#allocation2] sm:$0x1] %vm1530, %v1529
    %v1532 = vsub.f32 0.0, %v1182
    %v1533 = vadd.f32 %v1182, 1e-15
    %v1534 = vlog2.pop %v1533
    %v1535 = vmul.f32 %v1534, 0.6931472
    %v1536 = vmul.f32 %v1532, %v1535
    %v1537 = vsel %vm601, %v1536, 0.0
    %1538 = vadd.xlane.f32.xlu0 %v1537
    %v1539 = vpop.xlane.xlu0 %1538
    %v1540 = vrot.slane %v1539, 4
    %v1541 = vadd.f32 %v1539, %v1540
    %v1542 = vrot.slane %v1541, 2
    %v1543 = vadd.f32 %v1541, %v1542
    %v1544 = vrot.slane %v1543, 1
    %v1545 = vadd.f32 %v1543, %v1544
    %s1546 = vtos %v1545
    %v1547 = vstv %s1546
    %v1548 = vmul.f32 %v1547, 0.125
    %1549 = vst.msk [vmem:[#allocation4] sm:$0x1] %vm1530, %v1548
    // Predicated region
    $region62: #{diffpool_forward.4} parent=1 // pred_check
      _
    $region63: #{diffpool_forward.4} parent=1 // pred_check_branch
      %1551 = sbr.rel (0) target = $region65
    $region64: #{diffpool_forward.4} parent=1 // pred_region
      _
    $region65: #{diffpool_forward.4} parent=1 // pred_fallthru
      _
    // Predicated region
    $region66: #{diffpool_forward.4} parent=1 // pred_check
      _
    $region67: #{diffpool_forward.4} parent=1 // pred_check_branch
      %1553 = sbr.rel (0) target = $region69
    $region68: #{diffpool_forward.4} parent=1 // pred_region
      _
    $region69: #{diffpool_forward.4} parent=1 // pred_fallthru
      _
    // Predicated region
    $region70: #{diffpool_forward.4} parent=1 // pred_check
      _
    $region71: #{diffpool_forward.4} parent=1 // pred_check_branch
      %1555 = sbr.rel (0) target = $region73
    $region72: #{diffpool_forward.4} parent=1 // pred_region
      %s1557 = ssub.s32 16, 16
      %1558 = vsyncadd [#allocation3], %s1557
      %s1560 = sshll.u32 [#allocation2], 4
      %s1561 = int_to_ptr.vmem [resolvable:$true] %s1560
      %1563 = dma.vmem_to_hbm [thread:$0]  %s1561, 16, %s17, [#allocation3]
    $region73: #{diffpool_forward.4} parent=1 // pred_fallthru
      _
    // Predicated region
    $region74: #{diffpool_forward.4} parent=1 // pred_check
      _
    $region75: #{diffpool_forward.4} parent=1 // pred_check_branch
      %1565 = sbr.rel (0) target = $region77
    $region76: #{diffpool_forward.4} parent=1 // pred_region
      %s1567 = ssub.s32 16, 16
      %1568 = vsyncadd [#allocation5], %s1567
      %s1570 = sshll.u32 [#allocation4], 4
      %s1571 = int_to_ptr.vmem [resolvable:$true] %s1570
      %1573 = dma.vmem_to_hbm [thread:$0]  %s1571, 16, %s18, [#allocation5]
    $region77: #{diffpool_forward.4} parent=1 // pred_fallthru
      _
    // Predicated region
    $region78: #{diffpool_forward.4} parent=1 // pred_check
      _
    $region79: #{diffpool_forward.4} parent=1 // pred_check_branch
      %1575 = sbr.rel (0) target = $region81
    $region80: #{diffpool_forward.4} parent=1 // pred_region
      _
    $region81: #{diffpool_forward.4} parent=1 // pred_fallthru
      _
    // Predicated region
    $region82: #{diffpool_forward.4} parent=1 // pred_check
      _
    $region83: #{diffpool_forward.4} parent=1 // pred_check_branch
      %1577 = sbr.rel (0) target = $region85
    $region84: #{diffpool_forward.4} parent=1 // pred_region
      _
    $region85: #{diffpool_forward.4} parent=1 // pred_fallthru
      _
    // Predicated region
    $region86: #{diffpool_forward.4} parent=1 // pred_check
      _
    $region87: #{diffpool_forward.4} parent=1 // pred_check_branch
      %1579 = sbr.rel (0) target = $region89
    $region88: #{diffpool_forward.4} parent=1 // pred_region
      %1580 = dma.done [#allocation3], 16
    $region89: #{diffpool_forward.4} parent=1 // pred_fallthru
      _
    // Predicated region
    $region90: #{diffpool_forward.4} parent=1 // pred_check
      _
    $region91: #{diffpool_forward.4} parent=1 // pred_check_branch
      %1582 = sbr.rel (0) target = $region93
    $region92: #{diffpool_forward.4} parent=1 // pred_region
      %1583 = dma.done [#allocation5], 16
    $region93: #{diffpool_forward.4} parent=1 // pred_fallthru
      _
    %1584 = vsyncpa [#allocation3], 1
    %1585 = vsyncpa [#allocation5], 1

// kernel: diffpool_forward.3
$region0: #{diffpool_forward.3}
  #allocation0 [shape = 'u32[]', space=smem, size = 0x4, offset = 0x4, fixed_abs, tag = 'smem constant byte address 0x4 - core index']
  #allocation1 [shape = 'u32[144,128]{1,0:T(1,128)}', space=vmem, size = 0x12000, scoped, tag = 'internal scratch']
  %s0 = inlined_call_operand.vmem [shape: f32[32,16], index: 0, kind: input, shape index: {}]
  %s1 = inlined_call_operand.hbm [shape: f32[32,32], index: 1, kind: input, shape index: {}]
  %s2 = inlined_call_operand.vmem [shape: f32[32,1], index: 2, kind: input, shape index: {}]
  %s3 = inlined_call_operand.hbm [shape: f32[16,64], index: 3, kind: input, shape index: {}]
  %s4 = inlined_call_operand.vmem [shape: f32[1,64], index: 4, kind: input, shape index: {}]
  %s5 = inlined_call_operand.vmem [shape: f32[64,64], index: 5, kind: input, shape index: {}]
  %s6 = inlined_call_operand.hbm [shape: f32[1,64], index: 6, kind: input, shape index: {}]
  %s7 = inlined_call_operand.vmem [shape: f32[64,8], index: 7, kind: input, shape index: {}]
  %s8 = inlined_call_operand.hbm [shape: f32[1,8], index: 8, kind: input, shape index: {}]
  %s9 = inlined_call_operand.hbm [shape: f32[16,64], index: 9, kind: input, shape index: {}]
  %s10 = inlined_call_operand.hbm [shape: f32[1,64], index: 10, kind: input, shape index: {}]
  %s11 = inlined_call_operand.vmem [shape: f32[64,64], index: 11, kind: input, shape index: {}]
  %s12 = inlined_call_operand.hbm [shape: f32[1,64], index: 12, kind: input, shape index: {}]
  %s13 = inlined_call_operand.vmem [shape: f32[64,64], index: 13, kind: input, shape index: {}]
  %s14 = inlined_call_operand.hbm [shape: f32[1,64], index: 14, kind: input, shape index: {}]
  %s15 = inlined_call_operand.vmem [shape: f32[8,64], index: 15, kind: output, shape index: {0}]
  %s16 = inlined_call_operand.vmem [shape: f32[8,8], index: 16, kind: output, shape index: {1}]
  %s17 = inlined_call_operand.hbm [shape: f32[1,1], index: 17, kind: output, shape index: {2}]
  %s18 = inlined_call_operand.hbm [shape: f32[1,1], index: 18, kind: output, shape index: {3}]
  %19 = xla_tuple %s15, %s16, %s17, %s18
  %s20 = sld [smem:[#allocation0]]
  $region126: #{diffpool_forward.3} parent=0
    _
  %s22 = ssub.s32 1, %s20
  %s23 = scalar_select 0, %s22, %s20
  $region1: #{diffpool_forward.3} parent=0
    #allocation2 [shape = 'u8[16384]{0}', space=vmem, size = 0x4000, scoped, tag = 'input window, operand 1, single buffered']
    #allocation3 [shape = 's32[1]{0}', space=sflag, size = 0x4, scoped, tag = 'scoped memory for diffpool_forward.3']
    #allocation4 [shape = 's32[1]{0}', space=sflag, size = 0x4, scoped, tag = 'scoped memory for diffpool_forward.3']
    #allocation5 [shape = 'u8[8192]{0}', space=vmem, size = 0x2000, scoped, tag = 'input window, operand 3, single buffered']
    #allocation6 [shape = 's32[1]{0}', space=sflag, size = 0x4, scoped, tag = 'scoped memory for diffpool_forward.3']
    #allocation7 [shape = 'u8[512]{0}', space=vmem, size = 0x400, scoped, tag = 'input window, operand 6, single buffered']
    #allocation8 [shape = 'u8[512]{0}', space=vmem, size = 0x400, scoped, tag = 'input window, operand 8, single buffered']
    #allocation9 [shape = 's32[1]{0}', space=sflag, size = 0x4, scoped, tag = 'scoped memory for diffpool_forward.3']
    #allocation10 [shape = 'u8[8192]{0}', space=vmem, size = 0x2000, scoped, tag = 'input window, operand 9, single buffered']
    #allocation11 [shape = 'u8[512]{0}', space=vmem, size = 0x400, scoped, tag = 'input window, operand 10, single buffered']
    #allocation12 [shape = 's32[1]{0}', space=sflag, size = 0x4, scoped, tag = 'scoped memory for diffpool_forward.3']
    #allocation13 [shape = 'u8[512]{0}', space=vmem, size = 0x400, scoped, tag = 'input window, operand 12, single buffered']
    #allocation14 [shape = 'u8[512]{0}', space=vmem, size = 0x400, scoped, tag = 'input window, operand 14, single buffered']
    #allocation15 [shape = 's32[1]{0}', space=sflag, size = 0x4, scoped, tag = 'scoped memory for diffpool_forward.3']
    #allocation16 [shape = 'u8[512]{0}', space=vmem, size = 0x400, scoped, tag = 'output window, operand 2, single buffered']
    #allocation17 [shape = 'u8[512]{0}', space=vmem, size = 0x400, scoped, tag = 'output window, operand 3, single buffered']
    #allocation18 [shape = 's32[1]{0}', space=sflag, size = 0x4, scoped, tag = 'scoped memory for diffpool_forward.3']
    %24 = vsyncpa [#allocation3], 0
    %25 = vsyncpa [#allocation6], 0
    %26 = vsyncpa [#allocation9], 0
    %27 = vsyncpa [#allocation12], 0
    %28 = vsyncpa [#allocation15], 0
    %29 = vsyncpa [#allocation4], 0
    %30 = vsyncpa [#allocation18], 0
    // Predicated region
    $region2: #{diffpool_forward.3} parent=1 // pred_check
      _
    $region3: #{diffpool_forward.3} parent=1 // pred_check_branch
      %32 = sbr.rel (0) target = $region5
    $region4: #{diffpool_forward.3} parent=1 // pred_region
      _
    $region5: #{diffpool_forward.3} parent=1 // pred_fallthru
      _
    // Predicated region
    $region6: #{diffpool_forward.3} parent=1 // pred_check
      _
    $region7: #{diffpool_forward.3} parent=1 // pred_check_branch
      %34 = sbr.rel (0) target = $region9
    $region8: #{diffpool_forward.3} parent=1 // pred_region
      %s36 = ssub.s32 512, 512
      %37 = vsyncadd [#allocation3], %s36
      %s38 = sshll.u32 [#allocation2], 4
      %s39 = int_to_ptr.vmem [resolvable:$true] %s38
      %44 = dma.hbm_to_vmem [thread:$0]  %s1, 512, %s39, [#allocation3], 128, 128, 8
    $region9: #{diffpool_forward.3} parent=1 // pred_fallthru
      _
    // Predicated region
    $region10: #{diffpool_forward.3} parent=1 // pred_check
      _
    $region11: #{diffpool_forward.3} parent=1 // pred_check_branch
      %46 = sbr.rel (0) target = $region13
    $region12: #{diffpool_forward.3} parent=1 // pred_region
      _
    $region13: #{diffpool_forward.3} parent=1 // pred_fallthru
      _
    // Predicated region
    $region14: #{diffpool_forward.3} parent=1 // pred_check
      _
    $region15: #{diffpool_forward.3} parent=1 // pred_check_branch
      %48 = sbr.rel (0) target = $region17
    $region16: #{diffpool_forward.3} parent=1 // pred_region
      %s50 = ssub.s32 256, 256
      %51 = vsyncadd [#allocation6], %s50
      %s52 = sshll.u32 [#allocation5], 4
      %s53 = int_to_ptr.vmem [resolvable:$true] %s52
      %58 = dma.hbm_to_vmem [thread:$0]  %s3, 256, %s53, [#allocation6], 128, 128, 8
    $region17: #{diffpool_forward.3} parent=1 // pred_fallthru
      _
    // Predicated region
    $region18: #{diffpool_forward.3} parent=1 // pred_check
      _
    $region19: #{diffpool_forward.3} parent=1 // pred_check_branch
      %60 = sbr.rel (0) target = $region21
    $region20: #{diffpool_forward.3} parent=1 // pred_region
      _
    $region21: #{diffpool_forward.3} parent=1 // pred_fallthru
      _
    // Predicated region
    $region22: #{diffpool_forward.3} parent=1 // pred_check
      _
    $region23: #{diffpool_forward.3} parent=1 // pred_check_branch
      %62 = sbr.rel (0) target = $region25
    $region24: #{diffpool_forward.3} parent=1 // pred_region
      _
    $region25: #{diffpool_forward.3} parent=1 // pred_fallthru
      _
    // Predicated region
    $region26: #{diffpool_forward.3} parent=1 // pred_check
      _
    $region27: #{diffpool_forward.3} parent=1 // pred_check_branch
      %64 = sbr.rel (0) target = $region29
    $region28: #{diffpool_forward.3} parent=1 // pred_region
      %s66 = ssub.s32 16, 16
      %67 = vsyncadd [#allocation6], %s66
      %s69 = sshll.u32 [#allocation7], 4
      %s70 = int_to_ptr.vmem [resolvable:$true] %s69
      %72 = dma.hbm_to_vmem [thread:$0]  %s6, 16, %s70, [#allocation6]
    $region29: #{diffpool_forward.3} parent=1 // pred_fallthru
      _
    // Predicated region
    $region30: #{diffpool_forward.3} parent=1 // pred_check
      _
    $region31: #{diffpool_forward.3} parent=1 // pred_check_branch
      %74 = sbr.rel (0) target = $region33
    $region32: #{diffpool_forward.3} parent=1 // pred_region
      _
    $region33: #{diffpool_forward.3} parent=1 // pred_fallthru
      _
    // Predicated region
    $region34: #{diffpool_forward.3} parent=1 // pred_check
      _
    $region35: #{diffpool_forward.3} parent=1 // pred_check_branch
      %76 = sbr.rel (0) target = $region37
    $region36: #{diffpool_forward.3} parent=1 // pred_region
      %s78 = ssub.s32 16, 16
      %79 = vsyncadd [#allocation9], %s78
      %s81 = sshll.u32 [#allocation8], 4
      %s82 = int_to_ptr.vmem [resolvable:$true] %s81
      %84 = dma.hbm_to_vmem [thread:$0]  %s8, 16, %s82, [#allocation9]
    $region37: #{diffpool_forward.3} parent=1 // pred_fallthru
      _
    // Predicated region
    $region38: #{diffpool_forward.3} parent=1 // pred_check
      _
    $region39: #{diffpool_forward.3} parent=1 // pred_check_branch
      %86 = sbr.rel (0) target = $region41
    $region40: #{diffpool_forward.3} parent=1 // pred_region
      %s88 = ssub.s32 256, 256
      %89 = vsyncadd [#allocation9], %s88
      %s90 = sshll.u32 [#allocation10], 4
      %s91 = int_to_ptr.vmem [resolvable:$true] %s90
      %96 = dma.hbm_to_vmem [thread:$0]  %s9, 256, %s91, [#allocation9], 128, 128, 8
    $region41: #{diffpool_forward.3} parent=1 // pred_fallthru
      _
    // Predicated region
    $region42: #{diffpool_forward.3} parent=1 // pred_check
      _
    $region43: #{diffpool_forward.3} parent=1 // pred_check_branch
      %98 = sbr.rel (0) target = $region45
    $region44: #{diffpool_forward.3} parent=1 // pred_region
      %s100 = ssub.s32 16, 16
      %101 = vsyncadd [#allocation12], %s100
      %s103 = sshll.u32 [#allocation11], 4
      %s104 = int_to_ptr.vmem [resolvable:$true] %s103
      %106 = dma.hbm_to_vmem [thread:$0]  %s10, 16, %s104, [#allocation12]
    $region45: #{diffpool_forward.3} parent=1 // pred_fallthru
      _
    // Predicated region
    $region46: #{diffpool_forward.3} parent=1 // pred_check
      _
    $region47: #{diffpool_forward.3} parent=1 // pred_check_branch
      %108 = sbr.rel (0) target = $region49
    $region48: #{diffpool_forward.3} parent=1 // pred_region
      _
    $region49: #{diffpool_forward.3} parent=1 // pred_fallthru
      _
    // Predicated region
    $region50: #{diffpool_forward.3} parent=1 // pred_check
      _
    $region51: #{diffpool_forward.3} parent=1 // pred_check_branch
      %110 = sbr.rel (0) target = $region53
    $region52: #{diffpool_forward.3} parent=1 // pred_region
      %s112 = ssub.s32 16, 16
      %113 = vsyncadd [#allocation12], %s112
      %s115 = sshll.u32 [#allocation13], 4
      %s116 = int_to_ptr.vmem [resolvable:$true] %s115
      %118 = dma.hbm_to_vmem [thread:$0]  %s12, 16, %s116, [#allocation12]
    $region53: #{diffpool_forward.3} parent=1 // pred_fallthru
      _
    // Predicated region
    $region54: #{diffpool_forward.3} parent=1 // pred_check
      _
    $region55: #{diffpool_forward.3} parent=1 // pred_check_branch
      %120 = sbr.rel (0) target = $region57
    $region56: #{diffpool_forward.3} parent=1 // pred_region
      _
    $region57: #{diffpool_forward.3} parent=1 // pred_fallthru
      _
    // Predicated region
    $region58: #{diffpool_forward.3} parent=1 // pred_check
      _
    $region59: #{diffpool_forward.3} parent=1 // pred_check_branch
      %122 = sbr.rel (0) target = $region61
    $region60: #{diffpool_forward.3} parent=1 // pred_region
      %s124 = ssub.s32 16, 16
      %125 = vsyncadd [#allocation15], %s124
      %s127 = sshll.u32 [#allocation14], 4
      %s128 = int_to_ptr.vmem [resolvable:$true] %s127
      %130 = dma.hbm_to_vmem [thread:$0]  %s14, 16, %s128, [#allocation15]
    $region61: #{diffpool_forward.3} parent=1 // pred_fallthru
      _
    // Predicated region
    $region62: #{diffpool_forward.3} parent=1 // pred_check
      _
    $region63: #{diffpool_forward.3} parent=1 // pred_check_branch
      %132 = sbr.rel (0) target = $region65
    $region64: #{diffpool_forward.3} parent=1 // pred_region
      %133 = dma.done [#allocation3], 512
    $region65: #{diffpool_forward.3} parent=1 // pred_fallthru
      _
    // Predicated region
    $region66: #{diffpool_forward.3} parent=1 // pred_check
      _
    $region67: #{diffpool_forward.3} parent=1 // pred_check_branch
      %135 = sbr.rel (0) target = $region69
    $region68: #{diffpool_forward.3} parent=1 // pred_region
      %136 = dma.done [#allocation6], 256
    $region69: #{diffpool_forward.3} parent=1 // pred_fallthru
      _
    // Predicated region
    $region70: #{diffpool_forward.3} parent=1 // pred_check
      _
    $region71: #{diffpool_forward.3} parent=1 // pred_check_branch
      %138 = sbr.rel (0) target = $region73
    $region72: #{diffpool_forward.3} parent=1 // pred_region
      %139 = dma.done [#allocation6], 16
    $region73: #{diffpool_forward.3} parent=1 // pred_fallthru
      _
    // Predicated region
    $region74: #{diffpool_forward.3} parent=1 // pred_check
      _
    $region75: #{diffpool_forward.3} parent=1 // pred_check_branch
      %141 = sbr.rel (0) target = $region77
    $region76: #{diffpool_forward.3} parent=1 // pred_region
      %142 = dma.done [#allocation9], 16
    $region77: #{diffpool_forward.3} parent=1 // pred_fallthru
      _
    // Predicated region
    $region78: #{diffpool_forward.3} parent=1 // pred_check
      _
    $region79: #{diffpool_forward.3} parent=1 // pred_check_branch
      %144 = sbr.rel (0) target = $region81
    $region80: #{diffpool_forward.3} parent=1 // pred_region
      %145 = dma.done [#allocation9], 256
    $region81: #{diffpool_forward.3} parent=1 // pred_fallthru
      _
    // Predicated region
    $region82: #{diffpool_forward.3} parent=1 // pred_check
      _
    $region83: #{diffpool_forward.3} parent=1 // pred_check_branch
      %147 = sbr.rel (0) target = $region85
    $region84: #{diffpool_forward.3} parent=1 // pred_region
      %148 = dma.done [#allocation12], 16
    $region85: #{diffpool_forward.3} parent=1 // pred_fallthru
      _
    // Predicated region
    $region86: #{diffpool_forward.3} parent=1 // pred_check
      _
    $region87: #{diffpool_forward.3} parent=1 // pred_check_branch
      %150 = sbr.rel (0) target = $region89
    $region88: #{diffpool_forward.3} parent=1 // pred_region
      %151 = dma.done [#allocation12], 16
    $region89: #{diffpool_forward.3} parent=1 // pred_fallthru
      _
    // Predicated region
    $region90: #{diffpool_forward.3} parent=1 // pred_check
      _
    $region91: #{diffpool_forward.3} parent=1 // pred_check_branch
      %153 = sbr.rel (0) target = $region93
    $region92: #{diffpool_forward.3} parent=1 // pred_region
      %154 = dma.done [#allocation15], 16
    $region93: #{diffpool_forward.3} parent=1 // pred_fallthru
      _
    %v155 = vld [vmem:[#allocation2] sm:$0xff]
    %v156 = vld [vmem:[#allocation2 + $0x8] sm:$0xff]
    %v157 = vld [vmem:[#allocation2 + $0x10] sm:$0xff]
    %v158 = vld [vmem:[#allocation2 + $0x18] sm:$0xff]
    %v159 = vlaneseq
    %v160 = vshrl.u32 %v159, 7
    %v161 = vadd.s32 %v160, 8
    %v162 = vadd.s32 %v160, 16
    %v163 = vadd.s32 %v160, 24
    %v164 = vlaneseq
    %v165 = vand.u32 %v164, 127
    %vm166 = vcmp.eq.s32.totalorder %v160, %v165
    %vm167 = vcmp.eq.s32.totalorder %v161, %v165
    %vm168 = vcmp.eq.s32.totalorder %v162, %v165
    %vm169 = vcmp.eq.s32.totalorder %v163, %v165
    %v170 = vsel %vm166, 1.0, %v155
    %v171 = vsel %vm167, 1.0, %v156
    %v172 = vsel %vm168, 1.0, %v157
    %v173 = vsel %vm169, 1.0, %v158
    %v174 = vld [vmem:[%s2] sm:$0xff]
    %v175 = vld [vmem:[%s2 + $0x8] sm:$0xff]
    %v176 = vld [vmem:[%s2 + $0x10] sm:$0xff]
    %v177 = vld [vmem:[%s2 + $0x18] sm:$0xff]
    %v178 = vld [vmem:[%s0] sm:$0xff]
    %v179 = vld [vmem:[%s0 + $0x8] sm:$0xff]
    %v180 = vld [vmem:[%s0 + $0x10] sm:$0xff]
    %v181 = vld [vmem:[%s0 + $0x18] sm:$0xff]
    %v182 = vld [vmem:[#allocation5] sm:$0xff]
    %v183 = vld [vmem:[#allocation5 + $0x8] sm:$0xff]
    %v184 = vld [vmem:[%s4] sm:$0x1]
    %vm185 = vcmask 130048
    %v187 = vsel %vm185, %v178, 0
    %v190 = vsel %vm185, %v179, 0
    %v193 = vsel %vm185, %v180, 0
    %v196 = vsel %vm185, %v181, 0
    %198 = vmatprep.subr.mxu0 0.0
    %199 = vmatpush1.msra.mxu0 0.0
    %200 = vmatprep.subr.mxu0 0.0
    %201 = vmatpush1.msra.mxu0 0.0
    %202 = vmatprep.subr.mxu0 0.0
    %203 = vmatpush1.msra.mxu0 0.0
    %204 = vmatprep.subr.mxu0 0.0
    %205 = vmatpush1.msra.mxu0 0.0
    %206 = vmatprep.subr.mxu0 0.0
    %207 = vmatpush1.msra.mxu0 0.0
    %208 = vmatprep.subr.mxu0 0.0
    %209 = vmatpush1.msra.mxu0 0.0
    %210 = vmatprep.subr.mxu0 0.0
    %211 = vmatpush1.msra.mxu0 0.0
    %212 = vmatprep.subr.mxu0 0.0
    %213 = vmatpush1.msra.mxu0 0.0
    %214 = vmatprep.subr.mxu0 0.0
    %215 = vmatpush1.msra.mxu0 0.0
    %216 = vmatprep.subr.mxu0 0.0
    %217 = vmatpush1.msra.mxu0 0.0
    %218 = vmatprep.subr.mxu0 0.0
    %219 = vmatpush1.msra.mxu0 0.0
    %220 = vmatprep.subr.mxu0 0.0
    %221 = vmatpush1.msra.mxu0 0.0
    %222 = vmatprep.subr.mxu0 0.0
    %223 = vmatpush1.msra.mxu0 0.0
    %224 = vmatprep.subr.mxu0 0.0
    %225 = vmatpush1.msra.mxu0 0.0
    %226 = vmatprep.subr.mxu0 0.0
    %227 = vmatpush1.msra.mxu0 %v183
    %228 = vmatprep.subr.mxu0 0.0
    %229 = vmatpush1.msra.mxu0 %v182
    %230 = vmatprep.subr.mxu0 0.0
    %231 = vmatpush2.msra.mxu0 0.0
    %232 = vmatprep.subr.mxu0 0.0
    %233 = vmatpush2.msra.mxu0 0.0
    %234 = vmatprep.subr.mxu0 0.0
    %235 = vmatpush2.msra.mxu0 0.0
    %236 = vmatprep.subr.mxu0 0.0
    %237 = vmatpush2.msra.mxu0 0.0
    %238 = vmatprep.subr.mxu0 0.0
    %239 = vmatpush2.msra.mxu0 0.0
    %240 = vmatprep.subr.mxu0 0.0
    %241 = vmatpush2.msra.mxu0 0.0
    %242 = vmatprep.subr.mxu0 0.0
    %243 = vmatpush2.msra.mxu0 0.0
    %244 = vmatprep.subr.mxu0 0.0
    %245 = vmatpush2.msra.mxu0 0.0
    %246 = vmatprep.subr.mxu0 0.0
    %247 = vmatpush2.msra.mxu0 0.0
    %248 = vmatprep.subr.mxu0 0.0
    %249 = vmatpush2.msra.mxu0 0.0
    %250 = vmatprep.subr.mxu0 0.0
    %251 = vmatpush2.msra.mxu0 0.0
    %252 = vmatprep.subr.mxu0 0.0
    %253 = vmatpush2.msra.mxu0 0.0
    %254 = vmatprep.subr.mxu0 0.0
    %255 = vmatpush2.msra.mxu0 0.0
    %256 = vmatprep.subr.mxu0 0.0
    %257 = vmatpush2.msra.mxu0 0.0
    %258 = vmatprep.subr.mxu0 0.0
    %259 = vmatpush2.msra.mxu0 0.0
    %260 = vmatprep.subr.mxu0 0.0
    %261 = vmatpush2.msra.mxu0 0.0
    %262 = vmatprep.mubr.f32.mxu0 0.0
    %263 = vmatmul.mubr.f32.gmra.mxu0 %v187
    %v264 = vpop.f32.mrf.mxu0
    %v265 = vadd.f32 0.0, %v264
    %v266 = vpop.f32.mrf.mxu0
    %267 = vmatprep.mubr.f32.mxu0 0.0
    %268 = vmatmul.mubr.f32.gmra.mxu0 %v190
    %v269 = vpop.f32.mrf.mxu0
    %v270 = vadd.f32 0.0, %v269
    %v271 = vpop.f32.mrf.mxu0
    %272 = vmatprep.mubr.f32.mxu0 0.0
    %273 = vmatmul.mubr.f32.gmra.mxu0 %v193
    %v274 = vpop.f32.mrf.mxu0
    %v275 = vadd.f32 0.0, %v274
    %v276 = vpop.f32.mrf.mxu0
    %277 = vmatprep.mubr.f32.mxu0 0.0
    %278 = vmatmul.mubr.f32.gmra.mxu0 %v196
    %v279 = vpop.f32.mrf.mxu0
    %v280 = vadd.f32 0.0, %v279
    %v281 = vpop.f32.mrf.mxu0
    %282 = vdwg.mxu0
    %v284 = vlaneseq
    %v285 = vshrl.u32 %v284, 7
    %v286 = vsub.s32 0, %v285
    %v287 = vrot.slane %v184, %v286
    %vm289 = vcmask 261120
    %v291 = vsel %vm289, %v170, 0
    %v294 = vsel %vm289, %v171, 0
    %v297 = vsel %vm289, %v172, 0
    %v300 = vsel %vm289, %v173, 0
    %302 = vmatprep.subr.mxu0 0.0
    %303 = vmatpush1.msra.mxu0 0.0
    %304 = vmatprep.subr.mxu0 0.0
    %305 = vmatpush1.msra.mxu0 0.0
    %306 = vmatprep.subr.mxu0 0.0
    %307 = vmatpush1.msra.mxu0 0.0
    %308 = vmatprep.subr.mxu0 0.0
    %309 = vmatpush1.msra.mxu0 0.0
    %310 = vmatprep.subr.mxu0 0.0
    %311 = vmatpush1.msra.mxu0 0.0
    %312 = vmatprep.subr.mxu0 0.0
    %313 = vmatpush1.msra.mxu0 0.0
    %314 = vmatprep.subr.mxu0 0.0
    %315 = vmatpush1.msra.mxu0 0.0
    %316 = vmatprep.subr.mxu0 0.0
    %317 = vmatpush1.msra.mxu0 0.0
    %318 = vmatprep.subr.mxu0 0.0
    %319 = vmatpush1.msra.mxu0 0.0
    %320 = vmatprep.subr.mxu0 0.0
    %321 = vmatpush1.msra.mxu0 0.0
    %322 = vmatprep.subr.mxu0 0.0
    %323 = vmatpush1.msra.mxu0 0.0
    %324 = vmatprep.subr.mxu0 0.0
    %325 = vmatpush1.msra.mxu0 0.0
    %326 = vmatprep.subr.mxu0 0.0
    %327 = vmatpush1.msra.mxu0 %v280
    %328 = vmatprep.subr.mxu0 0.0
    %329 = vmatpush1.msra.mxu0 %v275
    %330 = vmatprep.subr.mxu0 0.0
    %331 = vmatpush1.msra.mxu0 %v270
    %332 = vmatprep.subr.mxu0 0.0
    %333 = vmatpush1.msra.mxu0 %v265
    %334 = vmatprep.subr.mxu0 0.0
    %335 = vmatpush2.msra.mxu0 0.0
    %336 = vmatprep.subr.mxu0 0.0
    %337 = vmatpush2.msra.mxu0 0.0
    %338 = vmatprep.subr.mxu0 0.0
    %339 = vmatpush2.msra.mxu0 0.0
    %340 = vmatprep.subr.mxu0 0.0
    %341 = vmatpush2.msra.mxu0 0.0
    %342 = vmatprep.subr.mxu0 0.0
    %343 = vmatpush2.msra.mxu0 0.0
    %344 = vmatprep.subr.mxu0 0.0
    %345 = vmatpush2.msra.mxu0 0.0
    %346 = vmatprep.subr.mxu0 0.0
    %347 = vmatpush2.msra.mxu0 0.0
    %348 = vmatprep.subr.mxu0 0.0
    %349 = vmatpush2.msra.mxu0 0.0
    %350 = vmatprep.subr.mxu0 0.0
    %351 = vmatpush2.msra.mxu0 0.0
    %352 = vmatprep.subr.mxu0 0.0
    %353 = vmatpush2.msra.mxu0 0.0
    %354 = vmatprep.subr.mxu0 0.0
    %355 = vmatpush2.msra.mxu0 0.0
    %356 = vmatprep.subr.mxu0 0.0
    %357 = vmatpush2.msra.mxu0 0.0
    %358 = vmatprep.subr.mxu0 0.0
    %359 = vmatpush2.msra.mxu0 0.0
    %360 = vmatprep.subr.mxu0 0.0
    %361 = vmatpush2.msra.mxu0 0.0
    %362 = vmatprep.subr.mxu0 0.0
    %363 = vmatpush2.msra.mxu0 0.0
    %364 = vmatprep.subr.mxu0 0.0
    %365 = vmatpush2.msra.mxu0 0.0
    %366 = vmatprep.mubr.f32.mxu0 0.0
    %367 = vmatmul.mubr.f32.gmra.mxu0 %v291
    %v368 = vpop.f32.mrf.mxu0
    %v369 = vadd.f32 %v287, %v368
    %v370 = vpop.f32.mrf.mxu0
    %371 = vmatprep.mubr.f32.mxu0 0.0
    %372 = vmatmul.mubr.f32.gmra.mxu0 %v294
    %v373 = vpop.f32.mrf.mxu0
    %v374 = vadd.f32 %v287, %v373
    %v375 = vpop.f32.mrf.mxu0
    %376 = vmatprep.mubr.f32.mxu0 0.0
    %377 = vmatmul.mubr.f32.gmra.mxu0 %v297
    %v378 = vpop.f32.mrf.mxu0
    %v379 = vadd.f32 %v287, %v378
    %v380 = vpop.f32.mrf.mxu0
    %381 = vmatprep.mubr.f32.mxu0 0.0
    %382 = vmatmul.mubr.f32.gmra.mxu0 %v300
    %v383 = vpop.f32.mrf.mxu0
    %v384 = vadd.f32 %v287, %v383
    %v385 = vpop.f32.mrf.mxu0
    %386 = vdwg.mxu0
    %388 = vset.pattern.permute.xlu0 0
    %389 = vperm.xlu0 %388, %v174
    %v390 = vpop.permute.xlu0 %389
    %393 = vset.pattern.permute.xlu0 0
    %394 = vperm.xlu0 %393, %v175
    %v395 = vpop.permute.xlu0 %394
    %398 = vset.pattern.permute.xlu0 0
    %399 = vperm.xlu0 %398, %v176
    %v400 = vpop.permute.xlu0 %399
    %403 = vset.pattern.permute.xlu0 0
    %404 = vperm.xlu0 %403, %v177
    %v405 = vpop.permute.xlu0 %404
    %v407 = vmul.f32 %v369, %v390
    %v408 = vmul.f32 %v374, %v395
    %v409 = vmul.f32 %v379, %v400
    %v410 = vmul.f32 %v384, %v405
    %v411 = vmax.f32 %v407, 0.0
    %v412 = vmax.f32 %v408, 0.0
    %v413 = vmax.f32 %v409, 0.0
    %v414 = vmax.f32 %v410, 0.0
    %vm415 = vcmask 523264
    %v416 = vsel %vm415, %v411, 0.0
    %v417 = vsel %vm415, %v412, 0.0
    %v418 = vadd.f32 %v416, %v417
    %v419 = vsel %vm415, %v413, 0.0
    %v420 = vadd.f32 %v418, %v419
    %v421 = vsel %vm415, %v414, 0.0
    %v422 = vadd.f32 %v420, %v421
    %v423 = vrot.slane %v422, 4
    %v424 = vadd.f32 %v422, %v423
    %v425 = vrot.slane %v424, 2
    %v426 = vadd.f32 %v424, %v425
    %v427 = vrot.slane %v426, 1
    %v428 = vadd.f32 %v426, %v427
    %v429 = vmul.f32 %v428, 0.03125
    %v430 = vmul.f32 %v411, %v411
    %v431 = vmul.f32 %v412, %v412
    %v432 = vmul.f32 %v413, %v413
    %v433 = vmul.f32 %v414, %v414
    %v434 = vsel %vm415, %v430, 0.0
    %v435 = vsel %vm415, %v431, 0.0
    %v436 = vadd.f32 %v434, %v435
    %v437 = vsel %vm415, %v432, 0.0
    %v438 = vadd.f32 %v436, %v437
    %v439 = vsel %vm415, %v433, 0.0
    %v440 = vadd.f32 %v438, %v439
    %v441 = vrot.slane %v440, 4
    %v442 = vadd.f32 %v440, %v441
    %v443 = vrot.slane %v442, 2
    %v444 = vadd.f32 %v442, %v443
    %v445 = vrot.slane %v444, 1
    %v446 = vadd.f32 %v444, %v445
    %v447 = vmul.f32 %v446, 0.03125
    %v448 = vmul.f32 %v429, %v429
    %v449 = vsub.f32 %v447, %v448
    %v450 = vsub.f32 %v411, %v429
    %v451 = vsub.f32 %v412, %v429
    %v452 = vsub.f32 %v413, %v429
    %v453 = vsub.f32 %v414, %v429
    %v454 = vadd.f32 %v449, 1e-05
    %v455 = vrsqrt.pop %v454
    %v456 = vmul.f32 %v450, %v455
    %v457 = vmul.f32 %v451, %v455
    %v458 = vmul.f32 %v452, %v455
    %v459 = vmul.f32 %v453, %v455
    %v460 = vld [vmem:[%s5] sm:$0xff]
    %v461 = vld [vmem:[%s5 + $0x8] sm:$0xff]
    %v462 = vld [vmem:[%s5 + $0x10] sm:$0xff]
    %v463 = vld [vmem:[%s5 + $0x18] sm:$0xff]
    %v464 = vld [vmem:[%s5 + $0x20] sm:$0xff]
    %v465 = vld [vmem:[%s5 + $0x28] sm:$0xff]
    %v466 = vld [vmem:[%s5 + $0x30] sm:$0xff]
    %v467 = vld [vmem:[%s5 + $0x38] sm:$0xff]
    %v468 = vld [vmem:[#allocation7] sm:$0x1]
    %v470 = vsel %vm415, %v456, 0
    %v473 = vsel %vm415, %v457, 0
    %v476 = vsel %vm415, %v458, 0
    %v479 = vsel %vm415, %v459, 0
    %481 = vmatprep.subr.mxu0 0.0
    %482 = vmatpush1.msra.mxu0 0.0
    %483 = vmatprep.subr.mxu0 0.0
    %484 = vmatpush1.msra.mxu0 0.0
    %485 = vmatprep.subr.mxu0 0.0
    %486 = vmatpush1.msra.mxu0 0.0
    %487 = vmatprep.subr.mxu0 0.0
    %488 = vmatpush1.msra.mxu0 0.0
    %489 = vmatprep.subr.mxu0 0.0
    %490 = vmatpush1.msra.mxu0 0.0
    %491 = vmatprep.subr.mxu0 0.0
    %492 = vmatpush1.msra.mxu0 0.0
    %493 = vmatprep.subr.mxu0 0.0
    %494 = vmatpush1.msra.mxu0 0.0
    %495 = vmatprep.subr.mxu0 0.0
    %496 = vmatpush1.msra.mxu0 0.0
    %497 = vmatprep.subr.mxu0 0.0
    %498 = vmatpush1.msra.mxu0 %v467
    %499 = vmatprep.subr.mxu0 0.0
    %500 = vmatpush1.msra.mxu0 %v466
    %501 = vmatprep.subr.mxu0 0.0
    %502 = vmatpush1.msra.mxu0 %v465
    %503 = vmatprep.subr.mxu0 0.0
    %504 = vmatpush1.msra.mxu0 %v464
    %505 = vmatprep.subr.mxu0 0.0
    %506 = vmatpush1.msra.mxu0 %v463
    %507 = vmatprep.subr.mxu0 0.0
    %508 = vmatpush1.msra.mxu0 %v462
    %509 = vmatprep.subr.mxu0 0.0
    %510 = vmatpush1.msra.mxu0 %v461
    %511 = vmatprep.subr.mxu0 0.0
    %512 = vmatpush1.msra.mxu0 %v460
    %513 = vmatprep.subr.mxu0 0.0
    %514 = vmatpush2.msra.mxu0 0.0
    %515 = vmatprep.subr.mxu0 0.0
    %516 = vmatpush2.msra.mxu0 0.0
    %517 = vmatprep.subr.mxu0 0.0
    %518 = vmatpush2.msra.mxu0 0.0
    %519 = vmatprep.subr.mxu0 0.0
    %520 = vmatpush2.msra.mxu0 0.0
    %521 = vmatprep.subr.mxu0 0.0
    %522 = vmatpush2.msra.mxu0 0.0
    %523 = vmatprep.subr.mxu0 0.0
    %524 = vmatpush2.msra.mxu0 0.0
    %525 = vmatprep.subr.mxu0 0.0
    %526 = vmatpush2.msra.mxu0 0.0
    %527 = vmatprep.subr.mxu0 0.0
    %528 = vmatpush2.msra.mxu0 0.0
    %529 = vmatprep.subr.mxu0 0.0
    %530 = vmatpush2.msra.mxu0 0.0
    %531 = vmatprep.subr.mxu0 0.0
    %532 = vmatpush2.msra.mxu0 0.0
    %533 = vmatprep.subr.mxu0 0.0
    %534 = vmatpush2.msra.mxu0 0.0
    %535 = vmatprep.subr.mxu0 0.0
    %536 = vmatpush2.msra.mxu0 0.0
    %537 = vmatprep.subr.mxu0 0.0
    %538 = vmatpush2.msra.mxu0 0.0
    %539 = vmatprep.subr.mxu0 0.0
    %540 = vmatpush2.msra.mxu0 0.0
    %541 = vmatprep.subr.mxu0 0.0
    %542 = vmatpush2.msra.mxu0 0.0
    %543 = vmatprep.subr.mxu0 0.0
    %544 = vmatpush2.msra.mxu0 0.0
    %545 = vmatprep.mubr.f32.mxu0 0.0
    %546 = vmatmul.mubr.f32.gmra.mxu0 %v470
    %v547 = vpop.f32.mrf.mxu0
    %v548 = vadd.f32 0.0, %v547
    %v549 = vpop.f32.mrf.mxu0
    %550 = vmatprep.mubr.f32.mxu0 0.0
    %551 = vmatmul.mubr.f32.gmra.mxu0 %v473
    %v552 = vpop.f32.mrf.mxu0
    %v553 = vadd.f32 0.0, %v552
    %v554 = vpop.f32.mrf.mxu0
    %555 = vmatprep.mubr.f32.mxu0 0.0
    %556 = vmatmul.mubr.f32.gmra.mxu0 %v476
    %v557 = vpop.f32.mrf.mxu0
    %v558 = vadd.f32 0.0, %v557
    %v559 = vpop.f32.mrf.mxu0
    %560 = vmatprep.mubr.f32.mxu0 0.0
    %561 = vmatmul.mubr.f32.gmra.mxu0 %v479
    %v562 = vpop.f32.mrf.mxu0
    %v563 = vadd.f32 0.0, %v562
    %v564 = vpop.f32.mrf.mxu0
    %565 = vdwg.mxu0
    %v567 = vlaneseq
    %v568 = vshrl.u32 %v567, 7
    %v569 = vsub.s32 0, %v568
    %v570 = vrot.slane %v468, %v569
    %572 = vmatprep.subr.mxu0 0.0
    %573 = vmatpush1.msra.mxu0 0.0
    %574 = vmatprep.subr.mxu0 0.0
    %575 = vmatpush1.msra.mxu0 0.0
    %576 = vmatprep.subr.mxu0 0.0
    %577 = vmatpush1.msra.mxu0 0.0
    %578 = vmatprep.subr.mxu0 0.0
    %579 = vmatpush1.msra.mxu0 0.0
    %580 = vmatprep.subr.mxu0 0.0
    %581 = vmatpush1.msra.mxu0 0.0
    %582 = vmatprep.subr.mxu0 0.0
    %583 = vmatpush1.msra.mxu0 0.0
    %584 = vmatprep.subr.mxu0 0.0
    %585 = vmatpush1.msra.mxu0 0.0
    %586 = vmatprep.subr.mxu0 0.0
    %587 = vmatpush1.msra.mxu0 0.0
    %588 = vmatprep.subr.mxu0 0.0
    %589 = vmatpush1.msra.mxu0 0.0
    %590 = vmatprep.subr.mxu0 0.0
    %591 = vmatpush1.msra.mxu0 0.0
    %592 = vmatprep.subr.mxu0 0.0
    %593 = vmatpush1.msra.mxu0 0.0
    %594 = vmatprep.subr.mxu0 0.0
    %595 = vmatpush1.msra.mxu0 0.0
    %596 = vmatprep.subr.mxu0 0.0
    %597 = vmatpush1.msra.mxu0 %v563
    %598 = vmatprep.subr.mxu0 0.0
    %599 = vmatpush1.msra.mxu0 %v558
    %600 = vmatprep.subr.mxu0 0.0
    %601 = vmatpush1.msra.mxu0 %v553
    %602 = vmatprep.subr.mxu0 0.0
    %603 = vmatpush1.msra.mxu0 %v548
    %604 = vmatprep.subr.mxu0 0.0
    %605 = vmatpush2.msra.mxu0 0.0
    %606 = vmatprep.subr.mxu0 0.0
    %607 = vmatpush2.msra.mxu0 0.0
    %608 = vmatprep.subr.mxu0 0.0
    %609 = vmatpush2.msra.mxu0 0.0
    %610 = vmatprep.subr.mxu0 0.0
    %611 = vmatpush2.msra.mxu0 0.0
    %612 = vmatprep.subr.mxu0 0.0
    %613 = vmatpush2.msra.mxu0 0.0
    %614 = vmatprep.subr.mxu0 0.0
    %615 = vmatpush2.msra.mxu0 0.0
    %616 = vmatprep.subr.mxu0 0.0
    %617 = vmatpush2.msra.mxu0 0.0
    %618 = vmatprep.subr.mxu0 0.0
    %619 = vmatpush2.msra.mxu0 0.0
    %620 = vmatprep.subr.mxu0 0.0
    %621 = vmatpush2.msra.mxu0 0.0
    %622 = vmatprep.subr.mxu0 0.0
    %623 = vmatpush2.msra.mxu0 0.0
    %624 = vmatprep.subr.mxu0 0.0
    %625 = vmatpush2.msra.mxu0 0.0
    %626 = vmatprep.subr.mxu0 0.0
    %627 = vmatpush2.msra.mxu0 0.0
    %628 = vmatprep.subr.mxu0 0.0
    %629 = vmatpush2.msra.mxu0 0.0
    %630 = vmatprep.subr.mxu0 0.0
    %631 = vmatpush2.msra.mxu0 0.0
    %632 = vmatprep.subr.mxu0 0.0
    %633 = vmatpush2.msra.mxu0 0.0
    %634 = vmatprep.subr.mxu0 0.0
    %635 = vmatpush2.msra.mxu0 0.0
    %636 = vmatprep.mubr.f32.mxu0 0.0
    %637 = vmatmul.mubr.f32.gmra.mxu0 %v291
    %v638 = vpop.f32.mrf.mxu0
    %v639 = vadd.f32 %v570, %v638
    %v640 = vpop.f32.mrf.mxu0
    %641 = vmatprep.mubr.f32.mxu0 0.0
    %642 = vmatmul.mubr.f32.gmra.mxu0 %v294
    %v643 = vpop.f32.mrf.mxu0
    %v644 = vadd.f32 %v570, %v643
    %v645 = vpop.f32.mrf.mxu0
    %646 = vmatprep.mubr.f32.mxu0 0.0
    %647 = vmatmul.mubr.f32.gmra.mxu0 %v297
    %v648 = vpop.f32.mrf.mxu0
    %v649 = vadd.f32 %v570, %v648
    %v650 = vpop.f32.mrf.mxu0
    %651 = vmatprep.mubr.f32.mxu0 0.0
    %652 = vmatmul.mubr.f32.gmra.mxu0 %v300
    %v653 = vpop.f32.mrf.mxu0
    %v654 = vadd.f32 %v570, %v653
    %v655 = vpop.f32.mrf.mxu0
    %656 = vdwg.mxu0
    %v657 = vmul.f32 %v639, %v390
    %v658 = vmul.f32 %v644, %v395
    %v659 = vmul.f32 %v649, %v400
    %v660 = vmul.f32 %v654, %v405
    %v661 = vmax.f32 %v657, 0.0
    %v662 = vmax.f32 %v658, 0.0
    %v663 = vmax.f32 %v659, 0.0
    %v664 = vmax.f32 %v660, 0.0
    %v665 = vsel %vm415, %v661, 0.0
    %v666 = vsel %vm415, %v662, 0.0
    %v667 = vadd.f32 %v665, %v666
    %v668 = vsel %vm415, %v663, 0.0
    %v669 = vadd.f32 %v667, %v668
    %v670 = vsel %vm415, %v664, 0.0
    %v671 = vadd.f32 %v669, %v670
    %v672 = vrot.slane %v671, 4
    %v673 = vadd.f32 %v671, %v672
    %v674 = vrot.slane %v673, 2
    %v675 = vadd.f32 %v673, %v674
    %v676 = vrot.slane %v675, 1
    %v677 = vadd.f32 %v675, %v676
    %v678 = vmul.f32 %v677, 0.03125
    %v679 = vmul.f32 %v661, %v661
    %v680 = vmul.f32 %v662, %v662
    %v681 = vmul.f32 %v663, %v663
    %v682 = vmul.f32 %v664, %v664
    %v683 = vsel %vm415, %v679, 0.0
    %v684 = vsel %vm415, %v680, 0.0
    %v685 = vadd.f32 %v683, %v684
    %v686 = vsel %vm415, %v681, 0.0
    %v687 = vadd.f32 %v685, %v686
    %v688 = vsel %vm415, %v682, 0.0
    %v689 = vadd.f32 %v687, %v688
    %v690 = vrot.slane %v689, 4
    %v691 = vadd.f32 %v689, %v690
    %v692 = vrot.slane %v691, 2
    %v693 = vadd.f32 %v691, %v692
    %v694 = vrot.slane %v693, 1
    %v695 = vadd.f32 %v693, %v694
    %v696 = vmul.f32 %v695, 0.03125
    %v697 = vmul.f32 %v678, %v678
    %v698 = vsub.f32 %v696, %v697
    %v699 = vsub.f32 %v661, %v678
    %v700 = vsub.f32 %v662, %v678
    %v701 = vsub.f32 %v663, %v678
    %v702 = vsub.f32 %v664, %v678
    %v703 = vadd.f32 %v698, 1e-05
    %v704 = vrsqrt.pop %v703
    %v705 = vmul.f32 %v699, %v704
    %v706 = vmul.f32 %v700, %v704
    %v707 = vmul.f32 %v701, %v704
    %v708 = vmul.f32 %v702, %v704
    %v709 = vld [vmem:[%s7] sm:$0xff]
    %v710 = vld [vmem:[%s7 + $0x8] sm:$0xff]
    %v711 = vld [vmem:[%s7 + $0x10] sm:$0xff]
    %v712 = vld [vmem:[%s7 + $0x18] sm:$0xff]
    %v713 = vld [vmem:[%s7 + $0x20] sm:$0xff]
    %v714 = vld [vmem:[%s7 + $0x28] sm:$0xff]
    %v715 = vld [vmem:[%s7 + $0x30] sm:$0xff]
    %v716 = vld [vmem:[%s7 + $0x38] sm:$0xff]
    %v717 = vld [vmem:[#allocation8] sm:$0x1]
    %v719 = vsel %vm415, %v705, 0
    %v722 = vsel %vm415, %v706, 0
    %v725 = vsel %vm415, %v707, 0
    %v728 = vsel %vm415, %v708, 0
    %730 = vmatprep.subr.mxu0 0.0
    %731 = vmatpush1.msra.mxu0 0.0
    %732 = vmatprep.subr.mxu0 0.0
    %733 = vmatpush1.msra.mxu0 0.0
    %734 = vmatprep.subr.mxu0 0.0
    %735 = vmatpush1.msra.mxu0 0.0
    %736 = vmatprep.subr.mxu0 0.0
    %737 = vmatpush1.msra.mxu0 0.0
    %738 = vmatprep.subr.mxu0 0.0
    %739 = vmatpush1.msra.mxu0 0.0
    %740 = vmatprep.subr.mxu0 0.0
    %741 = vmatpush1.msra.mxu0 0.0
    %742 = vmatprep.subr.mxu0 0.0
    %743 = vmatpush1.msra.mxu0 0.0
    %744 = vmatprep.subr.mxu0 0.0
    %745 = vmatpush1.msra.mxu0 0.0
    %746 = vmatprep.subr.mxu0 0.0
    %747 = vmatpush1.msra.mxu0 %v716
    %748 = vmatprep.subr.mxu0 0.0
    %749 = vmatpush1.msra.mxu0 %v715
    %750 = vmatprep.subr.mxu0 0.0
    %751 = vmatpush1.msra.mxu0 %v714
    %752 = vmatprep.subr.mxu0 0.0
    %753 = vmatpush1.msra.mxu0 %v713
    %754 = vmatprep.subr.mxu0 0.0
    %755 = vmatpush1.msra.mxu0 %v712
    %756 = vmatprep.subr.mxu0 0.0
    %757 = vmatpush1.msra.mxu0 %v711
    %758 = vmatprep.subr.mxu0 0.0
    %759 = vmatpush1.msra.mxu0 %v710
    %760 = vmatprep.subr.mxu0 0.0
    %761 = vmatpush1.msra.mxu0 %v709
    %762 = vmatprep.subr.mxu0 0.0
    %763 = vmatpush2.msra.mxu0 0.0
    %764 = vmatprep.subr.mxu0 0.0
    %765 = vmatpush2.msra.mxu0 0.0
    %766 = vmatprep.subr.mxu0 0.0
    %767 = vmatpush2.msra.mxu0 0.0
    %768 = vmatprep.subr.mxu0 0.0
    %769 = vmatpush2.msra.mxu0 0.0
    %770 = vmatprep.subr.mxu0 0.0
    %771 = vmatpush2.msra.mxu0 0.0
    %772 = vmatprep.subr.mxu0 0.0
    %773 = vmatpush2.msra.mxu0 0.0
    %774 = vmatprep.subr.mxu0 0.0
    %775 = vmatpush2.msra.mxu0 0.0
    %776 = vmatprep.subr.mxu0 0.0
    %777 = vmatpush2.msra.mxu0 0.0
    %778 = vmatprep.subr.mxu0 0.0
    %779 = vmatpush2.msra.mxu0 0.0
    %780 = vmatprep.subr.mxu0 0.0
    %781 = vmatpush2.msra.mxu0 0.0
    %782 = vmatprep.subr.mxu0 0.0
    %783 = vmatpush2.msra.mxu0 0.0
    %784 = vmatprep.subr.mxu0 0.0
    %785 = vmatpush2.msra.mxu0 0.0
    %786 = vmatprep.subr.mxu0 0.0
    %787 = vmatpush2.msra.mxu0 0.0
    %788 = vmatprep.subr.mxu0 0.0
    %789 = vmatpush2.msra.mxu0 0.0
    %790 = vmatprep.subr.mxu0 0.0
    %791 = vmatpush2.msra.mxu0 0.0
    %792 = vmatprep.subr.mxu0 0.0
    %793 = vmatpush2.msra.mxu0 0.0
    %794 = vmatprep.mubr.f32.mxu0 0.0
    %795 = vmatmul.mubr.f32.gmra.mxu0 %v719
    %v796 = vpop.f32.mrf.mxu0
    %v797 = vadd.f32 0.0, %v796
    %v798 = vpop.f32.mrf.mxu0
    %799 = vmatprep.mubr.f32.mxu0 0.0
    %800 = vmatmul.mubr.f32.gmra.mxu0 %v722
    %v801 = vpop.f32.mrf.mxu0
    %v802 = vadd.f32 0.0, %v801
    %v803 = vpop.f32.mrf.mxu0
    %804 = vmatprep.mubr.f32.mxu0 0.0
    %805 = vmatmul.mubr.f32.gmra.mxu0 %v725
    %v806 = vpop.f32.mrf.mxu0
    %v807 = vadd.f32 0.0, %v806
    %v808 = vpop.f32.mrf.mxu0
    %809 = vmatprep.mubr.f32.mxu0 0.0
    %810 = vmatmul.mubr.f32.gmra.mxu0 %v728
    %v811 = vpop.f32.mrf.mxu0
    %v812 = vadd.f32 0.0, %v811
    %v813 = vpop.f32.mrf.mxu0
    %814 = vdwg.mxu0
    %v816 = vlaneseq
    %v817 = vshrl.u32 %v816, 7
    %v818 = vsub.s32 0, %v817
    %v819 = vrot.slane %v717, %v818
    %821 = vmatprep.subr.mxu0 0.0
    %822 = vmatpush1.msra.mxu0 0.0
    %823 = vmatprep.subr.mxu0 0.0
    %824 = vmatpush1.msra.mxu0 0.0
    %825 = vmatprep.subr.mxu0 0.0
    %826 = vmatpush1.msra.mxu0 0.0
    %827 = vmatprep.subr.mxu0 0.0
    %828 = vmatpush1.msra.mxu0 0.0
    %829 = vmatprep.subr.mxu0 0.0
    %830 = vmatpush1.msra.mxu0 0.0
    %831 = vmatprep.subr.mxu0 0.0
    %832 = vmatpush1.msra.mxu0 0.0
    %833 = vmatprep.subr.mxu0 0.0
    %834 = vmatpush1.msra.mxu0 0.0
    %835 = vmatprep.subr.mxu0 0.0
    %836 = vmatpush1.msra.mxu0 0.0
    %837 = vmatprep.subr.mxu0 0.0
    %838 = vmatpush1.msra.mxu0 0.0
    %839 = vmatprep.subr.mxu0 0.0
    %840 = vmatpush1.msra.mxu0 0.0
    %841 = vmatprep.subr.mxu0 0.0
    %842 = vmatpush1.msra.mxu0 0.0
    %843 = vmatprep.subr.mxu0 0.0
    %844 = vmatpush1.msra.mxu0 0.0
    %845 = vmatprep.subr.mxu0 0.0
    %846 = vmatpush1.msra.mxu0 %v812
    %847 = vmatprep.subr.mxu0 0.0
    %848 = vmatpush1.msra.mxu0 %v807
    %849 = vmatprep.subr.mxu0 0.0
    %850 = vmatpush1.msra.mxu0 %v802
    %851 = vmatprep.subr.mxu0 0.0
    %852 = vmatpush1.msra.mxu0 %v797
    %853 = vmatprep.subr.mxu0 0.0
    %854 = vmatpush2.msra.mxu0 0.0
    %855 = vmatprep.subr.mxu0 0.0
    %856 = vmatpush2.msra.mxu0 0.0
    %857 = vmatprep.subr.mxu0 0.0
    %858 = vmatpush2.msra.mxu0 0.0
    %859 = vmatprep.subr.mxu0 0.0
    %860 = vmatpush2.msra.mxu0 0.0
    %861 = vmatprep.subr.mxu0 0.0
    %862 = vmatpush2.msra.mxu0 0.0
    %863 = vmatprep.subr.mxu0 0.0
    %864 = vmatpush2.msra.mxu0 0.0
    %865 = vmatprep.subr.mxu0 0.0
    %866 = vmatpush2.msra.mxu0 0.0
    %867 = vmatprep.subr.mxu0 0.0
    %868 = vmatpush2.msra.mxu0 0.0
    %869 = vmatprep.subr.mxu0 0.0
    %870 = vmatpush2.msra.mxu0 0.0
    %871 = vmatprep.subr.mxu0 0.0
    %872 = vmatpush2.msra.mxu0 0.0
    %873 = vmatprep.subr.mxu0 0.0
    %874 = vmatpush2.msra.mxu0 0.0
    %875 = vmatprep.subr.mxu0 0.0
    %876 = vmatpush2.msra.mxu0 0.0
    %877 = vmatprep.subr.mxu0 0.0
    %878 = vmatpush2.msra.mxu0 0.0
    %879 = vmatprep.subr.mxu0 0.0
    %880 = vmatpush2.msra.mxu0 0.0
    %881 = vmatprep.subr.mxu0 0.0
    %882 = vmatpush2.msra.mxu0 0.0
    %883 = vmatprep.subr.mxu0 0.0
    %884 = vmatpush2.msra.mxu0 0.0
    %885 = vmatprep.mubr.f32.mxu0 0.0
    %886 = vmatmul.mubr.f32.gmra.mxu0 %v291
    %v887 = vpop.f32.mrf.mxu0
    %v888 = vadd.f32 %v819, %v887
    %v889 = vpop.f32.mrf.mxu0
    %890 = vmatprep.mubr.f32.mxu0 0.0
    %891 = vmatmul.mubr.f32.gmra.mxu0 %v294
    %v892 = vpop.f32.mrf.mxu0
    %v893 = vadd.f32 %v819, %v892
    %v894 = vpop.f32.mrf.mxu0
    %895 = vmatprep.mubr.f32.mxu0 0.0
    %896 = vmatmul.mubr.f32.gmra.mxu0 %v297
    %v897 = vpop.f32.mrf.mxu0
    %v898 = vadd.f32 %v819, %v897
    %v899 = vpop.f32.mrf.mxu0
    %900 = vmatprep.mubr.f32.mxu0 0.0
    %901 = vmatmul.mubr.f32.gmra.mxu0 %v300
    %v902 = vpop.f32.mrf.mxu0
    %v903 = vadd.f32 %v819, %v902
    %v904 = vpop.f32.mrf.mxu0
    %905 = vdwg.mxu0
    %v906 = vmul.f32 %v888, %v390
    %v907 = vmul.f32 %v893, %v395
    %v908 = vmul.f32 %v898, %v400
    %v909 = vmul.f32 %v903, %v405
    %v910 = vmax.f32 %v906, 0.0
    %v911 = vmax.f32 %v907, 0.0
    %v912 = vmax.f32 %v908, 0.0
    %v913 = vmax.f32 %v909, 0.0
    %vm914 = vcmask 64512
    %v915 = vsel %vm914, %v910, 0.0
    %v916 = vsel %vm914, %v911, 0.0
    %v917 = vadd.f32 %v915, %v916
    %v918 = vsel %vm914, %v912, 0.0
    %v919 = vadd.f32 %v917, %v918
    %v920 = vsel %vm914, %v913, 0.0
    %v921 = vadd.f32 %v919, %v920
    %v922 = vrot.slane %v921, 4
    %v923 = vadd.f32 %v921, %v922
    %v924 = vrot.slane %v923, 2
    %v925 = vadd.f32 %v923, %v924
    %v926 = vrot.slane %v925, 1
    %v927 = vadd.f32 %v925, %v926
    %v928 = vmul.f32 %v927, 0.03125
    %v929 = vmul.f32 %v910, %v910
    %v930 = vmul.f32 %v911, %v911
    %v931 = vmul.f32 %v912, %v912
    %v932 = vmul.f32 %v913, %v913
    %v933 = vsel %vm914, %v929, 0.0
    %v934 = vsel %vm914, %v930, 0.0
    %v935 = vadd.f32 %v933, %v934
    %v936 = vsel %vm914, %v931, 0.0
    %v937 = vadd.f32 %v935, %v936
    %v938 = vsel %vm914, %v932, 0.0
    %v939 = vadd.f32 %v937, %v938
    %v940 = vrot.slane %v939, 4
    %v941 = vadd.f32 %v939, %v940
    %v942 = vrot.slane %v941, 2
    %v943 = vadd.f32 %v941, %v942
    %v944 = vrot.slane %v943, 1
    %v945 = vadd.f32 %v943, %v944
    %v946 = vmul.f32 %v945, 0.03125
    %v947 = vmul.f32 %v928, %v928
    %v948 = vsub.f32 %v946, %v947
    %v949 = vsub.f32 %v910, %v928
    %v950 = vsub.f32 %v911, %v928
    %v951 = vsub.f32 %v912, %v928
    %v952 = vsub.f32 %v913, %v928
    %v953 = vadd.f32 %v948, 1e-05
    %v954 = vrsqrt.pop %v953
    %v955 = vmul.f32 %v949, %v954
    %v956 = vmul.f32 %v950, %v954
    %v957 = vmul.f32 %v951, %v954
    %v958 = vmul.f32 %v952, %v954
    %v959 = vld [vmem:[#allocation10] sm:$0xff]
    %v960 = vld [vmem:[#allocation10 + $0x8] sm:$0xff]
    %v961 = vld [vmem:[#allocation11] sm:$0x1]
    %962 = vmatprep.subr.mxu0 0.0
    %963 = vmatpush1.msra.mxu0 0.0
    %964 = vmatprep.subr.mxu0 0.0
    %965 = vmatpush1.msra.mxu0 0.0
    %966 = vmatprep.subr.mxu0 0.0
    %967 = vmatpush1.msra.mxu0 0.0
    %968 = vmatprep.subr.mxu0 0.0
    %969 = vmatpush1.msra.mxu0 0.0
    %970 = vmatprep.subr.mxu0 0.0
    %971 = vmatpush1.msra.mxu0 0.0
    %972 = vmatprep.subr.mxu0 0.0
    %973 = vmatpush1.msra.mxu0 0.0
    %974 = vmatprep.subr.mxu0 0.0
    %975 = vmatpush1.msra.mxu0 0.0
    %976 = vmatprep.subr.mxu0 0.0
    %977 = vmatpush1.msra.mxu0 0.0
    %978 = vmatprep.subr.mxu0 0.0
    %979 = vmatpush1.msra.mxu0 0.0
    %980 = vmatprep.subr.mxu0 0.0
    %981 = vmatpush1.msra.mxu0 0.0
    %982 = vmatprep.subr.mxu0 0.0
    %983 = vmatpush1.msra.mxu0 0.0
    %984 = vmatprep.subr.mxu0 0.0
    %985 = vmatpush1.msra.mxu0 0.0
    %986 = vmatprep.subr.mxu0 0.0
    %987 = vmatpush1.msra.mxu0 0.0
    %988 = vmatprep.subr.mxu0 0.0
    %989 = vmatpush1.msra.mxu0 0.0
    %990 = vmatprep.subr.mxu0 0.0
    %991 = vmatpush1.msra.mxu0 %v960
    %992 = vmatprep.subr.mxu0 0.0
    %993 = vmatpush1.msra.mxu0 %v959
    %994 = vmatprep.subr.mxu0 0.0
    %995 = vmatpush2.msra.mxu0 0.0
    %996 = vmatprep.subr.mxu0 0.0
    %997 = vmatpush2.msra.mxu0 0.0
    %998 = vmatprep.subr.mxu0 0.0
    %999 = vmatpush2.msra.mxu0 0.0
    %1000 = vmatprep.subr.mxu0 0.0
    %1001 = vmatpush2.msra.mxu0 0.0
    %1002 = vmatprep.subr.mxu0 0.0
    %1003 = vmatpush2.msra.mxu0 0.0
    %1004 = vmatprep.subr.mxu0 0.0
    %1005 = vmatpush2.msra.mxu0 0.0
    %1006 = vmatprep.subr.mxu0 0.0
    %1007 = vmatpush2.msra.mxu0 0.0
    %1008 = vmatprep.subr.mxu0 0.0
    %1009 = vmatpush2.msra.mxu0 0.0
    %1010 = vmatprep.subr.mxu0 0.0
    %1011 = vmatpush2.msra.mxu0 0.0
    %1012 = vmatprep.subr.mxu0 0.0
    %1013 = vmatpush2.msra.mxu0 0.0
    %1014 = vmatprep.subr.mxu0 0.0
    %1015 = vmatpush2.msra.mxu0 0.0
    %1016 = vmatprep.subr.mxu0 0.0
    %1017 = vmatpush2.msra.mxu0 0.0
    %1018 = vmatprep.subr.mxu0 0.0
    %1019 = vmatpush2.msra.mxu0 0.0
    %1020 = vmatprep.subr.mxu0 0.0
    %1021 = vmatpush2.msra.mxu0 0.0
    %1022 = vmatprep.subr.mxu0 0.0
    %1023 = vmatpush2.msra.mxu0 0.0
    %1024 = vmatprep.subr.mxu0 0.0
    %1025 = vmatpush2.msra.mxu0 0.0
    %1026 = vmatprep.mubr.f32.mxu0 0.0
    %1027 = vmatmul.mubr.f32.gmra.mxu0 %v187
    %v1028 = vpop.f32.mrf.mxu0
    %v1029 = vadd.f32 0.0, %v1028
    %v1030 = vpop.f32.mrf.mxu0
    %1031 = vmatprep.mubr.f32.mxu0 0.0
    %1032 = vmatmul.mubr.f32.gmra.mxu0 %v190
    %v1033 = vpop.f32.mrf.mxu0
    %v1034 = vadd.f32 0.0, %v1033
    %v1035 = vpop.f32.mrf.mxu0
    %1036 = vmatprep.mubr.f32.mxu0 0.0
    %1037 = vmatmul.mubr.f32.gmra.mxu0 %v193
    %v1038 = vpop.f32.mrf.mxu0
    %v1039 = vadd.f32 0.0, %v1038
    %v1040 = vpop.f32.mrf.mxu0
    %1041 = vmatprep.mubr.f32.mxu0 0.0
    %1042 = vmatmul.mubr.f32.gmra.mxu0 %v196
    %v1043 = vpop.f32.mrf.mxu0
    %v1044 = vadd.f32 0.0, %v1043
    %v1045 = vpop.f32.mrf.mxu0
    %1046 = vdwg.mxu0
    %v1048 = vlaneseq
    %v1049 = vshrl.u32 %v1048, 7
    %v1050 = vsub.s32 0, %v1049
    %v1051 = vrot.slane %v961, %v1050
    %1053 = vmatprep.subr.mxu0 0.0
    %1054 = vmatpush1.msra.mxu0 0.0
    %1055 = vmatprep.subr.mxu0 0.0
    %1056 = vmatpush1.msra.mxu0 0.0
    %1057 = vmatprep.subr.mxu0 0.0
    %1058 = vmatpush1.msra.mxu0 0.0
    %1059 = vmatprep.subr.mxu0 0.0
    %1060 = vmatpush1.msra.mxu0 0.0
    %1061 = vmatprep.subr.mxu0 0.0
    %1062 = vmatpush1.msra.mxu0 0.0
    %1063 = vmatprep.subr.mxu0 0.0
    %1064 = vmatpush1.msra.mxu0 0.0
    %1065 = vmatprep.subr.mxu0 0.0
    %1066 = vmatpush1.msra.mxu0 0.0
    %1067 = vmatprep.subr.mxu0 0.0
    %1068 = vmatpush1.msra.mxu0 0.0
    %1069 = vmatprep.subr.mxu0 0.0
    %1070 = vmatpush1.msra.mxu0 0.0
    %1071 = vmatprep.subr.mxu0 0.0
    %1072 = vmatpush1.msra.mxu0 0.0
    %1073 = vmatprep.subr.mxu0 0.0
    %1074 = vmatpush1.msra.mxu0 0.0
    %1075 = vmatprep.subr.mxu0 0.0
    %1076 = vmatpush1.msra.mxu0 0.0
    %1077 = vmatprep.subr.mxu0 0.0
    %1078 = vmatpush1.msra.mxu0 %v1044
    %1079 = vmatprep.subr.mxu0 0.0
    %1080 = vmatpush1.msra.mxu0 %v1039
    %1081 = vmatprep.subr.mxu0 0.0
    %1082 = vmatpush1.msra.mxu0 %v1034
    %1083 = vmatprep.subr.mxu0 0.0
    %1084 = vmatpush1.msra.mxu0 %v1029
    %1085 = vmatprep.subr.mxu0 0.0
    %1086 = vmatpush2.msra.mxu0 0.0
    %1087 = vmatprep.subr.mxu0 0.0
    %1088 = vmatpush2.msra.mxu0 0.0
    %1089 = vmatprep.subr.mxu0 0.0
    %1090 = vmatpush2.msra.mxu0 0.0
    %1091 = vmatprep.subr.mxu0 0.0
    %1092 = vmatpush2.msra.mxu0 0.0
    %1093 = vmatprep.subr.mxu0 0.0
    %1094 = vmatpush2.msra.mxu0 0.0
    %1095 = vmatprep.subr.mxu0 0.0
    %1096 = vmatpush2.msra.mxu0 0.0
    %1097 = vmatprep.subr.mxu0 0.0
    %1098 = vmatpush2.msra.mxu0 0.0
    %1099 = vmatprep.subr.mxu0 0.0
    %1100 = vmatpush2.msra.mxu0 0.0
    %1101 = vmatprep.subr.mxu0 0.0
    %1102 = vmatpush2.msra.mxu0 0.0
    %1103 = vmatprep.subr.mxu0 0.0
    %1104 = vmatpush2.msra.mxu0 0.0
    %1105 = vmatprep.subr.mxu0 0.0
    %1106 = vmatpush2.msra.mxu0 0.0
    %1107 = vmatprep.subr.mxu0 0.0
    %1108 = vmatpush2.msra.mxu0 0.0
    %1109 = vmatprep.subr.mxu0 0.0
    %1110 = vmatpush2.msra.mxu0 0.0
    %1111 = vmatprep.subr.mxu0 0.0
    %1112 = vmatpush2.msra.mxu0 0.0
    %1113 = vmatprep.subr.mxu0 0.0
    %1114 = vmatpush2.msra.mxu0 0.0
    %1115 = vmatprep.subr.mxu0 0.0
    %1116 = vmatpush2.msra.mxu0 0.0
    %1117 = vmatprep.mubr.f32.mxu0 0.0
    %1118 = vmatmul.mubr.f32.gmra.mxu0 %v291
    %v1119 = vpop.f32.mrf.mxu0
    %v1120 = vadd.f32 %v1051, %v1119
    %v1121 = vpop.f32.mrf.mxu0
    %1122 = vmatprep.mubr.f32.mxu0 0.0
    %1123 = vmatmul.mubr.f32.gmra.mxu0 %v294
    %v1124 = vpop.f32.mrf.mxu0
    %v1125 = vadd.f32 %v1051, %v1124
    %v1126 = vpop.f32.mrf.mxu0
    %1127 = vmatprep.mubr.f32.mxu0 0.0
    %1128 = vmatmul.mubr.f32.gmra.mxu0 %v297
    %v1129 = vpop.f32.mrf.mxu0
    %v1130 = vadd.f32 %v1051, %v1129
    %v1131 = vpop.f32.mrf.mxu0
    %1132 = vmatprep.mubr.f32.mxu0 0.0
    %1133 = vmatmul.mubr.f32.gmra.mxu0 %v300
    %v1134 = vpop.f32.mrf.mxu0
    %v1135 = vadd.f32 %v1051, %v1134
    %v1136 = vpop.f32.mrf.mxu0
    %1137 = vdwg.mxu0
    %v1138 = vmul.f32 %v1120, %v390
    %v1139 = vmul.f32 %v1125, %v395
    %v1140 = vmul.f32 %v1130, %v400
    %v1141 = vmul.f32 %v1135, %v405
    %v1142 = vmax.f32 %v1138, 0.0
    %v1143 = vmax.f32 %v1139, 0.0
    %v1144 = vmax.f32 %v1140, 0.0
    %v1145 = vmax.f32 %v1141, 0.0
    %v1146 = vsel %vm415, %v1142, 0.0
    %v1147 = vsel %vm415, %v1143, 0.0
    %v1148 = vadd.f32 %v1146, %v1147
    %v1149 = vsel %vm415, %v1144, 0.0
    %v1150 = vadd.f32 %v1148, %v1149
    %v1151 = vsel %vm415, %v1145, 0.0
    %v1152 = vadd.f32 %v1150, %v1151
    %v1153 = vrot.slane %v1152, 4
    %v1154 = vadd.f32 %v1152, %v1153
    %v1155 = vrot.slane %v1154, 2
    %v1156 = vadd.f32 %v1154, %v1155
    %v1157 = vrot.slane %v1156, 1
    %v1158 = vadd.f32 %v1156, %v1157
    %v1159 = vmul.f32 %v1158, 0.03125
    %v1160 = vmul.f32 %v1142, %v1142
    %v1161 = vmul.f32 %v1143, %v1143
    %v1162 = vmul.f32 %v1144, %v1144
    %v1163 = vmul.f32 %v1145, %v1145
    %v1164 = vsel %vm415, %v1160, 0.0
    %v1165 = vsel %vm415, %v1161, 0.0
    %v1166 = vadd.f32 %v1164, %v1165
    %v1167 = vsel %vm415, %v1162, 0.0
    %v1168 = vadd.f32 %v1166, %v1167
    %v1169 = vsel %vm415, %v1163, 0.0
    %v1170 = vadd.f32 %v1168, %v1169
    %v1171 = vrot.slane %v1170, 4
    %v1172 = vadd.f32 %v1170, %v1171
    %v1173 = vrot.slane %v1172, 2
    %v1174 = vadd.f32 %v1172, %v1173
    %v1175 = vrot.slane %v1174, 1
    %v1176 = vadd.f32 %v1174, %v1175
    %v1177 = vmul.f32 %v1176, 0.03125
    %v1178 = vmul.f32 %v1159, %v1159
    %v1179 = vsub.f32 %v1177, %v1178
    %v1180 = vsub.f32 %v1142, %v1159
    %v1181 = vsub.f32 %v1143, %v1159
    %v1182 = vsub.f32 %v1144, %v1159
    %v1183 = vsub.f32 %v1145, %v1159
    %v1184 = vadd.f32 %v1179, 1e-05
    %v1185 = vrsqrt.pop %v1184
    %v1186 = vmul.f32 %v1180, %v1185
    %v1187 = vmul.f32 %v1181, %v1185
    %v1188 = vmul.f32 %v1182, %v1185
    %v1189 = vmul.f32 %v1183, %v1185
    %v1190 = vld [vmem:[%s11] sm:$0xff]
    %v1191 = vld [vmem:[%s11 + $0x8] sm:$0xff]
    %v1192 = vld [vmem:[%s11 + $0x10] sm:$0xff]
    %v1193 = vld [vmem:[%s11 + $0x18] sm:$0xff]
    %v1194 = vld [vmem:[%s11 + $0x20] sm:$0xff]
    %v1195 = vld [vmem:[%s11 + $0x28] sm:$0xff]
    %v1196 = vld [vmem:[%s11 + $0x30] sm:$0xff]
    %v1197 = vld [vmem:[%s11 + $0x38] sm:$0xff]
    %v1198 = vld [vmem:[#allocation13] sm:$0x1]
    %v1200 = vsel %vm415, %v1186, 0
    %v1203 = vsel %vm415, %v1187, 0
    %v1206 = vsel %vm415, %v1188, 0
    %v1209 = vsel %vm415, %v1189, 0
    %1211 = vmatprep.subr.mxu0 0.0
    %1212 = vmatpush1.msra.mxu0 0.0
    %1213 = vmatprep.subr.mxu0 0.0
    %1214 = vmatpush1.msra.mxu0 0.0
    %1215 = vmatprep.subr.mxu0 0.0
    %1216 = vmatpush1.msra.mxu0 0.0
    %1217 = vmatprep.subr.mxu0 0.0
    %1218 = vmatpush1.msra.mxu0 0.0
    %1219 = vmatprep.subr.mxu0 0.0
    %1220 = vmatpush1.msra.mxu0 0.0
    %1221 = vmatprep.subr.mxu0 0.0
    %1222 = vmatpush1.msra.mxu0 0.0
    %1223 = vmatprep.subr.mxu0 0.0
    %1224 = vmatpush1.msra.mxu0 0.0
    %1225 = vmatprep.subr.mxu0 0.0
    %1226 = vmatpush1.msra.mxu0 0.0
    %1227 = vmatprep.subr.mxu0 0.0
    %1228 = vmatpush1.msra.mxu0 %v1197
    %1229 = vmatprep.subr.mxu0 0.0
    %1230 = vmatpush1.msra.mxu0 %v1196
    %1231 = vmatprep.subr.mxu0 0.0
    %1232 = vmatpush1.msra.mxu0 %v1195
    %1233 = vmatprep.subr.mxu0 0.0
    %1234 = vmatpush1.msra.mxu0 %v1194
    %1235 = vmatprep.subr.mxu0 0.0
    %1236 = vmatpush1.msra.mxu0 %v1193
    %1237 = vmatprep.subr.mxu0 0.0
    %1238 = vmatpush1.msra.mxu0 %v1192
    %1239 = vmatprep.subr.mxu0 0.0
    %1240 = vmatpush1.msra.mxu0 %v1191
    %1241 = vmatprep.subr.mxu0 0.0
    %1242 = vmatpush1.msra.mxu0 %v1190
    %1243 = vmatprep.subr.mxu0 0.0
    %1244 = vmatpush2.msra.mxu0 0.0
    %1245 = vmatprep.subr.mxu0 0.0
    %1246 = vmatpush2.msra.mxu0 0.0
    %1247 = vmatprep.subr.mxu0 0.0
    %1248 = vmatpush2.msra.mxu0 0.0
    %1249 = vmatprep.subr.mxu0 0.0
    %1250 = vmatpush2.msra.mxu0 0.0
    %1251 = vmatprep.subr.mxu0 0.0
    %1252 = vmatpush2.msra.mxu0 0.0
    %1253 = vmatprep.subr.mxu0 0.0
    %1254 = vmatpush2.msra.mxu0 0.0
    %1255 = vmatprep.subr.mxu0 0.0
    %1256 = vmatpush2.msra.mxu0 0.0
    %1257 = vmatprep.subr.mxu0 0.0
    %1258 = vmatpush2.msra.mxu0 0.0
    %1259 = vmatprep.subr.mxu0 0.0
    %1260 = vmatpush2.msra.mxu0 0.0
    %1261 = vmatprep.subr.mxu0 0.0
    %1262 = vmatpush2.msra.mxu0 0.0
    %1263 = vmatprep.subr.mxu0 0.0
    %1264 = vmatpush2.msra.mxu0 0.0
    %1265 = vmatprep.subr.mxu0 0.0
    %1266 = vmatpush2.msra.mxu0 0.0
    %1267 = vmatprep.subr.mxu0 0.0
    %1268 = vmatpush2.msra.mxu0 0.0
    %1269 = vmatprep.subr.mxu0 0.0
    %1270 = vmatpush2.msra.mxu0 0.0
    %1271 = vmatprep.subr.mxu0 0.0
    %1272 = vmatpush2.msra.mxu0 0.0
    %1273 = vmatprep.subr.mxu0 0.0
    %1274 = vmatpush2.msra.mxu0 0.0
    %1275 = vmatprep.mubr.f32.mxu0 0.0
    %1276 = vmatmul.mubr.f32.gmra.mxu0 %v1200
    %v1277 = vpop.f32.mrf.mxu0
    %v1278 = vadd.f32 0.0, %v1277
    %v1279 = vpop.f32.mrf.mxu0
    %1280 = vmatprep.mubr.f32.mxu0 0.0
    %1281 = vmatmul.mubr.f32.gmra.mxu0 %v1203
    %v1282 = vpop.f32.mrf.mxu0
    %v1283 = vadd.f32 0.0, %v1282
    %v1284 = vpop.f32.mrf.mxu0
    %1285 = vmatprep.mubr.f32.mxu0 0.0
    %1286 = vmatmul.mubr.f32.gmra.mxu0 %v1206
    %v1287 = vpop.f32.mrf.mxu0
    %v1288 = vadd.f32 0.0, %v1287
    %v1289 = vpop.f32.mrf.mxu0
    %1290 = vmatprep.mubr.f32.mxu0 0.0
    %1291 = vmatmul.mubr.f32.gmra.mxu0 %v1209
    %v1292 = vpop.f32.mrf.mxu0
    %v1293 = vadd.f32 0.0, %v1292
    %v1294 = vpop.f32.mrf.mxu0
    %1295 = vdwg.mxu0
    %v1297 = vlaneseq
    %v1298 = vshrl.u32 %v1297, 7
    %v1299 = vsub.s32 0, %v1298
    %v1300 = vrot.slane %v1198, %v1299
    %1302 = vmatprep.subr.mxu0 0.0
    %1303 = vmatpush1.msra.mxu0 0.0
    %1304 = vmatprep.subr.mxu0 0.0
    %1305 = vmatpush1.msra.mxu0 0.0
    %1306 = vmatprep.subr.mxu0 0.0
    %1307 = vmatpush1.msra.mxu0 0.0
    %1308 = vmatprep.subr.mxu0 0.0
    %1309 = vmatpush1.msra.mxu0 0.0
    %1310 = vmatprep.subr.mxu0 0.0
    %1311 = vmatpush1.msra.mxu0 0.0
    %1312 = vmatprep.subr.mxu0 0.0
    %1313 = vmatpush1.msra.mxu0 0.0
    %1314 = vmatprep.subr.mxu0 0.0
    %1315 = vmatpush1.msra.mxu0 0.0
    %1316 = vmatprep.subr.mxu0 0.0
    %1317 = vmatpush1.msra.mxu0 0.0
    %1318 = vmatprep.subr.mxu0 0.0
    %1319 = vmatpush1.msra.mxu0 0.0
    %1320 = vmatprep.subr.mxu0 0.0
    %1321 = vmatpush1.msra.mxu0 0.0
    %1322 = vmatprep.subr.mxu0 0.0
    %1323 = vmatpush1.msra.mxu0 0.0
    %1324 = vmatprep.subr.mxu0 0.0
    %1325 = vmatpush1.msra.mxu0 0.0
    %1326 = vmatprep.subr.mxu0 0.0
    %1327 = vmatpush1.msra.mxu0 %v1293
    %1328 = vmatprep.subr.mxu0 0.0
    %1329 = vmatpush1.msra.mxu0 %v1288
    %1330 = vmatprep.subr.mxu0 0.0
    %1331 = vmatpush1.msra.mxu0 %v1283
    %1332 = vmatprep.subr.mxu0 0.0
    %1333 = vmatpush1.msra.mxu0 %v1278
    %1334 = vmatprep.subr.mxu0 0.0
    %1335 = vmatpush2.msra.mxu0 0.0
    %1336 = vmatprep.subr.mxu0 0.0
    %1337 = vmatpush2.msra.mxu0 0.0
    %1338 = vmatprep.subr.mxu0 0.0
    %1339 = vmatpush2.msra.mxu0 0.0
    %1340 = vmatprep.subr.mxu0 0.0
    %1341 = vmatpush2.msra.mxu0 0.0
    %1342 = vmatprep.subr.mxu0 0.0
    %1343 = vmatpush2.msra.mxu0 0.0
    %1344 = vmatprep.subr.mxu0 0.0
    %1345 = vmatpush2.msra.mxu0 0.0
    %1346 = vmatprep.subr.mxu0 0.0
    %1347 = vmatpush2.msra.mxu0 0.0
    %1348 = vmatprep.subr.mxu0 0.0
    %1349 = vmatpush2.msra.mxu0 0.0
    %1350 = vmatprep.subr.mxu0 0.0
    %1351 = vmatpush2.msra.mxu0 0.0
    %1352 = vmatprep.subr.mxu0 0.0
    %1353 = vmatpush2.msra.mxu0 0.0
    %1354 = vmatprep.subr.mxu0 0.0
    %1355 = vmatpush2.msra.mxu0 0.0
    %1356 = vmatprep.subr.mxu0 0.0
    %1357 = vmatpush2.msra.mxu0 0.0
    %1358 = vmatprep.subr.mxu0 0.0
    %1359 = vmatpush2.msra.mxu0 0.0
    %1360 = vmatprep.subr.mxu0 0.0
    %1361 = vmatpush2.msra.mxu0 0.0
    %1362 = vmatprep.subr.mxu0 0.0
    %1363 = vmatpush2.msra.mxu0 0.0
    %1364 = vmatprep.subr.mxu0 0.0
    %1365 = vmatpush2.msra.mxu0 0.0
    %1366 = vmatprep.mubr.f32.mxu0 0.0
    %1367 = vmatmul.mubr.f32.gmra.mxu0 %v291
    %v1368 = vpop.f32.mrf.mxu0
    %v1369 = vadd.f32 %v1300, %v1368
    %v1370 = vpop.f32.mrf.mxu0
    %1371 = vmatprep.mubr.f32.mxu0 0.0
    %1372 = vmatmul.mubr.f32.gmra.mxu0 %v294
    %v1373 = vpop.f32.mrf.mxu0
    %v1374 = vadd.f32 %v1300, %v1373
    %v1375 = vpop.f32.mrf.mxu0
    %1376 = vmatprep.mubr.f32.mxu0 0.0
    %1377 = vmatmul.mubr.f32.gmra.mxu0 %v297
    %v1378 = vpop.f32.mrf.mxu0
    %v1379 = vadd.f32 %v1300, %v1378
    %v1380 = vpop.f32.mrf.mxu0
    %1381 = vmatprep.mubr.f32.mxu0 0.0
    %1382 = vmatmul.mubr.f32.gmra.mxu0 %v300
    %v1383 = vpop.f32.mrf.mxu0
    %v1384 = vadd.f32 %v1300, %v1383
    %v1385 = vpop.f32.mrf.mxu0
    %1386 = vdwg.mxu0
    %v1387 = vmul.f32 %v1369, %v390
    %v1388 = vmul.f32 %v1374, %v395
    %v1389 = vmul.f32 %v1379, %v400
    %v1390 = vmul.f32 %v1384, %v405
    %v1391 = vmax.f32 %v1387, 0.0
    %v1392 = vmax.f32 %v1388, 0.0
    %v1393 = vmax.f32 %v1389, 0.0
    %v1394 = vmax.f32 %v1390, 0.0
    %v1395 = vsel %vm415, %v1391, 0.0
    %v1396 = vsel %vm415, %v1392, 0.0
    %v1397 = vadd.f32 %v1395, %v1396
    %v1398 = vsel %vm415, %v1393, 0.0
    %v1399 = vadd.f32 %v1397, %v1398
    %v1400 = vsel %vm415, %v1394, 0.0
    %v1401 = vadd.f32 %v1399, %v1400
    %v1402 = vrot.slane %v1401, 4
    %v1403 = vadd.f32 %v1401, %v1402
    %v1404 = vrot.slane %v1403, 2
    %v1405 = vadd.f32 %v1403, %v1404
    %v1406 = vrot.slane %v1405, 1
    %v1407 = vadd.f32 %v1405, %v1406
    %v1408 = vmul.f32 %v1407, 0.03125
    %v1409 = vmul.f32 %v1391, %v1391
    %v1410 = vmul.f32 %v1392, %v1392
    %v1411 = vmul.f32 %v1393, %v1393
    %v1412 = vmul.f32 %v1394, %v1394
    %v1413 = vsel %vm415, %v1409, 0.0
    %v1414 = vsel %vm415, %v1410, 0.0
    %v1415 = vadd.f32 %v1413, %v1414
    %v1416 = vsel %vm415, %v1411, 0.0
    %v1417 = vadd.f32 %v1415, %v1416
    %v1418 = vsel %vm415, %v1412, 0.0
    %v1419 = vadd.f32 %v1417, %v1418
    %v1420 = vrot.slane %v1419, 4
    %v1421 = vadd.f32 %v1419, %v1420
    %v1422 = vrot.slane %v1421, 2
    %v1423 = vadd.f32 %v1421, %v1422
    %v1424 = vrot.slane %v1423, 1
    %v1425 = vadd.f32 %v1423, %v1424
    %v1426 = vmul.f32 %v1425, 0.03125
    %v1427 = vmul.f32 %v1408, %v1408
    %v1428 = vsub.f32 %v1426, %v1427
    %v1429 = vsub.f32 %v1391, %v1408
    %v1430 = vsub.f32 %v1392, %v1408
    %v1431 = vsub.f32 %v1393, %v1408
    %v1432 = vsub.f32 %v1394, %v1408
    %v1433 = vadd.f32 %v1428, 1e-05
    %v1434 = vrsqrt.pop %v1433
    %v1435 = vmul.f32 %v1429, %v1434
    %v1436 = vmul.f32 %v1430, %v1434
    %v1437 = vmul.f32 %v1431, %v1434
    %v1438 = vmul.f32 %v1432, %v1434
    %v1439 = vld [vmem:[%s13] sm:$0xff]
    %v1440 = vld [vmem:[%s13 + $0x8] sm:$0xff]
    %v1441 = vld [vmem:[%s13 + $0x10] sm:$0xff]
    %v1442 = vld [vmem:[%s13 + $0x18] sm:$0xff]
    %v1443 = vld [vmem:[%s13 + $0x20] sm:$0xff]
    %v1444 = vld [vmem:[%s13 + $0x28] sm:$0xff]
    %v1445 = vld [vmem:[%s13 + $0x30] sm:$0xff]
    %v1446 = vld [vmem:[%s13 + $0x38] sm:$0xff]
    %v1447 = vld [vmem:[#allocation14] sm:$0x1]
    %v1449 = vsel %vm415, %v1435, 0
    %v1452 = vsel %vm415, %v1436, 0
    %v1455 = vsel %vm415, %v1437, 0
    %v1458 = vsel %vm415, %v1438, 0
    %1460 = vmatprep.subr.mxu0 0.0
    %1461 = vmatpush1.msra.mxu0 0.0
    %1462 = vmatprep.subr.mxu0 0.0
    %1463 = vmatpush1.msra.mxu0 0.0
    %1464 = vmatprep.subr.mxu0 0.0
    %1465 = vmatpush1.msra.mxu0 0.0
    %1466 = vmatprep.subr.mxu0 0.0
    %1467 = vmatpush1.msra.mxu0 0.0
    %1468 = vmatprep.subr.mxu0 0.0
    %1469 = vmatpush1.msra.mxu0 0.0
    %1470 = vmatprep.subr.mxu0 0.0
    %1471 = vmatpush1.msra.mxu0 0.0
    %1472 = vmatprep.subr.mxu0 0.0
    %1473 = vmatpush1.msra.mxu0 0.0
    %1474 = vmatprep.subr.mxu0 0.0
    %1475 = vmatpush1.msra.mxu0 0.0
    %1476 = vmatprep.subr.mxu0 0.0
    %1477 = vmatpush1.msra.mxu0 %v1446
    %1478 = vmatprep.subr.mxu0 0.0
    %1479 = vmatpush1.msra.mxu0 %v1445
    %1480 = vmatprep.subr.mxu0 0.0
    %1481 = vmatpush1.msra.mxu0 %v1444
    %1482 = vmatprep.subr.mxu0 0.0
    %1483 = vmatpush1.msra.mxu0 %v1443
    %1484 = vmatprep.subr.mxu0 0.0
    %1485 = vmatpush1.msra.mxu0 %v1442
    %1486 = vmatprep.subr.mxu0 0.0
    %1487 = vmatpush1.msra.mxu0 %v1441
    %1488 = vmatprep.subr.mxu0 0.0
    %1489 = vmatpush1.msra.mxu0 %v1440
    %1490 = vmatprep.subr.mxu0 0.0
    %1491 = vmatpush1.msra.mxu0 %v1439
    %1492 = vmatprep.subr.mxu0 0.0
    %1493 = vmatpush2.msra.mxu0 0.0
    %1494 = vmatprep.subr.mxu0 0.0
    %1495 = vmatpush2.msra.mxu0 0.0
    %1496 = vmatprep.subr.mxu0 0.0
    %1497 = vmatpush2.msra.mxu0 0.0
    %1498 = vmatprep.subr.mxu0 0.0
    %1499 = vmatpush2.msra.mxu0 0.0
    %1500 = vmatprep.subr.mxu0 0.0
    %1501 = vmatpush2.msra.mxu0 0.0
    %1502 = vmatprep.subr.mxu0 0.0
    %1503 = vmatpush2.msra.mxu0 0.0
    %1504 = vmatprep.subr.mxu0 0.0
    %1505 = vmatpush2.msra.mxu0 0.0
    %1506 = vmatprep.subr.mxu0 0.0
    %1507 = vmatpush2.msra.mxu0 0.0
    %1508 = vmatprep.subr.mxu0 0.0
    %1509 = vmatpush2.msra.mxu0 0.0
    %1510 = vmatprep.subr.mxu0 0.0
    %1511 = vmatpush2.msra.mxu0 0.0
    %1512 = vmatprep.subr.mxu0 0.0
    %1513 = vmatpush2.msra.mxu0 0.0
    %1514 = vmatprep.subr.mxu0 0.0
    %1515 = vmatpush2.msra.mxu0 0.0
    %1516 = vmatprep.subr.mxu0 0.0
    %1517 = vmatpush2.msra.mxu0 0.0
    %1518 = vmatprep.subr.mxu0 0.0
    %1519 = vmatpush2.msra.mxu0 0.0
    %1520 = vmatprep.subr.mxu0 0.0
    %1521 = vmatpush2.msra.mxu0 0.0
    %1522 = vmatprep.subr.mxu0 0.0
    %1523 = vmatpush2.msra.mxu0 0.0
    %1524 = vmatprep.mubr.f32.mxu0 0.0
    %1525 = vmatmul.mubr.f32.gmra.mxu0 %v1449
    %v1526 = vpop.f32.mrf.mxu0
    %v1527 = vadd.f32 0.0, %v1526
    %v1528 = vpop.f32.mrf.mxu0
    %1529 = vmatprep.mubr.f32.mxu0 0.0
    %1530 = vmatmul.mubr.f32.gmra.mxu0 %v1452
    %v1531 = vpop.f32.mrf.mxu0
    %v1532 = vadd.f32 0.0, %v1531
    %v1533 = vpop.f32.mrf.mxu0
    %1534 = vmatprep.mubr.f32.mxu0 0.0
    %1535 = vmatmul.mubr.f32.gmra.mxu0 %v1455
    %v1536 = vpop.f32.mrf.mxu0
    %v1537 = vadd.f32 0.0, %v1536
    %v1538 = vpop.f32.mrf.mxu0
    %1539 = vmatprep.mubr.f32.mxu0 0.0
    %1540 = vmatmul.mubr.f32.gmra.mxu0 %v1458
    %v1541 = vpop.f32.mrf.mxu0
    %v1542 = vadd.f32 0.0, %v1541
    %v1543 = vpop.f32.mrf.mxu0
    %1544 = vdwg.mxu0
    %v1546 = vlaneseq
    %v1547 = vshrl.u32 %v1546, 7
    %v1548 = vsub.s32 0, %v1547
    %v1549 = vrot.slane %v1447, %v1548
    %1551 = vmatprep.subr.mxu0 0.0
    %1552 = vmatpush1.msra.mxu0 0.0
    %1553 = vmatprep.subr.mxu0 0.0
    %1554 = vmatpush1.msra.mxu0 0.0
    %1555 = vmatprep.subr.mxu0 0.0
    %1556 = vmatpush1.msra.mxu0 0.0
    %1557 = vmatprep.subr.mxu0 0.0
    %1558 = vmatpush1.msra.mxu0 0.0
    %1559 = vmatprep.subr.mxu0 0.0
    %1560 = vmatpush1.msra.mxu0 0.0
    %1561 = vmatprep.subr.mxu0 0.0
    %1562 = vmatpush1.msra.mxu0 0.0
    %1563 = vmatprep.subr.mxu0 0.0
    %1564 = vmatpush1.msra.mxu0 0.0
    %1565 = vmatprep.subr.mxu0 0.0
    %1566 = vmatpush1.msra.mxu0 0.0
    %1567 = vmatprep.subr.mxu0 0.0
    %1568 = vmatpush1.msra.mxu0 0.0
    %1569 = vmatprep.subr.mxu0 0.0
    %1570 = vmatpush1.msra.mxu0 0.0
    %1571 = vmatprep.subr.mxu0 0.0
    %1572 = vmatpush1.msra.mxu0 0.0
    %1573 = vmatprep.subr.mxu0 0.0
    %1574 = vmatpush1.msra.mxu0 0.0
    %1575 = vmatprep.subr.mxu0 0.0
    %1576 = vmatpush1.msra.mxu0 %v1542
    %1577 = vmatprep.subr.mxu0 0.0
    %1578 = vmatpush1.msra.mxu0 %v1537
    %1579 = vmatprep.subr.mxu0 0.0
    %1580 = vmatpush1.msra.mxu0 %v1532
    %1581 = vmatprep.subr.mxu0 0.0
    %1582 = vmatpush1.msra.mxu0 %v1527
    %1583 = vmatprep.subr.mxu0 0.0
    %1584 = vmatpush2.msra.mxu0 0.0
    %1585 = vmatprep.subr.mxu0 0.0
    %1586 = vmatpush2.msra.mxu0 0.0
    %1587 = vmatprep.subr.mxu0 0.0
    %1588 = vmatpush2.msra.mxu0 0.0
    %1589 = vmatprep.subr.mxu0 0.0
    %1590 = vmatpush2.msra.mxu0 0.0
    %1591 = vmatprep.subr.mxu0 0.0
    %1592 = vmatpush2.msra.mxu0 0.0
    %1593 = vmatprep.subr.mxu0 0.0
    %1594 = vmatpush2.msra.mxu0 0.0
    %1595 = vmatprep.subr.mxu0 0.0
    %1596 = vmatpush2.msra.mxu0 0.0
    %1597 = vmatprep.subr.mxu0 0.0
    %1598 = vmatpush2.msra.mxu0 0.0
    %1599 = vmatprep.subr.mxu0 0.0
    %1600 = vmatpush2.msra.mxu0 0.0
    %1601 = vmatprep.subr.mxu0 0.0
    %1602 = vmatpush2.msra.mxu0 0.0
    %1603 = vmatprep.subr.mxu0 0.0
    %1604 = vmatpush2.msra.mxu0 0.0
    %1605 = vmatprep.subr.mxu0 0.0
    %1606 = vmatpush2.msra.mxu0 0.0
    %1607 = vmatprep.subr.mxu0 0.0
    %1608 = vmatpush2.msra.mxu0 0.0
    %1609 = vmatprep.subr.mxu0 0.0
    %1610 = vmatpush2.msra.mxu0 0.0
    %1611 = vmatprep.subr.mxu0 0.0
    %1612 = vmatpush2.msra.mxu0 0.0
    %1613 = vmatprep.subr.mxu0 0.0
    %1614 = vmatpush2.msra.mxu0 0.0
    %1615 = vmatprep.mubr.f32.mxu0 0.0
    %1616 = vmatmul.mubr.f32.gmra.mxu0 %v291
    %v1617 = vpop.f32.mrf.mxu0
    %v1618 = vadd.f32 %v1549, %v1617
    %v1619 = vpop.f32.mrf.mxu0
    %1620 = vmatprep.mubr.f32.mxu0 0.0
    %1621 = vmatmul.mubr.f32.gmra.mxu0 %v294
    %v1622 = vpop.f32.mrf.mxu0
    %v1623 = vadd.f32 %v1549, %v1622
    %v1624 = vpop.f32.mrf.mxu0
    %1625 = vmatprep.mubr.f32.mxu0 0.0
    %1626 = vmatmul.mubr.f32.gmra.mxu0 %v297
    %v1627 = vpop.f32.mrf.mxu0
    %v1628 = vadd.f32 %v1549, %v1627
    %v1629 = vpop.f32.mrf.mxu0
    %1630 = vmatprep.mubr.f32.mxu0 0.0
    %1631 = vmatmul.mubr.f32.gmra.mxu0 %v300
    %v1632 = vpop.f32.mrf.mxu0
    %v1633 = vadd.f32 %v1549, %v1632
    %v1634 = vpop.f32.mrf.mxu0
    %1635 = vdwg.mxu0
    %v1636 = vmul.f32 %v1618, %v390
    %v1637 = vmul.f32 %v1623, %v395
    %v1638 = vmul.f32 %v1628, %v400
    %v1639 = vmul.f32 %v1633, %v405
    %v1640 = vmax.f32 %v1636, 0.0
    %v1641 = vmax.f32 %v1637, 0.0
    %v1642 = vmax.f32 %v1638, 0.0
    %v1643 = vmax.f32 %v1639, 0.0
    %v1644 = vsel %vm415, %v1640, 0.0
    %v1645 = vsel %vm415, %v1641, 0.0
    %v1646 = vadd.f32 %v1644, %v1645
    %v1647 = vsel %vm415, %v1642, 0.0
    %v1648 = vadd.f32 %v1646, %v1647
    %v1649 = vsel %vm415, %v1643, 0.0
    %v1650 = vadd.f32 %v1648, %v1649
    %v1651 = vrot.slane %v1650, 4
    %v1652 = vadd.f32 %v1650, %v1651
    %v1653 = vrot.slane %v1652, 2
    %v1654 = vadd.f32 %v1652, %v1653
    %v1655 = vrot.slane %v1654, 1
    %v1656 = vadd.f32 %v1654, %v1655
    %v1657 = vmul.f32 %v1656, 0.03125
    %v1658 = vmul.f32 %v1640, %v1640
    %v1659 = vmul.f32 %v1641, %v1641
    %v1660 = vmul.f32 %v1642, %v1642
    %v1661 = vmul.f32 %v1643, %v1643
    %v1662 = vsel %vm415, %v1658, 0.0
    %v1663 = vsel %vm415, %v1659, 0.0
    %v1664 = vadd.f32 %v1662, %v1663
    %v1665 = vsel %vm415, %v1660, 0.0
    %v1666 = vadd.f32 %v1664, %v1665
    %v1667 = vsel %vm415, %v1661, 0.0
    %v1668 = vadd.f32 %v1666, %v1667
    %v1669 = vrot.slane %v1668, 4
    %v1670 = vadd.f32 %v1668, %v1669
    %v1671 = vrot.slane %v1670, 2
    %v1672 = vadd.f32 %v1670, %v1671
    %v1673 = vrot.slane %v1672, 1
    %v1674 = vadd.f32 %v1672, %v1673
    %v1675 = vmul.f32 %v1674, 0.03125
    %v1676 = vmul.f32 %v1657, %v1657
    %v1677 = vsub.f32 %v1675, %v1676
    %v1678 = vsub.f32 %v1640, %v1657
    %v1679 = vsub.f32 %v1641, %v1657
    %v1680 = vsub.f32 %v1642, %v1657
    %v1681 = vsub.f32 %v1643, %v1657
    %v1682 = vadd.f32 %v1677, 1e-05
    %v1683 = vrsqrt.pop %v1682
    %v1684 = vmul.f32 %v1678, %v1683
    %v1685 = vmul.f32 %v1679, %v1683
    %v1686 = vmul.f32 %v1680, %v1683
    %v1687 = vmul.f32 %v1681, %v1683
    %v1688 = vsel %vm914, %v955, -inf
    %1689 = vmax.xlane.f32.xlu0 %v1688
    %v1690 = vpop.xlane.xlu0 %1689
    %v1691 = vsel %vm914, %v956, -inf
    %1692 = vmax.xlane.f32.xlu0 %v1691
    %v1693 = vpop.xlane.xlu0 %1692
    %v1694 = vsel %vm914, %v957, -inf
    %1695 = vmax.xlane.f32.xlu0 %v1694
    %v1696 = vpop.xlane.xlu0 %1695
    %v1697 = vsel %vm914, %v958, -inf
    %1698 = vmax.xlane.f32.xlu0 %v1697
    %v1699 = vpop.xlane.xlu0 %1698
    %v1700 = vsub.f32 %v955, %v1690
    %v1701 = vsub.f32 %v956, %v1693
    %v1702 = vsub.f32 %v957, %v1696
    %v1703 = vsub.f32 %v958, %v1699
    %v1704 = vmul.f32 %v1700, 1.442695
    %v1705 = vpow.pop %v1704
    %v1706 = vmul.f32 %v1701, 1.442695
    %v1707 = vpow.pop %v1706
    %v1708 = vmul.f32 %v1702, 1.442695
    %v1709 = vpow.pop %v1708
    %v1710 = vmul.f32 %v1703, 1.442695
    %v1711 = vpow.pop %v1710
    %v1712 = vsel %vm914, %v1705, 0.0
    %1713 = vadd.xlane.f32.xlu0 %v1712
    %v1714 = vpop.xlane.xlu0 %1713
    %v1715 = vsel %vm914, %v1707, 0.0
    %1716 = vadd.xlane.f32.xlu0 %v1715
    %v1717 = vpop.xlane.xlu0 %1716
    %v1718 = vsel %vm914, %v1709, 0.0
    %1719 = vadd.xlane.f32.xlu0 %v1718
    %v1720 = vpop.xlane.xlu0 %1719
    %v1721 = vsel %vm914, %v1711, 0.0
    %1722 = vadd.xlane.f32.xlu0 %v1721
    %v1723 = vpop.xlane.xlu0 %1722
    %v1724 = vrcp.pop %v1714
    %v1725 = vrcp.pop %v1717
    %v1726 = vrcp.pop %v1720
    %v1727 = vrcp.pop %v1723
    %v1728 = vmul.f32 %v1705, %v1724
    %v1729 = vmul.f32 %v1707, %v1725
    %v1730 = vmul.f32 %v1709, %v1726
    %v1731 = vmul.f32 %v1711, %v1727
    %v1732 = vmul.f32 %v1728, %v390
    %v1733 = vmul.f32 %v1729, %v395
    %v1734 = vmul.f32 %v1730, %v400
    %v1735 = vmul.f32 %v1731, %v405
    %v1736 = vmul.f32 %v1684, %v390
    %v1737 = vmul.f32 %v1685, %v395
    %v1738 = vmul.f32 %v1686, %v400
    %v1739 = vmul.f32 %v1687, %v405
    %1740 = vxpose.xlu0.b32.start [1/16] %v1732, 128
    %1741 = vxpose.xlu0.b32.cont [2/16] %v1733, 128
    %1742 = vxpose.xlu0.b32.cont [3/16] %v1734, 128
    %1743 = vxpose.xlu0.b32.cont [4/16] %v1735, 128
    %1744 = vxpose.xlu0.b32.cont [5/16] 0.0, 128
    %1745 = vxpose.xlu0.b32.cont [6/16] 0.0, 128
    %1746 = vxpose.xlu0.b32.cont [7/16] 0.0, 128
    %1747 = vxpose.xlu0.b32.cont [8/16] 0.0, 128
    %1748 = vxpose.xlu0.b32.cont [9/16] 0.0, 128
    %1749 = vxpose.xlu0.b32.cont [10/16] 0.0, 128
    %1750 = vxpose.xlu0.b32.cont [11/16] 0.0, 128
    %1751 = vxpose.xlu0.b32.cont [12/16] 0.0, 128
    %1752 = vxpose.xlu0.b32.cont [13/16] 0.0, 128
    %1753 = vxpose.xlu0.b32.cont [14/16] 0.0, 128
    %1754 = vxpose.xlu0.b32.cont [15/16] 0.0, 128
    %1755 = vxpose.xlu0.b32.end [16/16] 0.0, 128
    %v1756 = vpop.trf.xlu0
    %v1757 = vpop.trf.xlu0
    %v1758 = vpop.trf.xlu0
    %v1759 = vpop.trf.xlu0
    %v1760 = vpop.trf.xlu0
    %v1761 = vpop.trf.xlu0
    %v1762 = vpop.trf.xlu0
    %v1763 = vpop.trf.xlu0
    %v1764 = vpop.trf.xlu0
    %v1765 = vpop.trf.xlu0
    %v1766 = vpop.trf.xlu0
    %v1767 = vpop.trf.xlu0
    %v1768 = vpop.trf.xlu0
    %v1769 = vpop.trf.xlu0
    %v1770 = vpop.trf.xlu0
    %v1771 = vpop.trf.xlu0
    %v1773 = vsel %vm289, %v1756, 0
    %1775 = vmatprep.subr.mxu0 0.0
    %1776 = vmatpush1.msra.mxu0 0.0
    %1777 = vmatprep.subr.mxu0 0.0
    %1778 = vmatpush1.msra.mxu0 0.0
    %1779 = vmatprep.subr.mxu0 0.0
    %1780 = vmatpush1.msra.mxu0 0.0
    %1781 = vmatprep.subr.mxu0 0.0
    %1782 = vmatpush1.msra.mxu0 0.0
    %1783 = vmatprep.subr.mxu0 0.0
    %1784 = vmatpush1.msra.mxu0 0.0
    %1785 = vmatprep.subr.mxu0 0.0
    %1786 = vmatpush1.msra.mxu0 0.0
    %1787 = vmatprep.subr.mxu0 0.0
    %1788 = vmatpush1.msra.mxu0 0.0
    %1789 = vmatprep.subr.mxu0 0.0
    %1790 = vmatpush1.msra.mxu0 0.0
    %1791 = vmatprep.subr.mxu0 0.0
    %1792 = vmatpush1.msra.mxu0 0.0
    %1793 = vmatprep.subr.mxu0 0.0
    %1794 = vmatpush1.msra.mxu0 0.0
    %1795 = vmatprep.subr.mxu0 0.0
    %1796 = vmatpush1.msra.mxu0 0.0
    %1797 = vmatprep.subr.mxu0 0.0
    %1798 = vmatpush1.msra.mxu0 0.0
    %1799 = vmatprep.subr.mxu0 0.0
    %1800 = vmatpush1.msra.mxu0 %v1739
    %1801 = vmatprep.subr.mxu0 0.0
    %1802 = vmatpush1.msra.mxu0 %v1738
    %1803 = vmatprep.subr.mxu0 0.0
    %1804 = vmatpush1.msra.mxu0 %v1737
    %1805 = vmatprep.subr.mxu0 0.0
    %1806 = vmatpush1.msra.mxu0 %v1736
    %1807 = vmatprep.subr.mxu0 0.0
    %1808 = vmatpush2.msra.mxu0 0.0
    %1809 = vmatprep.subr.mxu0 0.0
    %1810 = vmatpush2.msra.mxu0 0.0
    %1811 = vmatprep.subr.mxu0 0.0
    %1812 = vmatpush2.msra.mxu0 0.0
    %1813 = vmatprep.subr.mxu0 0.0
    %1814 = vmatpush2.msra.mxu0 0.0
    %1815 = vmatprep.subr.mxu0 0.0
    %1816 = vmatpush2.msra.mxu0 0.0
    %1817 = vmatprep.subr.mxu0 0.0
    %1818 = vmatpush2.msra.mxu0 0.0
    %1819 = vmatprep.subr.mxu0 0.0
    %1820 = vmatpush2.msra.mxu0 0.0
    %1821 = vmatprep.subr.mxu0 0.0
    %1822 = vmatpush2.msra.mxu0 0.0
    %1823 = vmatprep.subr.mxu0 0.0
    %1824 = vmatpush2.msra.mxu0 0.0
    %1825 = vmatprep.subr.mxu0 0.0
    %1826 = vmatpush2.msra.mxu0 0.0
    %1827 = vmatprep.subr.mxu0 0.0
    %1828 = vmatpush2.msra.mxu0 0.0
    %1829 = vmatprep.subr.mxu0 0.0
    %1830 = vmatpush2.msra.mxu0 0.0
    %1831 = vmatprep.subr.mxu0 0.0
    %1832 = vmatpush2.msra.mxu0 0.0
    %1833 = vmatprep.subr.mxu0 0.0
    %1834 = vmatpush2.msra.mxu0 0.0
    %1835 = vmatprep.subr.mxu0 0.0
    %1836 = vmatpush2.msra.mxu0 0.0
    %1837 = vmatprep.subr.mxu0 0.0
    %1838 = vmatpush2.msra.mxu0 0.0
    %1839 = vmatprep.mubr.f32.mxu0 0.0
    %1840 = vmatmul.mubr.f32.gmra.mxu0 %v1773
    %v1841 = vpop.f32.mrf.mxu0
    %v1842 = vadd.f32 0.0, %v1841
    %v1843 = vpop.f32.mrf.mxu0
    %1844 = vdwg.mxu0
    %1845 = vst.msk [vmem:[%s15] sm:$0xff] %vm415, %v1842
    %1846 = vmatprep.subr.mxu0 0.0
    %1847 = vmatpush1.msra.mxu0 0.0
    %1848 = vmatprep.subr.mxu0 0.0
    %1849 = vmatpush1.msra.mxu0 0.0
    %1850 = vmatprep.subr.mxu0 0.0
    %1851 = vmatpush1.msra.mxu0 0.0
    %1852 = vmatprep.subr.mxu0 0.0
    %1853 = vmatpush1.msra.mxu0 0.0
    %1854 = vmatprep.subr.mxu0 0.0
    %1855 = vmatpush1.msra.mxu0 0.0
    %1856 = vmatprep.subr.mxu0 0.0
    %1857 = vmatpush1.msra.mxu0 0.0
    %1858 = vmatprep.subr.mxu0 0.0
    %1859 = vmatpush1.msra.mxu0 0.0
    %1860 = vmatprep.subr.mxu0 0.0
    %1861 = vmatpush1.msra.mxu0 0.0
    %1862 = vmatprep.subr.mxu0 0.0
    %1863 = vmatpush1.msra.mxu0 0.0
    %1864 = vmatprep.subr.mxu0 0.0
    %1865 = vmatpush1.msra.mxu0 0.0
    %1866 = vmatprep.subr.mxu0 0.0
    %1867 = vmatpush1.msra.mxu0 0.0
    %1868 = vmatprep.subr.mxu0 0.0
    %1869 = vmatpush1.msra.mxu0 0.0
    %1870 = vmatprep.subr.mxu0 0.0
    %1871 = vmatpush1.msra.mxu0 %v158
    %1872 = vmatprep.subr.mxu0 0.0
    %1873 = vmatpush1.msra.mxu0 %v157
    %1874 = vmatprep.subr.mxu0 0.0
    %1875 = vmatpush1.msra.mxu0 %v156
    %1876 = vmatprep.subr.mxu0 0.0
    %1877 = vmatpush1.msra.mxu0 %v155
    %1878 = vmatprep.subr.mxu0 0.0
    %1879 = vmatpush2.msra.mxu0 0.0
    %1880 = vmatprep.subr.mxu0 0.0
    %1881 = vmatpush2.msra.mxu0 0.0
    %1882 = vmatprep.subr.mxu0 0.0
    %1883 = vmatpush2.msra.mxu0 0.0
    %1884 = vmatprep.subr.mxu0 0.0
    %1885 = vmatpush2.msra.mxu0 0.0
    %1886 = vmatprep.subr.mxu0 0.0
    %1887 = vmatpush2.msra.mxu0 0.0
    %1888 = vmatprep.subr.mxu0 0.0
    %1889 = vmatpush2.msra.mxu0 0.0
    %1890 = vmatprep.subr.mxu0 0.0
    %1891 = vmatpush2.msra.mxu0 0.0
    %1892 = vmatprep.subr.mxu0 0.0
    %1893 = vmatpush2.msra.mxu0 0.0
    %1894 = vmatprep.subr.mxu0 0.0
    %1895 = vmatpush2.msra.mxu0 0.0
    %1896 = vmatprep.subr.mxu0 0.0
    %1897 = vmatpush2.msra.mxu0 0.0
    %1898 = vmatprep.subr.mxu0 0.0
    %1899 = vmatpush2.msra.mxu0 0.0
    %1900 = vmatprep.subr.mxu0 0.0
    %1901 = vmatpush2.msra.mxu0 0.0
    %1902 = vmatprep.subr.mxu0 0.0
    %1903 = vmatpush2.msra.mxu0 0.0
    %1904 = vmatprep.subr.mxu0 0.0
    %1905 = vmatpush2.msra.mxu0 0.0
    %1906 = vmatprep.subr.mxu0 0.0
    %1907 = vmatpush2.msra.mxu0 0.0
    %1908 = vmatprep.subr.mxu0 0.0
    %1909 = vmatpush2.msra.mxu0 0.0
    %1910 = vmatprep.mubr.f32.mxu0 0.0
    %1911 = vmatmul.mubr.f32.gmra.mxu0 %v1773
    %v1912 = vpop.f32.mrf.mxu0
    %v1913 = vadd.f32 0.0, %v1912
    %v1914 = vpop.f32.mrf.mxu0
    %1915 = vdwg.mxu0
    %v1917 = vsel %vm289, %v1913, 0
    %1919 = vmatprep.subr.mxu0 0.0
    %1920 = vmatpush1.msra.mxu0 0.0
    %1921 = vmatprep.subr.mxu0 0.0
    %1922 = vmatpush1.msra.mxu0 0.0
    %1923 = vmatprep.subr.mxu0 0.0
    %1924 = vmatpush1.msra.mxu0 0.0
    %1925 = vmatprep.subr.mxu0 0.0
    %1926 = vmatpush1.msra.mxu0 0.0
    %1927 = vmatprep.subr.mxu0 0.0
    %1928 = vmatpush1.msra.mxu0 0.0
    %1929 = vmatprep.subr.mxu0 0.0
    %1930 = vmatpush1.msra.mxu0 0.0
    %1931 = vmatprep.subr.mxu0 0.0
    %1932 = vmatpush1.msra.mxu0 0.0
    %1933 = vmatprep.subr.mxu0 0.0
    %1934 = vmatpush1.msra.mxu0 0.0
    %1935 = vmatprep.subr.mxu0 0.0
    %1936 = vmatpush1.msra.mxu0 0.0
    %1937 = vmatprep.subr.mxu0 0.0
    %1938 = vmatpush1.msra.mxu0 0.0
    %1939 = vmatprep.subr.mxu0 0.0
    %1940 = vmatpush1.msra.mxu0 0.0
    %1941 = vmatprep.subr.mxu0 0.0
    %1942 = vmatpush1.msra.mxu0 0.0
    %1943 = vmatprep.subr.mxu0 0.0
    %1944 = vmatpush1.msra.mxu0 %v1735
    %1945 = vmatprep.subr.mxu0 0.0
    %1946 = vmatpush1.msra.mxu0 %v1734
    %1947 = vmatprep.subr.mxu0 0.0
    %1948 = vmatpush1.msra.mxu0 %v1733
    %1949 = vmatprep.subr.mxu0 0.0
    %1950 = vmatpush1.msra.mxu0 %v1732
    %1951 = vmatprep.subr.mxu0 0.0
    %1952 = vmatpush2.msra.mxu0 0.0
    %1953 = vmatprep.subr.mxu0 0.0
    %1954 = vmatpush2.msra.mxu0 0.0
    %1955 = vmatprep.subr.mxu0 0.0
    %1956 = vmatpush2.msra.mxu0 0.0
    %1957 = vmatprep.subr.mxu0 0.0
    %1958 = vmatpush2.msra.mxu0 0.0
    %1959 = vmatprep.subr.mxu0 0.0
    %1960 = vmatpush2.msra.mxu0 0.0
    %1961 = vmatprep.subr.mxu0 0.0
    %1962 = vmatpush2.msra.mxu0 0.0
    %1963 = vmatprep.subr.mxu0 0.0
    %1964 = vmatpush2.msra.mxu0 0.0
    %1965 = vmatprep.subr.mxu0 0.0
    %1966 = vmatpush2.msra.mxu0 0.0
    %1967 = vmatprep.subr.mxu0 0.0
    %1968 = vmatpush2.msra.mxu0 0.0
    %1969 = vmatprep.subr.mxu0 0.0
    %1970 = vmatpush2.msra.mxu0 0.0
    %1971 = vmatprep.subr.mxu0 0.0
    %1972 = vmatpush2.msra.mxu0 0.0
    %1973 = vmatprep.subr.mxu0 0.0
    %1974 = vmatpush2.msra.mxu0 0.0
    %1975 = vmatprep.subr.mxu0 0.0
    %1976 = vmatpush2.msra.mxu0 0.0
    %1977 = vmatprep.subr.mxu0 0.0
    %1978 = vmatpush2.msra.mxu0 0.0
    %1979 = vmatprep.subr.mxu0 0.0
    %1980 = vmatpush2.msra.mxu0 0.0
    %1981 = vmatprep.subr.mxu0 0.0
    %1982 = vmatpush2.msra.mxu0 0.0
    %1983 = vmatprep.mubr.f32.mxu0 0.0
    %1984 = vmatmul.mubr.f32.gmra.mxu0 %v1917
    %v1985 = vpop.f32.mrf.mxu0
    %v1986 = vadd.f32 0.0, %v1985
    %v1987 = vpop.f32.mrf.mxu0
    %1988 = vdwg.mxu0
    %1989 = vst.msk [vmem:[%s16] sm:$0xff] %vm914, %v1986
    %v1991 = vsel %vm914, %v1732, 0
    %v1994 = vsel %vm914, %v1733, 0
    %v1997 = vsel %vm914, %v1734, 0
    %v2000 = vsel %vm914, %v1735, 0
    %2002 = vmatprep.subr.mxu0 0.0
    %2003 = vmatpush1.xpose.msra.mxu0 0.0
    %2004 = vmatprep.subr.mxu0 0.0
    %2005 = vmatpush1.xpose.msra.mxu0 0.0
    %2006 = vmatprep.subr.mxu0 0.0
    %2007 = vmatpush1.xpose.msra.mxu0 0.0
    %2008 = vmatprep.subr.mxu0 0.0
    %2009 = vmatpush1.xpose.msra.mxu0 0.0
    %2010 = vmatprep.subr.mxu0 0.0
    %2011 = vmatpush1.xpose.msra.mxu0 0.0
    %2012 = vmatprep.subr.mxu0 0.0
    %2013 = vmatpush1.xpose.msra.mxu0 0.0
    %2014 = vmatprep.subr.mxu0 0.0
    %2015 = vmatpush1.xpose.msra.mxu0 0.0
    %2016 = vmatprep.subr.mxu0 0.0
    %2017 = vmatpush1.xpose.msra.mxu0 0.0
    %2018 = vmatprep.subr.mxu0 0.0
    %2019 = vmatpush1.xpose.msra.mxu0 0.0
    %2020 = vmatprep.subr.mxu0 0.0
    %2021 = vmatpush1.xpose.msra.mxu0 0.0
    %2022 = vmatprep.subr.mxu0 0.0
    %2023 = vmatpush1.xpose.msra.mxu0 0.0
    %2024 = vmatprep.subr.mxu0 0.0
    %2025 = vmatpush1.xpose.msra.mxu0 0.0
    %2026 = vmatprep.subr.mxu0 0.0
    %2027 = vmatpush1.xpose.msra.mxu0 %v2000
    %2028 = vmatprep.subr.mxu0 0.0
    %2029 = vmatpush1.xpose.msra.mxu0 %v1997
    %2030 = vmatprep.subr.mxu0 0.0
    %2031 = vmatpush1.xpose.msra.mxu0 %v1994
    %2032 = vmatprep.subr.mxu0 0.0
    %2033 = vmatpush1.xpose.msra.mxu0 %v1991
    %2034 = vmatprep.subr.mxu0 0.0
    %2035 = vmatpush2.xpose.msra.mxu0 0.0
    %2036 = vmatprep.subr.mxu0 0.0
    %2037 = vmatpush2.xpose.msra.mxu0 0.0
    %2038 = vmatprep.subr.mxu0 0.0
    %2039 = vmatpush2.xpose.msra.mxu0 0.0
    %2040 = vmatprep.subr.mxu0 0.0
    %2041 = vmatpush2.xpose.msra.mxu0 0.0
    %2042 = vmatprep.subr.mxu0 0.0
    %2043 = vmatpush2.xpose.msra.mxu0 0.0
    %2044 = vmatprep.subr.mxu0 0.0
    %2045 = vmatpush2.xpose.msra.mxu0 0.0
    %2046 = vmatprep.subr.mxu0 0.0
    %2047 = vmatpush2.xpose.msra.mxu0 0.0
    %2048 = vmatprep.subr.mxu0 0.0
    %2049 = vmatpush2.xpose.msra.mxu0 0.0
    %2050 = vmatprep.subr.mxu0 0.0
    %2051 = vmatpush2.xpose.msra.mxu0 0.0
    %2052 = vmatprep.subr.mxu0 0.0
    %2053 = vmatpush2.xpose.msra.mxu0 0.0
    %2054 = vmatprep.subr.mxu0 0.0
    %2055 = vmatpush2.xpose.msra.mxu0 0.0
    %2056 = vmatprep.subr.mxu0 0.0
    %2057 = vmatpush2.xpose.msra.mxu0 0.0
    %2058 = vmatprep.subr.mxu0 0.0
    %2059 = vmatpush2.xpose.msra.mxu0 0.0
    %2060 = vmatprep.subr.mxu0 0.0
    %2061 = vmatpush2.xpose.msra.mxu0 0.0
    %2062 = vmatprep.subr.mxu0 0.0
    %2063 = vmatpush2.xpose.msra.mxu0 0.0
    %2064 = vmatprep.subr.mxu0 0.0
    %2065 = vmatpush2.xpose.msra.mxu0 0.0
    %2066 = vmatprep.mubr.f32.mxu0 0.0
    %2067 = vmatmul.mubr.f32.gmra.mxu0 %v1991
    %v2068 = vpop.f32.mrf.mxu0
    %v2069 = vadd.f32 0.0, %v2068
    %v2070 = vpop.f32.mrf.mxu0
    %2071 = vmatprep.mubr.f32.mxu0 0.0
    %2072 = vmatmul.mubr.f32.gmra.mxu0 %v1994
    %v2073 = vpop.f32.mrf.mxu0
    %v2074 = vadd.f32 0.0, %v2073
    %v2075 = vpop.f32.mrf.mxu0
    %2076 = vmatprep.mubr.f32.mxu0 0.0
    %2077 = vmatmul.mubr.f32.gmra.mxu0 %v1997
    %v2078 = vpop.f32.mrf.mxu0
    %v2079 = vadd.f32 0.0, %v2078
    %v2080 = vpop.f32.mrf.mxu0
    %2081 = vmatprep.mubr.f32.mxu0 0.0
    %2082 = vmatmul.mubr.f32.gmra.mxu0 %v2000
    %v2083 = vpop.f32.mrf.mxu0
    %v2084 = vadd.f32 0.0, %v2083
    %v2085 = vpop.f32.mrf.mxu0
    %2086 = vdwg.mxu0
    %v2087 = vsub.f32 %v155, %v2069
    %v2088 = vsub.f32 %v156, %v2074
    %v2089 = vsub.f32 %v157, %v2079
    %v2090 = vsub.f32 %v158, %v2084
    %v2091 = vmul.f32 %v2087, %v2087
    %v2092 = vmul.f32 %v2088, %v2088
    %v2093 = vmul.f32 %v2089, %v2089
    %v2094 = vmul.f32 %v2090, %v2090
    %v2095 = vsel %vm289, %v2091, 0.0
    %v2096 = vsel %vm289, %v2092, 0.0
    %v2097 = vadd.f32 %v2095, %v2096
    %v2098 = vsel %vm289, %v2093, 0.0
    %v2099 = vadd.f32 %v2097, %v2098
    %v2100 = vsel %vm289, %v2094, 0.0
    %v2101 = vadd.f32 %v2099, %v2100
    %2102 = vadd.xlane.f32.xlu0 %v2101
    %v2103 = vpop.xlane.xlu0 %2102
    %v2104 = vrot.slane %v2103, 4
    %v2105 = vadd.f32 %v2103, %v2104
    %v2106 = vrot.slane %v2105, 2
    %v2107 = vadd.f32 %v2105, %v2106
    %v2108 = vrot.slane %v2107, 1
    %v2109 = vadd.f32 %v2107, %v2108
    %s2110 = vtos %v2109
    %v2111 = vstv %s2110
    %v2112 = vrsqrt.pop %v2111
    %v2113 = vmul.f32 %v2111, %v2112
    %vm2114 = vcmp.eq.f32.partialorder %v2111, inf
    %v2115 = vsel %vm2114, %v2111, %v2113
    %vm2116 = vcmp.eq.f32.partialorder %v2111, 0.0
    %v2117 = vand.u32 %v2111, 2147483648
    %v2118 = vsel %vm2116, %v2117, %v2115
    %v2119 = vmul.f32 %v2118, 0.0009765625
    %vm2120 = vcmask 0
    %2121 = vst.msk [vmem:[#allocation16] sm:$0x1] %vm2120, %v2119
    %v2122 = vsub.f32 0.0, %v1732
    %v2123 = vsub.f32 0.0, %v1733
    %v2124 = vsub.f32 0.0, %v1734
    %v2125 = vsub.f32 0.0, %v1735
    %v2126 = vadd.f32 %v1732, 1e-15
    %v2127 = vadd.f32 %v1733, 1e-15
    %v2128 = vadd.f32 %v1734, 1e-15
    %v2129 = vadd.f32 %v1735, 1e-15
    %v2130 = vlog2.pop %v2126
    %v2131 = vmul.f32 %v2130, 0.6931472
    %v2132 = vlog2.pop %v2127
    %v2133 = vmul.f32 %v2132, 0.6931472
    %v2134 = vlog2.pop %v2128
    %v2135 = vmul.f32 %v2134, 0.6931472
    %v2136 = vlog2.pop %v2129
    %v2137 = vmul.f32 %v2136, 0.6931472
    %v2138 = vmul.f32 %v2122, %v2131
    %v2139 = vmul.f32 %v2123, %v2133
    %v2140 = vmul.f32 %v2124, %v2135
    %v2141 = vmul.f32 %v2125, %v2137
    %v2142 = vsel %vm914, %v2138, 0.0
    %v2143 = vsel %vm914, %v2139, 0.0
    %v2144 = vadd.f32 %v2142, %v2143
    %v2145 = vsel %vm914, %v2140, 0.0
    %v2146 = vadd.f32 %v2144, %v2145
    %v2147 = vsel %vm914, %v2141, 0.0
    %v2148 = vadd.f32 %v2146, %v2147
    %2149 = vadd.xlane.f32.xlu0 %v2148
    %v2150 = vpop.xlane.xlu0 %2149
    %v2151 = vrot.slane %v2150, 4
    %v2152 = vadd.f32 %v2150, %v2151
    %v2153 = vrot.slane %v2152, 2
    %v2154 = vadd.f32 %v2152, %v2153
    %v2155 = vrot.slane %v2154, 1
    %v2156 = vadd.f32 %v2154, %v2155
    %s2157 = vtos %v2156
    %v2158 = vstv %s2157
    %v2159 = vmul.f32 %v2158, 0.03125
    %2160 = vst.msk [vmem:[#allocation17] sm:$0x1] %vm2120, %v2159
    // Predicated region
    $region94: #{diffpool_forward.3} parent=1 // pred_check
      _
    $region95: #{diffpool_forward.3} parent=1 // pred_check_branch
      %2162 = sbr.rel (0) target = $region97
    $region96: #{diffpool_forward.3} parent=1 // pred_region
      _
    $region97: #{diffpool_forward.3} parent=1 // pred_fallthru
      _
    // Predicated region
    $region98: #{diffpool_forward.3} parent=1 // pred_check
      _
    $region99: #{diffpool_forward.3} parent=1 // pred_check_branch
      %2164 = sbr.rel (0) target = $region101
    $region100: #{diffpool_forward.3} parent=1 // pred_region
      _
    $region101: #{diffpool_forward.3} parent=1 // pred_fallthru
      _
    // Predicated region
    $region102: #{diffpool_forward.3} parent=1 // pred_check
      _
    $region103: #{diffpool_forward.3} parent=1 // pred_check_branch
      %2166 = sbr.rel (0) target = $region105
    $region104: #{diffpool_forward.3} parent=1 // pred_region
      %s2168 = ssub.s32 16, 16
      %2169 = vsyncadd [#allocation4], %s2168
      %s2171 = sshll.u32 [#allocation16], 4
      %s2172 = int_to_ptr.vmem [resolvable:$true] %s2171
      %2174 = dma.vmem_to_hbm [thread:$0]  %s2172, 16, %s17, [#allocation4]
    $region105: #{diffpool_forward.3} parent=1 // pred_fallthru
      _
    // Predicated region
    $region106: #{diffpool_forward.3} parent=1 // pred_check
      _
    $region107: #{diffpool_forward.3} parent=1 // pred_check_branch
      %2176 = sbr.rel (0) target = $region109
    $region108: #{diffpool_forward.3} parent=1 // pred_region
      %s2178 = ssub.s32 16, 16
      %2179 = vsyncadd [#allocation18], %s2178
      %s2181 = sshll.u32 [#allocation17], 4
      %s2182 = int_to_ptr.vmem [resolvable:$true] %s2181
      %2184 = dma.vmem_to_hbm [thread:$0]  %s2182, 16, %s18, [#allocation18]
    $region109: #{diffpool_forward.3} parent=1 // pred_fallthru
      _
    // Predicated region
    $region110: #{diffpool_forward.3} parent=1 // pred_check
      _
    $region111: #{diffpool_forward.3} parent=1 // pred_check_branch
      %2186 = sbr.rel (0) target = $region113
    $region112: #{diffpool_forward.3} parent=1 // pred_region
      _
    $region113: #{diffpool_forward.3} parent=1 // pred_fallthru
      _
    // Predicated region
    $region114: #{diffpool_forward.3} parent=1 // pred_check
      _
    $region115: #{diffpool_forward.3} parent=1 // pred_check_branch
      %2188 = sbr.rel (0) target = $region117
    $region116: #{diffpool_forward.3} parent=1 // pred_region
      _
    $region117: #{diffpool_forward.3} parent=1 // pred_fallthru
      _
    // Predicated region
    $region118: #{diffpool_forward.3} parent=1 // pred_check
      _
    $region119: #{diffpool_forward.3} parent=1 // pred_check_branch
      %2190 = sbr.rel (0) target = $region121
    $region120: #{diffpool_forward.3} parent=1 // pred_region
      %2191 = dma.done [#allocation4], 16
    $region121: #{diffpool_forward.3} parent=1 // pred_fallthru
      _
    // Predicated region
    $region122: #{diffpool_forward.3} parent=1 // pred_check
      _
    $region123: #{diffpool_forward.3} parent=1 // pred_check_branch
      %2193 = sbr.rel (0) target = $region125
    $region124: #{diffpool_forward.3} parent=1 // pred_region
      %2194 = dma.done [#allocation18], 16
    $region125: #{diffpool_forward.3} parent=1 // pred_fallthru
      _
    %2195 = vsyncpa [#allocation3], 1
    %2196 = vsyncpa [#allocation6], 1
    %2197 = vsyncpa [#allocation9], 1
    %2198 = vsyncpa [#allocation12], 1
    %2199 = vsyncpa [#allocation15], 1
    %2200 = vsyncpa [#allocation4], 1
    %2201 = vsyncpa [#allocation18], 1

</llo_original>
